<compile_context>
chip_gen: v7x
topology: tpu7x:2x2x1
jax: 0.10.0
libtpu: 0.0.40
codegen_flags: <defaults>
</compile_context>

<pallas_src>
import functools

import jax
import jax.numpy as jnp
from jax import lax
from jax.experimental import pallas as pl
from jax.experimental.pallas import tpu as pltpu

# ----- problem sizes (small, consistent with the module) ---------------------
N, H, W = 2, 16, 16
CIN, COUT = 4, 8
KH, KW = 3, 3
PAD = 1
HP, WP = H + 2 * PAD, W + 2 * PAD
HW = H * W                      # 256 -> lane-dense output width
K1 = KH * KW * CIN + 1          # 36 im2col taps + 1 bias column = 37

LAMDA = 0.5                     # lamda != 0.0 -> regularizer branch active
TRAINING = True                 # module.training


def _conv_reg_kernel(x_ref, w_ref, *rest, lamda, use_reg):
    """Grid-less invocation; everything resident in VMEM.

    x_ref    : (N, H, W, CIN)    activations, NHWC (channels on lanes for slicing)
    w_ref    : (COUT, K1)        weight matrix, columns ordered (kh, kw, cin), bias last
    p_ref    : (N, COUT, H*W)    ps[batch_idx], only present if use_reg
    o_ref    : (N, COUT, H*W)    lane-dense output (free reshape to NCHW outside)
    xpad_ref : (N, HP, WP, CIN)  scratch: in-kernel zero padding
    patch_ref: (H*W, K1)         scratch: im2col matrix (refilled per sample)
    """
    if use_reg:
        p_ref, o_ref, xpad_ref, patch_ref = rest
    else:
        o_ref, xpad_ref, patch_ref = rest

    # In-kernel zero padding (replaces wrapper-side jnp.pad + extra HBM round trip).
    xpad_ref[...] = jnp.zeros_like(xpad_ref)
    xpad_ref[:, PAD:PAD + H, PAD:PAD + W, :] = x_ref[...]

    # Bias column of the im2col matrix: constant ones (same for every sample).
    patch_ref[:, K1 - 1:K1] = jnp.ones((HW, 1), jnp.float32)

    for n in range(N):                              # N = 2, fully unrolled
        xp = xpad_ref[n]                            # (HP, WP, CIN)
        # im2col: 9 shifted windows -> columns 0..35 of the patch matrix.
        for kh in range(KH):
            for kw in range(KW):
                c0 = (kh * KW + kw) * CIN
                win = xp[kh:kh + H, kw:kw + W, :]   # (H, W, CIN) static slice
                # (H, W, CIN) -> (H*W, CIN): leading-dim merge only (cheap).
                patch_ref[:, c0:c0 + CIN] = win.reshape(HW, CIN)

        # One fused MXU matmul per sample, bias folded in, lane-dense result:
        #   (COUT, K1) . (HW, K1)^T -> (COUT, HW) = (8, 256)  (2 dense vregs).
        acc = lax.dot_general(
            w_ref[...], patch_ref[...],
            dimension_numbers=(((1,), (1,)), ((), ())),
            preferred_element_type=jnp.float32)

        if use_reg:                                 # y = y + lamda * ps[batch_idx]
            acc = acc + lamda * p_ref[n].astype(jnp.float32)

        o_ref[n] = acc.astype(o_ref.dtype)          # unmasked 256-lane stores


def module_wrapper_forward(x_nhwc, w_oihw, b, p_nchw=None, *,
                           lamda=LAMDA, training=TRAINING):
    """Fused Conv2d(CIN->COUT, 3x3, pad=1) + ModuleWrapper regularizer.

    x_nhwc : (N, H, W, CIN)       activations (a torch caller would do NCHW->NHWC glue)
    w_oihw : (COUT, CIN, KH, KW)  torch-native conv weight
    b      : (COUT,)              conv bias
    p_nchw : (N, COUT, H, W)      ps[batch_idx] in torch-native output layout
    returns: (N, COUT, H, W)      torch-native NCHW output
    """
    use_reg = (lamda != 0.0) and training           # trace-time specialization

    # Weight as (COUT, 37): columns ordered (kh, kw, cin), bias as the last
    # column (tiny one-time prep; would be cached/pre-packed in a real model).
    w_mat = jnp.transpose(w_oihw, (0, 2, 3, 1)).reshape(COUT, KH * KW * CIN)
    w_mat = jnp.concatenate([w_mat, b[:, None]], axis=1).astype(jnp.float32)

    inputs = [x_nhwc, w_mat]
    if use_reg:
        inputs.append(p_nchw.reshape(N, COUT, HW))  # free contiguous reshape

    out = pl.pallas_call(
        functools.partial(_conv_reg_kernel, lamda=float(lamda), use_reg=use_reg),
        out_shape=jax.ShapeDtypeStruct((N, COUT, HW), x_nhwc.dtype),
        in_specs=[pl.BlockSpec(memory_space=pltpu.MemorySpace.VMEM)
                  for _ in inputs],
        out_specs=pl.BlockSpec(memory_space=pltpu.MemorySpace.VMEM),
        scratch_shapes=[
            pltpu.VMEM((N, HP, WP, CIN), jnp.float32),   # zero-padded input
            pltpu.VMEM((HW, K1), jnp.float32),           # im2col matrix
        ],
    )(*inputs)

    # (N, COUT, H*W) -> (N, COUT, H, W): contiguous, no data movement.
    return out.reshape(N, COUT, H, W)


def _reference(x_nhwc, w_oihw, b, p_nchw, lamda, training):
    w_hwio = jnp.transpose(w_oihw, (2, 3, 1, 0))
    y = lax.conv_general_dilated(
        x_nhwc, w_hwio, window_strides=(1, 1), padding="SAME",
        dimension_numbers=("NHWC", "HWIO", "NHWC"))
    y = y + b
    y = jnp.transpose(y, (0, 3, 1, 2))              # -> NCHW
    if lamda != 0.0 and training:
        y = y + lamda * p_nchw
    return y


if __name__ == "__main__":
    key = jax.random.PRNGKey(0)
    kx, kw, kb, kp = jax.random.split(key, 4)

    x = jax.random.normal(kx, (N, H, W, CIN), jnp.float32)            # NHWC acts
    w = jax.random.normal(kw, (COUT, CIN, KH, KW), jnp.float32) * 0.1  # OIHW weight
    b = jax.random.normal(kb, (COUT,), jnp.float32) * 0.1
    # ps[batch_idx] is zeros in init_ps; use small random values so the
    # `+ lamda * p` path is actually exercised.
    p = jax.random.normal(kp, (N, COUT, H, W), jnp.float32) * 0.1

    # Training path (lamda != 0): conv + bias + lamda * p fused in one call.
    out = jax.block_until_ready(
        module_wrapper_forward(x, w, b, p, lamda=LAMDA, training=True))
    ref = _reference(x, w, b, p, LAMDA, True)
    assert out.shape == (N, COUT, H, W)
    assert jnp.allclose(out, ref, atol=1e-3, rtol=1e-3), (
        float(jnp.max(jnp.abs(out - ref))))

    # Eval path: p input and the regularizer add are dropped at trace time.
    out_eval = jax.block_until_ready(
        module_wrapper_forward(x, w, b, None, lamda=LAMDA, training=False))
    ref_eval = _reference(x, w, b, p, LAMDA, False)
    assert jnp.allclose(out_eval, ref_eval, atol=1e-3, rtol=1e-3), (
        float(jnp.max(jnp.abs(out_eval - ref_eval))))

    print("KERNEL_OK")
</pallas_src>

<mosaic_0001>
module attributes {stable_mosaic.version = 11 : i64} {
  func.func @_conv_reg_kernel(%arg0: memref<2x16x16x4xf32, #tpu.memory_space<vmem>>, %arg1: memref<8x37xf32, #tpu.memory_space<vmem>>, %arg2: memref<2x8x256xf32, #tpu.memory_space<vmem>>, %arg3: memref<2x8x256xf32, #tpu.memory_space<vmem>>, %arg4: memref<2x18x18x4xf32, #tpu.memory_space<vmem>>, %arg5: memref<256x37xf32, #tpu.memory_space<vmem>>) attributes {dimension_semantics = [], scalar_prefetch = 0 : i64, scratch_operands = 2 : i64, tpu.core_type = #tpu.core_type<tc>} {
    %cst = arith.constant 0.000000e+00 : f32
    %0 = vector.broadcast %cst : f32 to vector<2x18x18x4xf32>
    %c0 = arith.constant 0 : index
    %c0_0 = arith.constant 0 : index
    %c0_1 = arith.constant 0 : index
    %c0_2 = arith.constant 0 : index
    %1 = vector.load %arg4[%c0, %c0_0, %c0_1, %c0_2] : memref<2x18x18x4xf32, #tpu.memory_space<vmem>>, vector<2x18x18x4xf32>
    tpu.vector_store %arg4[%c0, %c0_0, %c0_1, %c0_2], %0 {strides = array<i32>} : memref<2x18x18x4xf32, #tpu.memory_space<vmem>>, vector<2x18x18x4xf32>,
    %c0_3 = arith.constant 0 : index
    %c0_4 = arith.constant 0 : index
    %c0_5 = arith.constant 0 : index
    %c0_6 = arith.constant 0 : index
    %2 = vector.load %arg0[%c0_3, %c0_4, %c0_5, %c0_6] : memref<2x16x16x4xf32, #tpu.memory_space<vmem>>, vector<2x16x16x4xf32>
    %c0_7 = arith.constant 0 : index
    %c1 = arith.constant 1 : index
    %c1_8 = arith.constant 1 : index
    %c0_9 = arith.constant 0 : index
    %3 = vector.load %arg4[%c0_7, %c1, %c1_8, %c0_9] : memref<2x18x18x4xf32, #tpu.memory_space<vmem>>, vector<2x16x16x4xf32>
    tpu.vector_store %arg4[%c0_7, %c1, %c1_8, %c0_9], %2 {strides = array<i32>} : memref<2x18x18x4xf32, #tpu.memory_space<vmem>>, vector<2x16x16x4xf32>,
    %cst_10 = arith.constant 1.000000e+00 : f32
    %4 = vector.broadcast %cst_10 : f32 to vector<256x1xf32>
    %c0_11 = arith.constant 0 : index
    %c36 = arith.constant 36 : index
    %5 = vector.load %arg5[%c0_11, %c36] : memref<256x37xf32, #tpu.memory_space<vmem>>, vector<256x1xf32>
    tpu.vector_store %arg5[%c0_11, %c36], %4 {strides = array<i32>} : memref<256x37xf32, #tpu.memory_space<vmem>>, vector<256x1xf32>,
    %c0_12 = arith.constant 0 : index
    %c0_13 = arith.constant 0 : index
    %c0_14 = arith.constant 0 : index
    %c0_15 = arith.constant 0 : index
    %6 = vector.load %arg4[%c0_12, %c0_13, %c0_14, %c0_15] : memref<2x18x18x4xf32, #tpu.memory_space<vmem>>, vector<1x18x18x4xf32>
    %7 = vector.shape_cast %6 : vector<1x18x18x4xf32> to vector<18x18x4xf32>
    %8 = vector.extract_strided_slice %7 {offsets = [0, 0, 0], sizes = [16, 16, 4], strides = [1, 1, 1]} : vector<18x18x4xf32> to vector<16x16x4xf32>
    %9 = vector.shape_cast %8 : vector<16x16x4xf32> to vector<256x4xf32>
    %c0_16 = arith.constant 0 : index
    %c0_17 = arith.constant 0 : index
    %10 = vector.load %arg5[%c0_16, %c0_17] : memref<256x37xf32, #tpu.memory_space<vmem>>, vector<256x4xf32>
    tpu.vector_store %arg5[%c0_16, %c0_17], %9 {strides = array<i32>} : memref<256x37xf32, #tpu.memory_space<vmem>>, vector<256x4xf32>,
    %11 = vector.extract_strided_slice %7 {offsets = [0, 1, 0], sizes = [16, 16, 4], strides = [1, 1, 1]} : vector<18x18x4xf32> to vector<16x16x4xf32>
    %12 = vector.shape_cast %11 : vector<16x16x4xf32> to vector<256x4xf32>
    %c0_18 = arith.constant 0 : index
    %c4 = arith.constant 4 : index
    %13 = vector.load %arg5[%c0_18, %c4] : memref<256x37xf32, #tpu.memory_space<vmem>>, vector<256x4xf32>
    tpu.vector_store %arg5[%c0_18, %c4], %12 {strides = array<i32>} : memref<256x37xf32, #tpu.memory_space<vmem>>, vector<256x4xf32>,
    %14 = vector.extract_strided_slice %7 {offsets = [0, 2, 0], sizes = [16, 16, 4], strides = [1, 1, 1]} : vector<18x18x4xf32> to vector<16x16x4xf32>
    %15 = vector.shape_cast %14 : vector<16x16x4xf32> to vector<256x4xf32>
    %c0_19 = arith.constant 0 : index
    %c8 = arith.constant 8 : index
    %16 = vector.load %arg5[%c0_19, %c8] : memref<256x37xf32, #tpu.memory_space<vmem>>, vector<256x4xf32>
    tpu.vector_store %arg5[%c0_19, %c8], %15 {strides = array<i32>} : memref<256x37xf32, #tpu.memory_space<vmem>>, vector<256x4xf32>,
    %17 = vector.extract_strided_slice %7 {offsets = [1, 0, 0], sizes = [16, 16, 4], strides = [1, 1, 1]} : vector<18x18x4xf32> to vector<16x16x4xf32>
    %18 = vector.shape_cast %17 : vector<16x16x4xf32> to vector<256x4xf32>
    %c0_20 = arith.constant 0 : index
    %c12 = arith.constant 12 : index
    %19 = vector.load %arg5[%c0_20, %c12] : memref<256x37xf32, #tpu.memory_space<vmem>>, vector<256x4xf32>
    tpu.vector_store %arg5[%c0_20, %c12], %18 {strides = array<i32>} : memref<256x37xf32, #tpu.memory_space<vmem>>, vector<256x4xf32>,
    %20 = vector.extract_strided_slice %7 {offsets = [1, 1, 0], sizes = [16, 16, 4], strides = [1, 1, 1]} : vector<18x18x4xf32> to vector<16x16x4xf32>
    %21 = vector.shape_cast %20 : vector<16x16x4xf32> to vector<256x4xf32>
    %c0_21 = arith.constant 0 : index
    %c16 = arith.constant 16 : index
    %22 = vector.load %arg5[%c0_21, %c16] : memref<256x37xf32, #tpu.memory_space<vmem>>, vector<256x4xf32>
    tpu.vector_store %arg5[%c0_21, %c16], %21 {strides = array<i32>} : memref<256x37xf32, #tpu.memory_space<vmem>>, vector<256x4xf32>,
    %23 = vector.extract_strided_slice %7 {offsets = [1, 2, 0], sizes = [16, 16, 4], strides = [1, 1, 1]} : vector<18x18x4xf32> to vector<16x16x4xf32>
    %24 = vector.shape_cast %23 : vector<16x16x4xf32> to vector<256x4xf32>
    %c0_22 = arith.constant 0 : index
    %c20 = arith.constant 20 : index
    %25 = vector.load %arg5[%c0_22, %c20] : memref<256x37xf32, #tpu.memory_space<vmem>>, vector<256x4xf32>
    tpu.vector_store %arg5[%c0_22, %c20], %24 {strides = array<i32>} : memref<256x37xf32, #tpu.memory_space<vmem>>, vector<256x4xf32>,
    %26 = vector.extract_strided_slice %7 {offsets = [2, 0, 0], sizes = [16, 16, 4], strides = [1, 1, 1]} : vector<18x18x4xf32> to vector<16x16x4xf32>
    %27 = vector.shape_cast %26 : vector<16x16x4xf32> to vector<256x4xf32>
    %c0_23 = arith.constant 0 : index
    %c24 = arith.constant 24 : index
    %28 = vector.load %arg5[%c0_23, %c24] : memref<256x37xf32, #tpu.memory_space<vmem>>, vector<256x4xf32>
    tpu.vector_store %arg5[%c0_23, %c24], %27 {strides = array<i32>} : memref<256x37xf32, #tpu.memory_space<vmem>>, vector<256x4xf32>,
    %29 = vector.extract_strided_slice %7 {offsets = [2, 1, 0], sizes = [16, 16, 4], strides = [1, 1, 1]} : vector<18x18x4xf32> to vector<16x16x4xf32>
    %30 = vector.shape_cast %29 : vector<16x16x4xf32> to vector<256x4xf32>
    %c0_24 = arith.constant 0 : index
    %c28 = arith.constant 28 : index
    %31 = vector.load %arg5[%c0_24, %c28] : memref<256x37xf32, #tpu.memory_space<vmem>>, vector<256x4xf32>
    tpu.vector_store %arg5[%c0_24, %c28], %30 {strides = array<i32>} : memref<256x37xf32, #tpu.memory_space<vmem>>, vector<256x4xf32>,
    %32 = vector.extract_strided_slice %7 {offsets = [2, 2, 0], sizes = [16, 16, 4], strides = [1, 1, 1]} : vector<18x18x4xf32> to vector<16x16x4xf32>
    %33 = vector.shape_cast %32 : vector<16x16x4xf32> to vector<256x4xf32>
    %c0_25 = arith.constant 0 : index
    %c32 = arith.constant 32 : index
    %34 = vector.load %arg5[%c0_25, %c32] : memref<256x37xf32, #tpu.memory_space<vmem>>, vector<256x4xf32>
    tpu.vector_store %arg5[%c0_25, %c32], %33 {strides = array<i32>} : memref<256x37xf32, #tpu.memory_space<vmem>>, vector<256x4xf32>,
    %c0_26 = arith.constant 0 : index
    %c0_27 = arith.constant 0 : index
    %35 = vector.load %arg1[%c0_26, %c0_27] : memref<8x37xf32, #tpu.memory_space<vmem>>, vector<8x37xf32>
    %c0_28 = arith.constant 0 : index
    %c0_29 = arith.constant 0 : index
    %36 = vector.load %arg5[%c0_28, %c0_29] : memref<256x37xf32, #tpu.memory_space<vmem>>, vector<256x37xf32>
    %cst_30 = arith.constant dense<0.000000e+00> : vector<8x256xf32>
    %37 = tpu.matmul %35, %36, %cst_30 {dimension_numbers = #tpu.dot_dimension_numbers<[1], [1], [0], [0], [0, 0, 1, 0], [], []>} : vector<8x37xf32>, vector<256x37xf32>, vector<8x256xf32> -> vector<8x256xf32>
    %c0_31 = arith.constant 0 : index
    %c0_32 = arith.constant 0 : index
    %c0_33 = arith.constant 0 : index
    %38 = vector.load %arg2[%c0_31, %c0_32, %c0_33] : memref<2x8x256xf32, #tpu.memory_space<vmem>>, vector<1x8x256xf32>
    %39 = vector.shape_cast %38 : vector<1x8x256xf32> to vector<8x256xf32>
    %cst_34 = arith.constant 5.000000e-01 : f32
    %40 = vector.broadcast %cst_34 : f32 to vector<8x256xf32>
    %41 = arith.mulf %40, %39 : vector<8x256xf32>
    %42 = arith.addf %37, %41 : vector<8x256xf32>
    %c0_35 = arith.constant 0 : index
    %c0_36 = arith.constant 0 : index
    %c0_37 = arith.constant 0 : index
    %43 = vector.load %arg3[%c0_35, %c0_36, %c0_37] : memref<2x8x256xf32, #tpu.memory_space<vmem>>, vector<1x8x256xf32>
    %44 = vector.shape_cast %43 : vector<1x8x256xf32> to vector<8x256xf32>
    %45 = vector.shape_cast %42 : vector<8x256xf32> to vector<1x8x256xf32>
    tpu.vector_store %arg3[%c0_35, %c0_36, %c0_37], %45 {strides = array<i32>} : memref<2x8x256xf32, #tpu.memory_space<vmem>>, vector<1x8x256xf32>,
    %c1_38 = arith.constant 1 : index
    %c0_39 = arith.constant 0 : index
    %c0_40 = arith.constant 0 : index
    %c0_41 = arith.constant 0 : index
    %46 = vector.load %arg4[%c1_38, %c0_39, %c0_40, %c0_41] : memref<2x18x18x4xf32, #tpu.memory_space<vmem>>, vector<1x18x18x4xf32>
    %47 = vector.shape_cast %46 : vector<1x18x18x4xf32> to vector<18x18x4xf32>
    %48 = vector.extract_strided_slice %47 {offsets = [0, 0, 0], sizes = [16, 16, 4], strides = [1, 1, 1]} : vector<18x18x4xf32> to vector<16x16x4xf32>
    %49 = vector.shape_cast %48 : vector<16x16x4xf32> to vector<256x4xf32>
    %c0_42 = arith.constant 0 : index
    %c0_43 = arith.constant 0 : index
    %50 = vector.load %arg5[%c0_42, %c0_43] : memref<256x37xf32, #tpu.memory_space<vmem>>, vector<256x4xf32>
    tpu.vector_store %arg5[%c0_42, %c0_43], %49 {strides = array<i32>} : memref<256x37xf32, #tpu.memory_space<vmem>>, vector<256x4xf32>,
    %51 = vector.extract_strided_slice %47 {offsets = [0, 1, 0], sizes = [16, 16, 4], strides = [1, 1, 1]} : vector<18x18x4xf32> to vector<16x16x4xf32>
    %52 = vector.shape_cast %51 : vector<16x16x4xf32> to vector<256x4xf32>
    %c0_44 = arith.constant 0 : index
    %c4_45 = arith.constant 4 : index
    %53 = vector.load %arg5[%c0_44, %c4_45] : memref<256x37xf32, #tpu.memory_space<vmem>>, vector<256x4xf32>
    tpu.vector_store %arg5[%c0_44, %c4_45], %52 {strides = array<i32>} : memref<256x37xf32, #tpu.memory_space<vmem>>, vector<256x4xf32>,
    %54 = vector.extract_strided_slice %47 {offsets = [0, 2, 0], sizes = [16, 16, 4], strides = [1, 1, 1]} : vector<18x18x4xf32> to vector<16x16x4xf32>
    %55 = vector.shape_cast %54 : vector<16x16x4xf32> to vector<256x4xf32>
    %c0_46 = arith.constant 0 : index
    %c8_47 = arith.constant 8 : index
    %56 = vector.load %arg5[%c0_46, %c8_47] : memref<256x37xf32, #tpu.memory_space<vmem>>, vector<256x4xf32>
    tpu.vector_store %arg5[%c0_46, %c8_47], %55 {strides = array<i32>} : memref<256x37xf32, #tpu.memory_space<vmem>>, vector<256x4xf32>,
    %57 = vector.extract_strided_slice %47 {offsets = [1, 0, 0], sizes = [16, 16, 4], strides = [1, 1, 1]} : vector<18x18x4xf32> to vector<16x16x4xf32>
    %58 = vector.shape_cast %57 : vector<16x16x4xf32> to vector<256x4xf32>
    %c0_48 = arith.constant 0 : index
    %c12_49 = arith.constant 12 : index
    %59 = vector.load %arg5[%c0_48, %c12_49] : memref<256x37xf32, #tpu.memory_space<vmem>>, vector<256x4xf32>
    tpu.vector_store %arg5[%c0_48, %c12_49], %58 {strides = array<i32>} : memref<256x37xf32, #tpu.memory_space<vmem>>, vector<256x4xf32>,
    %60 = vector.extract_strided_slice %47 {offsets = [1, 1, 0], sizes = [16, 16, 4], strides = [1, 1, 1]} : vector<18x18x4xf32> to vector<16x16x4xf32>
    %61 = vector.shape_cast %60 : vector<16x16x4xf32> to vector<256x4xf32>
    %c0_50 = arith.constant 0 : index
    %c16_51 = arith.constant 16 : index
    %62 = vector.load %arg5[%c0_50, %c16_51] : memref<256x37xf32, #tpu.memory_space<vmem>>, vector<256x4xf32>
    tpu.vector_store %arg5[%c0_50, %c16_51], %61 {strides = array<i32>} : memref<256x37xf32, #tpu.memory_space<vmem>>, vector<256x4xf32>,
    %63 = vector.extract_strided_slice %47 {offsets = [1, 2, 0], sizes = [16, 16, 4], strides = [1, 1, 1]} : vector<18x18x4xf32> to vector<16x16x4xf32>
    %64 = vector.shape_cast %63 : vector<16x16x4xf32> to vector<256x4xf32>
    %c0_52 = arith.constant 0 : index
    %c20_53 = arith.constant 20 : index
    %65 = vector.load %arg5[%c0_52, %c20_53] : memref<256x37xf32, #tpu.memory_space<vmem>>, vector<256x4xf32>
    tpu.vector_store %arg5[%c0_52, %c20_53], %64 {strides = array<i32>} : memref<256x37xf32, #tpu.memory_space<vmem>>, vector<256x4xf32>,
    %66 = vector.extract_strided_slice %47 {offsets = [2, 0, 0], sizes = [16, 16, 4], strides = [1, 1, 1]} : vector<18x18x4xf32> to vector<16x16x4xf32>
    %67 = vector.shape_cast %66 : vector<16x16x4xf32> to vector<256x4xf32>
    %c0_54 = arith.constant 0 : index
    %c24_55 = arith.constant 24 : index
    %68 = vector.load %arg5[%c0_54, %c24_55] : memref<256x37xf32, #tpu.memory_space<vmem>>, vector<256x4xf32>
    tpu.vector_store %arg5[%c0_54, %c24_55], %67 {strides = array<i32>} : memref<256x37xf32, #tpu.memory_space<vmem>>, vector<256x4xf32>,
    %69 = vector.extract_strided_slice %47 {offsets = [2, 1, 0], sizes = [16, 16, 4], strides = [1, 1, 1]} : vector<18x18x4xf32> to vector<16x16x4xf32>
    %70 = vector.shape_cast %69 : vector<16x16x4xf32> to vector<256x4xf32>
    %c0_56 = arith.constant 0 : index
    %c28_57 = arith.constant 28 : index
    %71 = vector.load %arg5[%c0_56, %c28_57] : memref<256x37xf32, #tpu.memory_space<vmem>>, vector<256x4xf32>
    tpu.vector_store %arg5[%c0_56, %c28_57], %70 {strides = array<i32>} : memref<256x37xf32, #tpu.memory_space<vmem>>, vector<256x4xf32>,
    %72 = vector.extract_strided_slice %47 {offsets = [2, 2, 0], sizes = [16, 16, 4], strides = [1, 1, 1]} : vector<18x18x4xf32> to vector<16x16x4xf32>
    %73 = vector.shape_cast %72 : vector<16x16x4xf32> to vector<256x4xf32>
    %c0_58 = arith.constant 0 : index
    %c32_59 = arith.constant 32 : index
    %74 = vector.load %arg5[%c0_58, %c32_59] : memref<256x37xf32, #tpu.memory_space<vmem>>, vector<256x4xf32>
    tpu.vector_store %arg5[%c0_58, %c32_59], %73 {strides = array<i32>} : memref<256x37xf32, #tpu.memory_space<vmem>>, vector<256x4xf32>,
    %c0_60 = arith.constant 0 : index
    %c0_61 = arith.constant 0 : index
    %75 = vector.load %arg1[%c0_60, %c0_61] : memref<8x37xf32, #tpu.memory_space<vmem>>, vector<8x37xf32>
    %c0_62 = arith.constant 0 : index
    %c0_63 = arith.constant 0 : index
    %76 = vector.load %arg5[%c0_62, %c0_63] : memref<256x37xf32, #tpu.memory_space<vmem>>, vector<256x37xf32>
    %cst_64 = arith.constant dense<0.000000e+00> : vector<8x256xf32>
    %77 = tpu.matmul %75, %76, %cst_64 {dimension_numbers = #tpu.dot_dimension_numbers<[1], [1], [0], [0], [0, 0, 1, 0], [], []>} : vector<8x37xf32>, vector<256x37xf32>, vector<8x256xf32> -> vector<8x256xf32>
    %c1_65 = arith.constant 1 : index
    %c0_66 = arith.constant 0 : index
    %c0_67 = arith.constant 0 : index
    %78 = vector.load %arg2[%c1_65, %c0_66, %c0_67] : memref<2x8x256xf32, #tpu.memory_space<vmem>>, vector<1x8x256xf32>
    %79 = vector.shape_cast %78 : vector<1x8x256xf32> to vector<8x256xf32>
    %cst_68 = arith.constant 5.000000e-01 : f32
    %80 = vector.broadcast %cst_68 : f32 to vector<8x256xf32>
    %81 = arith.mulf %80, %79 : vector<8x256xf32>
    %82 = arith.addf %77, %81 : vector<8x256xf32>
    %c1_69 = arith.constant 1 : index
    %c0_70 = arith.constant 0 : index
    %c0_71 = arith.constant 0 : index
    %83 = vector.load %arg3[%c1_69, %c0_70, %c0_71] : memref<2x8x256xf32, #tpu.memory_space<vmem>>, vector<1x8x256xf32>
    %84 = vector.shape_cast %83 : vector<1x8x256xf32> to vector<8x256xf32>
    %85 = vector.shape_cast %82 : vector<8x256xf32> to vector<1x8x256xf32>
    tpu.vector_store %arg3[%c1_69, %c0_70, %c0_71], %85 {strides = array<i32>} : memref<2x8x256xf32, #tpu.memory_space<vmem>>, vector<1x8x256xf32>,
    return
  }
}

</mosaic_0001>

<llo_original>
// kernel: tpu_custom_call.1
$region0: #{tpu_custom_call.1}
  #allocation0 [shape = 'u32[]', space=smem, size = 0x4, offset = 0x4, fixed_abs, tag = 'smem constant byte address 0x4 - core index']
  #allocation1 [shape = 'u32[144,128]{1,0:T(1,128)}', space=vmem, size = 0x12000, scoped, tag = 'internal scratch']
  #allocation2 [shape = 'f32[2,18,18,4]{3,2,1,0:T(8,128)}', space=vmem, size = 0x6c000, scoped, tag = 'scratch operand']
  #allocation3 [shape = 'f32[256,37]{1,0:T(8,128)}', space=vmem, size = 0x20000, scoped, tag = 'scratch operand']
  %s0 = inlined_call_operand.vmem [shape: f32[2,16,16,4], index: 0, kind: input, shape index: {}]
  %s1 = inlined_call_operand.vmem [shape: f32[8,37], index: 1, kind: input, shape index: {}]
  %s2 = inlined_call_operand.vmem [shape: f32[2,8,256], index: 2, kind: input, shape index: {}]
  %s3 = inlined_call_operand.hbm [shape: f32[2,8,256], index: 3, kind: output, shape index: {}]
  %s4 = sld [smem:[#allocation0]]
  $region22: #{tpu_custom_call.1} parent=0
    _
  %s6 = ssub.s32 1, %s4
  %s7 = scalar_select 0, %s6, %s4
  $region1: #{tpu_custom_call.1} parent=0
    #allocation4 [shape = 'u8[16384]{0}', space=vmem, size = 0x4000, scoped, tag = 'output window, operand 0, single buffered']
    #allocation5 [shape = 's32[1]{0}', space=sflag, size = 0x4, scoped, tag = 'scoped memory for tpu_custom_call.1']
    %8 = vsyncpa [#allocation5], 0
    // Predicated region
    $region2: #{tpu_custom_call.1} parent=1 // pred_check
      _
    $region3: #{tpu_custom_call.1} parent=1 // pred_check_branch
      %10 = sbr.rel (0) target = $region5
    $region4: #{tpu_custom_call.1} parent=1 // pred_region
      _
    $region5: #{tpu_custom_call.1} parent=1 // pred_fallthru
      _
    // Predicated region
    $region6: #{tpu_custom_call.1} parent=1 // pred_check
      _
    $region7: #{tpu_custom_call.1} parent=1 // pred_check_branch
      %12 = sbr.rel (0) target = $region9
    $region8: #{tpu_custom_call.1} parent=1 // pred_region
      _
    $region9: #{tpu_custom_call.1} parent=1 // pred_fallthru
      _
    // Predicated region
    $region10: #{tpu_custom_call.1} parent=1 // pred_check
      _
    $region11: #{tpu_custom_call.1} parent=1 // pred_check_branch
      %14 = sbr.rel (0) target = $region13
    $region12: #{tpu_custom_call.1} parent=1 // pred_region
      _
    $region13: #{tpu_custom_call.1} parent=1 // pred_fallthru
      _
    %vm15 = vcmask 31744
    %16 = vst.msk [vmem:[#allocation2] sm:$0xff] %vm15, 0.0
    %17 = vst.msk [vmem:[#allocation2 + $0x8] sm:$0xff] %vm15, 0.0
    %vm18 = vcmask 25600
    %19 = vst.msk [vmem:[#allocation2 + $0x10] sm:$0x3] %vm18, 0.0
    %20 = vst.msk [vmem:[#allocation2 + $0x18] sm:$0xff] %vm15, 0.0
    %21 = vst.msk [vmem:[#allocation2 + $0x20] sm:$0xff] %vm15, 0.0
    %22 = vst.msk [vmem:[#allocation2 + $0x28] sm:$0x3] %vm18, 0.0
    %23 = vst.msk [vmem:[#allocation2 + $0x30] sm:$0xff] %vm15, 0.0
    %24 = vst.msk [vmem:[#allocation2 + $0x38] sm:$0xff] %vm15, 0.0
    %25 = vst.msk [vmem:[#allocation2 + $0x40] sm:$0x3] %vm18, 0.0
    %26 = vst.msk [vmem:[#allocation2 + $0x48] sm:$0xff] %vm15, 0.0
    %27 = vst.msk [vmem:[#allocation2 + $0x50] sm:$0xff] %vm15, 0.0
    %28 = vst.msk [vmem:[#allocation2 + $0x58] sm:$0x3] %vm18, 0.0
    %29 = vst.msk [vmem:[#allocation2 + $0x60] sm:$0xff] %vm15, 0.0
    %30 = vst.msk [vmem:[#allocation2 + $0x68] sm:$0xff] %vm15, 0.0
    %31 = vst.msk [vmem:[#allocation2 + $0x70] sm:$0x3] %vm18, 0.0
    %32 = vst.msk [vmem:[#allocation2 + $0x78] sm:$0xff] %vm15, 0.0
    %33 = vst.msk [vmem:[#allocation2 + $0x80] sm:$0xff] %vm15, 0.0
    %34 = vst.msk [vmem:[#allocation2 + $0x88] sm:$0x3] %vm18, 0.0
    %35 = vst.msk [vmem:[#allocation2 + $0x90] sm:$0xff] %vm15, 0.0
    %36 = vst.msk [vmem:[#allocation2 + $0x98] sm:$0xff] %vm15, 0.0
    %37 = vst.msk [vmem:[#allocation2 + $0xa0] sm:$0x3] %vm18, 0.0
    %38 = vst.msk [vmem:[#allocation2 + $0xa8] sm:$0xff] %vm15, 0.0
    %39 = vst.msk [vmem:[#allocation2 + $0xb0] sm:$0xff] %vm15, 0.0
    %40 = vst.msk [vmem:[#allocation2 + $0xb8] sm:$0x3] %vm18, 0.0
    %41 = vst.msk [vmem:[#allocation2 + $0xc0] sm:$0xff] %vm15, 0.0
    %42 = vst.msk [vmem:[#allocation2 + $0xc8] sm:$0xff] %vm15, 0.0
    %43 = vst.msk [vmem:[#allocation2 + $0xd0] sm:$0x3] %vm18, 0.0
    %44 = vst.msk [vmem:[#allocation2 + $0xd8] sm:$0xff] %vm15, 0.0
    %45 = vst.msk [vmem:[#allocation2 + $0xe0] sm:$0xff] %vm15, 0.0
    %46 = vst.msk [vmem:[#allocation2 + $0xe8] sm:$0x3] %vm18, 0.0
    %47 = vst.msk [vmem:[#allocation2 + $0xf0] sm:$0xff] %vm15, 0.0
    %48 = vst.msk [vmem:[#allocation2 + $0xf8] sm:$0xff] %vm15, 0.0
    %49 = vst.msk [vmem:[#allocation2 + $0x100] sm:$0x3] %vm18, 0.0
    %50 = vst.msk [vmem:[#allocation2 + $0x108] sm:$0xff] %vm15, 0.0
    %51 = vst.msk [vmem:[#allocation2 + $0x110] sm:$0xff] %vm15, 0.0
    %52 = vst.msk [vmem:[#allocation2 + $0x118] sm:$0x3] %vm18, 0.0
    %53 = vst.msk [vmem:[#allocation2 + $0x120] sm:$0xff] %vm15, 0.0
    %54 = vst.msk [vmem:[#allocation2 + $0x128] sm:$0xff] %vm15, 0.0
    %55 = vst.msk [vmem:[#allocation2 + $0x130] sm:$0x3] %vm18, 0.0
    %56 = vst.msk [vmem:[#allocation2 + $0x138] sm:$0xff] %vm15, 0.0
    %57 = vst.msk [vmem:[#allocation2 + $0x140] sm:$0xff] %vm15, 0.0
    %58 = vst.msk [vmem:[#allocation2 + $0x148] sm:$0x3] %vm18, 0.0
    %59 = vst.msk [vmem:[#allocation2 + $0x150] sm:$0xff] %vm15, 0.0
    %60 = vst.msk [vmem:[#allocation2 + $0x158] sm:$0xff] %vm15, 0.0
    %61 = vst.msk [vmem:[#allocation2 + $0x160] sm:$0x3] %vm18, 0.0
    %62 = vst.msk [vmem:[#allocation2 + $0x168] sm:$0xff] %vm15, 0.0
    %63 = vst.msk [vmem:[#allocation2 + $0x170] sm:$0xff] %vm15, 0.0
    %64 = vst.msk [vmem:[#allocation2 + $0x178] sm:$0x3] %vm18, 0.0
    %65 = vst.msk [vmem:[#allocation2 + $0x180] sm:$0xff] %vm15, 0.0
    %66 = vst.msk [vmem:[#allocation2 + $0x188] sm:$0xff] %vm15, 0.0
    %67 = vst.msk [vmem:[#allocation2 + $0x190] sm:$0x3] %vm18, 0.0
    %68 = vst.msk [vmem:[#allocation2 + $0x198] sm:$0xff] %vm15, 0.0
    %69 = vst.msk [vmem:[#allocation2 + $0x1a0] sm:$0xff] %vm15, 0.0
    %70 = vst.msk [vmem:[#allocation2 + $0x1a8] sm:$0x3] %vm18, 0.0
    %71 = vst.msk [vmem:[#allocation2 + $0x1b0] sm:$0xff] %vm15, 0.0
    %72 = vst.msk [vmem:[#allocation2 + $0x1b8] sm:$0xff] %vm15, 0.0
    %73 = vst.msk [vmem:[#allocation2 + $0x1c0] sm:$0x3] %vm18, 0.0
    %74 = vst.msk [vmem:[#allocation2 + $0x1c8] sm:$0xff] %vm15, 0.0
    %75 = vst.msk [vmem:[#allocation2 + $0x1d0] sm:$0xff] %vm15, 0.0
    %76 = vst.msk [vmem:[#allocation2 + $0x1d8] sm:$0x3] %vm18, 0.0
    %77 = vst.msk [vmem:[#allocation2 + $0x1e0] sm:$0xff] %vm15, 0.0
    %78 = vst.msk [vmem:[#allocation2 + $0x1e8] sm:$0xff] %vm15, 0.0
    %79 = vst.msk [vmem:[#allocation2 + $0x1f0] sm:$0x3] %vm18, 0.0
    %80 = vst.msk [vmem:[#allocation2 + $0x1f8] sm:$0xff] %vm15, 0.0
    %81 = vst.msk [vmem:[#allocation2 + $0x200] sm:$0xff] %vm15, 0.0
    %82 = vst.msk [vmem:[#allocation2 + $0x208] sm:$0x3] %vm18, 0.0
    %83 = vst.msk [vmem:[#allocation2 + $0x210] sm:$0xff] %vm15, 0.0
    %84 = vst.msk [vmem:[#allocation2 + $0x218] sm:$0xff] %vm15, 0.0
    %85 = vst.msk [vmem:[#allocation2 + $0x220] sm:$0x3] %vm18, 0.0
    %86 = vst.msk [vmem:[#allocation2 + $0x228] sm:$0xff] %vm15, 0.0
    %87 = vst.msk [vmem:[#allocation2 + $0x230] sm:$0xff] %vm15, 0.0
    %88 = vst.msk [vmem:[#allocation2 + $0x238] sm:$0x3] %vm18, 0.0
    %89 = vst.msk [vmem:[#allocation2 + $0x240] sm:$0xff] %vm15, 0.0
    %90 = vst.msk [vmem:[#allocation2 + $0x248] sm:$0xff] %vm15, 0.0
    %91 = vst.msk [vmem:[#allocation2 + $0x250] sm:$0x3] %vm18, 0.0
    %92 = vst.msk [vmem:[#allocation2 + $0x258] sm:$0xff] %vm15, 0.0
    %93 = vst.msk [vmem:[#allocation2 + $0x260] sm:$0xff] %vm15, 0.0
    %94 = vst.msk [vmem:[#allocation2 + $0x268] sm:$0x3] %vm18, 0.0
    %95 = vst.msk [vmem:[#allocation2 + $0x270] sm:$0xff] %vm15, 0.0
    %96 = vst.msk [vmem:[#allocation2 + $0x278] sm:$0xff] %vm15, 0.0
    %97 = vst.msk [vmem:[#allocation2 + $0x280] sm:$0x3] %vm18, 0.0
    %98 = vst.msk [vmem:[#allocation2 + $0x288] sm:$0xff] %vm15, 0.0
    %99 = vst.msk [vmem:[#allocation2 + $0x290] sm:$0xff] %vm15, 0.0
    %100 = vst.msk [vmem:[#allocation2 + $0x298] sm:$0x3] %vm18, 0.0
    %101 = vst.msk [vmem:[#allocation2 + $0x2a0] sm:$0xff] %vm15, 0.0
    %102 = vst.msk [vmem:[#allocation2 + $0x2a8] sm:$0xff] %vm15, 0.0
    %103 = vst.msk [vmem:[#allocation2 + $0x2b0] sm:$0x3] %vm18, 0.0
    %104 = vst.msk [vmem:[#allocation2 + $0x2b8] sm:$0xff] %vm15, 0.0
    %105 = vst.msk [vmem:[#allocation2 + $0x2c0] sm:$0xff] %vm15, 0.0
    %106 = vst.msk [vmem:[#allocation2 + $0x2c8] sm:$0x3] %vm18, 0.0
    %107 = vst.msk [vmem:[#allocation2 + $0x2d0] sm:$0xff] %vm15, 0.0
    %108 = vst.msk [vmem:[#allocation2 + $0x2d8] sm:$0xff] %vm15, 0.0
    %109 = vst.msk [vmem:[#allocation2 + $0x2e0] sm:$0x3] %vm18, 0.0
    %110 = vst.msk [vmem:[#allocation2 + $0x2e8] sm:$0xff] %vm15, 0.0
    %111 = vst.msk [vmem:[#allocation2 + $0x2f0] sm:$0xff] %vm15, 0.0
    %112 = vst.msk [vmem:[#allocation2 + $0x2f8] sm:$0x3] %vm18, 0.0
    %113 = vst.msk [vmem:[#allocation2 + $0x300] sm:$0xff] %vm15, 0.0
    %114 = vst.msk [vmem:[#allocation2 + $0x308] sm:$0xff] %vm15, 0.0
    %115 = vst.msk [vmem:[#allocation2 + $0x310] sm:$0x3] %vm18, 0.0
    %116 = vst.msk [vmem:[#allocation2 + $0x318] sm:$0xff] %vm15, 0.0
    %117 = vst.msk [vmem:[#allocation2 + $0x320] sm:$0xff] %vm15, 0.0
    %118 = vst.msk [vmem:[#allocation2 + $0x328] sm:$0x3] %vm18, 0.0
    %119 = vst.msk [vmem:[#allocation2 + $0x330] sm:$0xff] %vm15, 0.0
    %120 = vst.msk [vmem:[#allocation2 + $0x338] sm:$0xff] %vm15, 0.0
    %121 = vst.msk [vmem:[#allocation2 + $0x340] sm:$0x3] %vm18, 0.0
    %122 = vst.msk [vmem:[#allocation2 + $0x348] sm:$0xff] %vm15, 0.0
    %123 = vst.msk [vmem:[#allocation2 + $0x350] sm:$0xff] %vm15, 0.0
    %124 = vst.msk [vmem:[#allocation2 + $0x358] sm:$0x3] %vm18, 0.0
    %v125 = vld [vmem:[%s0] sm:$0xff]
    %v126 = vld [vmem:[%s0 + $0x8] sm:$0xff]
    %v127 = vld [vmem:[%s0 + $0x10] sm:$0xff]
    %v128 = vld [vmem:[%s0 + $0x18] sm:$0xff]
    %v129 = vld [vmem:[%s0 + $0x20] sm:$0xff]
    %v130 = vld [vmem:[%s0 + $0x28] sm:$0xff]
    %v131 = vld [vmem:[%s0 + $0x30] sm:$0xff]
    %v132 = vld [vmem:[%s0 + $0x38] sm:$0xff]
    %v133 = vld [vmem:[%s0 + $0x40] sm:$0xff]
    %v134 = vld [vmem:[%s0 + $0x48] sm:$0xff]
    %v135 = vld [vmem:[%s0 + $0x50] sm:$0xff]
    %v136 = vld [vmem:[%s0 + $0x58] sm:$0xff]
    %v137 = vld [vmem:[%s0 + $0x60] sm:$0xff]
    %v138 = vld [vmem:[%s0 + $0x68] sm:$0xff]
    %v139 = vld [vmem:[%s0 + $0x70] sm:$0xff]
    %v140 = vld [vmem:[%s0 + $0x78] sm:$0xff]
    %v141 = vld [vmem:[%s0 + $0x80] sm:$0xff]
    %v142 = vld [vmem:[%s0 + $0x88] sm:$0xff]
    %v143 = vld [vmem:[%s0 + $0x90] sm:$0xff]
    %v144 = vld [vmem:[%s0 + $0x98] sm:$0xff]
    %v145 = vld [vmem:[%s0 + $0xa0] sm:$0xff]
    %v146 = vld [vmem:[%s0 + $0xa8] sm:$0xff]
    %v147 = vld [vmem:[%s0 + $0xb0] sm:$0xff]
    %v148 = vld [vmem:[%s0 + $0xb8] sm:$0xff]
    %v149 = vld [vmem:[%s0 + $0xc0] sm:$0xff]
    %v150 = vld [vmem:[%s0 + $0xc8] sm:$0xff]
    %v151 = vld [vmem:[%s0 + $0xd0] sm:$0xff]
    %v152 = vld [vmem:[%s0 + $0xd8] sm:$0xff]
    %v153 = vld [vmem:[%s0 + $0xe0] sm:$0xff]
    %v154 = vld [vmem:[%s0 + $0xe8] sm:$0xff]
    %v155 = vld [vmem:[%s0 + $0xf0] sm:$0xff]
    %v156 = vld [vmem:[%s0 + $0xf8] sm:$0xff]
    %v157 = vld [vmem:[%s0 + $0x100] sm:$0xff]
    %v158 = vld [vmem:[%s0 + $0x108] sm:$0xff]
    %v159 = vld [vmem:[%s0 + $0x110] sm:$0xff]
    %v160 = vld [vmem:[%s0 + $0x118] sm:$0xff]
    %v161 = vld [vmem:[%s0 + $0x120] sm:$0xff]
    %v162 = vld [vmem:[%s0 + $0x128] sm:$0xff]
    %v163 = vld [vmem:[%s0 + $0x130] sm:$0xff]
    %v164 = vld [vmem:[%s0 + $0x138] sm:$0xff]
    %v165 = vld [vmem:[%s0 + $0x140] sm:$0xff]
    %v166 = vld [vmem:[%s0 + $0x148] sm:$0xff]
    %v167 = vld [vmem:[%s0 + $0x150] sm:$0xff]
    %v168 = vld [vmem:[%s0 + $0x158] sm:$0xff]
    %v169 = vld [vmem:[%s0 + $0x160] sm:$0xff]
    %v170 = vld [vmem:[%s0 + $0x168] sm:$0xff]
    %v171 = vld [vmem:[%s0 + $0x170] sm:$0xff]
    %v172 = vld [vmem:[%s0 + $0x178] sm:$0xff]
    %v173 = vld [vmem:[%s0 + $0x180] sm:$0xff]
    %v174 = vld [vmem:[%s0 + $0x188] sm:$0xff]
    %v175 = vld [vmem:[%s0 + $0x190] sm:$0xff]
    %v176 = vld [vmem:[%s0 + $0x198] sm:$0xff]
    %v177 = vld [vmem:[%s0 + $0x1a0] sm:$0xff]
    %v178 = vld [vmem:[%s0 + $0x1a8] sm:$0xff]
    %v179 = vld [vmem:[%s0 + $0x1b0] sm:$0xff]
    %v180 = vld [vmem:[%s0 + $0x1b8] sm:$0xff]
    %v181 = vld [vmem:[%s0 + $0x1c0] sm:$0xff]
    %v182 = vld [vmem:[%s0 + $0x1c8] sm:$0xff]
    %v183 = vld [vmem:[%s0 + $0x1d0] sm:$0xff]
    %v184 = vld [vmem:[%s0 + $0x1d8] sm:$0xff]
    %v185 = vld [vmem:[%s0 + $0x1e0] sm:$0xff]
    %v186 = vld [vmem:[%s0 + $0x1e8] sm:$0xff]
    %v187 = vld [vmem:[%s0 + $0x1f0] sm:$0xff]
    %v188 = vld [vmem:[%s0 + $0x1f8] sm:$0xff]
    %s189 = scalar_lea.vmem [#allocation2], 24
    %190 = vst.msk [vmem:[%s189 + $0x1] sm:$0xff] %vm15, %v125
    %191 = vst.msk [vmem:[%s189 + $0x9] sm:$0xff] %vm15, %v126
    %192 = vst.msk [vmem:[%s189 + $0x19] sm:$0xff] %vm15, %v127
    %193 = vst.msk [vmem:[%s189 + $0x21] sm:$0xff] %vm15, %v128
    %194 = vst.msk [vmem:[%s189 + $0x31] sm:$0xff] %vm15, %v129
    %195 = vst.msk [vmem:[%s189 + $0x39] sm:$0xff] %vm15, %v130
    %196 = vst.msk [vmem:[%s189 + $0x49] sm:$0xff] %vm15, %v131
    %197 = vst.msk [vmem:[%s189 + $0x51] sm:$0xff] %vm15, %v132
    %198 = vst.msk [vmem:[%s189 + $0x61] sm:$0xff] %vm15, %v133
    %199 = vst.msk [vmem:[%s189 + $0x69] sm:$0xff] %vm15, %v134
    %200 = vst.msk [vmem:[%s189 + $0x79] sm:$0xff] %vm15, %v135
    %201 = vst.msk [vmem:[%s189 + $0x81] sm:$0xff] %vm15, %v136
    %202 = vst.msk [vmem:[%s189 + $0x91] sm:$0xff] %vm15, %v137
    %203 = vst.msk [vmem:[%s189 + $0x99] sm:$0xff] %vm15, %v138
    %204 = vst.msk [vmem:[%s189 + $0xa9] sm:$0xff] %vm15, %v139
    %205 = vst.msk [vmem:[%s189 + $0xb1] sm:$0xff] %vm15, %v140
    %206 = vst.msk [vmem:[%s189 + $0xc1] sm:$0xff] %vm15, %v141
    %207 = vst.msk [vmem:[%s189 + $0xc9] sm:$0xff] %vm15, %v142
    %208 = vst.msk [vmem:[%s189 + $0xd9] sm:$0xff] %vm15, %v143
    %209 = vst.msk [vmem:[%s189 + $0xe1] sm:$0xff] %vm15, %v144
    %210 = vst.msk [vmem:[%s189 + $0xf1] sm:$0xff] %vm15, %v145
    %211 = vst.msk [vmem:[%s189 + $0xf9] sm:$0xff] %vm15, %v146
    %212 = vst.msk [vmem:[%s189 + $0x109] sm:$0xff] %vm15, %v147
    %213 = vst.msk [vmem:[%s189 + $0x111] sm:$0xff] %vm15, %v148
    %214 = vst.msk [vmem:[%s189 + $0x121] sm:$0xff] %vm15, %v149
    %215 = vst.msk [vmem:[%s189 + $0x129] sm:$0xff] %vm15, %v150
    %216 = vst.msk [vmem:[%s189 + $0x139] sm:$0xff] %vm15, %v151
    %217 = vst.msk [vmem:[%s189 + $0x141] sm:$0xff] %vm15, %v152
    %218 = vst.msk [vmem:[%s189 + $0x151] sm:$0xff] %vm15, %v153
    %219 = vst.msk [vmem:[%s189 + $0x159] sm:$0xff] %vm15, %v154
    %220 = vst.msk [vmem:[%s189 + $0x169] sm:$0xff] %vm15, %v155
    %221 = vst.msk [vmem:[%s189 + $0x171] sm:$0xff] %vm15, %v156
    %222 = vst.msk [vmem:[%s189 + $0x1b1] sm:$0xff] %vm15, %v157
    %223 = vst.msk [vmem:[%s189 + $0x1b9] sm:$0xff] %vm15, %v158
    %224 = vst.msk [vmem:[%s189 + $0x1c9] sm:$0xff] %vm15, %v159
    %225 = vst.msk [vmem:[%s189 + $0x1d1] sm:$0xff] %vm15, %v160
    %226 = vst.msk [vmem:[%s189 + $0x1e1] sm:$0xff] %vm15, %v161
    %227 = vst.msk [vmem:[%s189 + $0x1e9] sm:$0xff] %vm15, %v162
    %228 = vst.msk [vmem:[%s189 + $0x1f9] sm:$0xff] %vm15, %v163
    %229 = vst.msk [vmem:[%s189 + $0x201] sm:$0xff] %vm15, %v164
    %230 = vst.msk [vmem:[%s189 + $0x211] sm:$0xff] %vm15, %v165
    %231 = vst.msk [vmem:[%s189 + $0x219] sm:$0xff] %vm15, %v166
    %232 = vst.msk [vmem:[%s189 + $0x229] sm:$0xff] %vm15, %v167
    %233 = vst.msk [vmem:[%s189 + $0x231] sm:$0xff] %vm15, %v168
    %234 = vst.msk [vmem:[%s189 + $0x241] sm:$0xff] %vm15, %v169
    %235 = vst.msk [vmem:[%s189 + $0x249] sm:$0xff] %vm15, %v170
    %236 = vst.msk [vmem:[%s189 + $0x259] sm:$0xff] %vm15, %v171
    %237 = vst.msk [vmem:[%s189 + $0x261] sm:$0xff] %vm15, %v172
    %238 = vst.msk [vmem:[%s189 + $0x271] sm:$0xff] %vm15, %v173
    %239 = vst.msk [vmem:[%s189 + $0x279] sm:$0xff] %vm15, %v174
    %240 = vst.msk [vmem:[%s189 + $0x289] sm:$0xff] %vm15, %v175
    %241 = vst.msk [vmem:[%s189 + $0x291] sm:$0xff] %vm15, %v176
    %242 = vst.msk [vmem:[%s189 + $0x2a1] sm:$0xff] %vm15, %v177
    %243 = vst.msk [vmem:[%s189 + $0x2a9] sm:$0xff] %vm15, %v178
    %244 = vst.msk [vmem:[%s189 + $0x2b9] sm:$0xff] %vm15, %v179
    %245 = vst.msk [vmem:[%s189 + $0x2c1] sm:$0xff] %vm15, %v180
    %246 = vst.msk [vmem:[%s189 + $0x2d1] sm:$0xff] %vm15, %v181
    %247 = vst.msk [vmem:[%s189 + $0x2d9] sm:$0xff] %vm15, %v182
    %248 = vst.msk [vmem:[%s189 + $0x2e9] sm:$0xff] %vm15, %v183
    %249 = vst.msk [vmem:[%s189 + $0x2f1] sm:$0xff] %vm15, %v184
    %250 = vst.msk [vmem:[%s189 + $0x301] sm:$0xff] %vm15, %v185
    %251 = vst.msk [vmem:[%s189 + $0x309] sm:$0xff] %vm15, %v186
    %252 = vst.msk [vmem:[%s189 + $0x319] sm:$0xff] %vm15, %v187
    %253 = vst.msk [vmem:[%s189 + $0x321] sm:$0xff] %vm15, %v188
    %vm254 = vcmask 302368
    %255 = vst.msk [vmem:[#allocation3] sm:$0xff] %vm254, 1.0
    %256 = vst.msk [vmem:[#allocation3 + $0x8] sm:$0xff] %vm254, 1.0
    %257 = vst.msk [vmem:[#allocation3 + $0x10] sm:$0xff] %vm254, 1.0
    %258 = vst.msk [vmem:[#allocation3 + $0x18] sm:$0xff] %vm254, 1.0
    %259 = vst.msk [vmem:[#allocation3 + $0x20] sm:$0xff] %vm254, 1.0
    %260 = vst.msk [vmem:[#allocation3 + $0x28] sm:$0xff] %vm254, 1.0
    %261 = vst.msk [vmem:[#allocation3 + $0x30] sm:$0xff] %vm254, 1.0
    %262 = vst.msk [vmem:[#allocation3 + $0x38] sm:$0xff] %vm254, 1.0
    %263 = vst.msk [vmem:[#allocation3 + $0x40] sm:$0xff] %vm254, 1.0
    %264 = vst.msk [vmem:[#allocation3 + $0x48] sm:$0xff] %vm254, 1.0
    %265 = vst.msk [vmem:[#allocation3 + $0x50] sm:$0xff] %vm254, 1.0
    %266 = vst.msk [vmem:[#allocation3 + $0x58] sm:$0xff] %vm254, 1.0
    %267 = vst.msk [vmem:[#allocation3 + $0x60] sm:$0xff] %vm254, 1.0
    %268 = vst.msk [vmem:[#allocation3 + $0x68] sm:$0xff] %vm254, 1.0
    %269 = vst.msk [vmem:[#allocation3 + $0x70] sm:$0xff] %vm254, 1.0
    %270 = vst.msk [vmem:[#allocation3 + $0x78] sm:$0xff] %vm254, 1.0
    %271 = vst.msk [vmem:[#allocation3 + $0x80] sm:$0xff] %vm254, 1.0
    %272 = vst.msk [vmem:[#allocation3 + $0x88] sm:$0xff] %vm254, 1.0
    %273 = vst.msk [vmem:[#allocation3 + $0x90] sm:$0xff] %vm254, 1.0
    %274 = vst.msk [vmem:[#allocation3 + $0x98] sm:$0xff] %vm254, 1.0
    %275 = vst.msk [vmem:[#allocation3 + $0xa0] sm:$0xff] %vm254, 1.0
    %276 = vst.msk [vmem:[#allocation3 + $0xa8] sm:$0xff] %vm254, 1.0
    %277 = vst.msk [vmem:[#allocation3 + $0xb0] sm:$0xff] %vm254, 1.0
    %278 = vst.msk [vmem:[#allocation3 + $0xb8] sm:$0xff] %vm254, 1.0
    %279 = vst.msk [vmem:[#allocation3 + $0xc0] sm:$0xff] %vm254, 1.0
    %280 = vst.msk [vmem:[#allocation3 + $0xc8] sm:$0xff] %vm254, 1.0
    %281 = vst.msk [vmem:[#allocation3 + $0xd0] sm:$0xff] %vm254, 1.0
    %282 = vst.msk [vmem:[#allocation3 + $0xd8] sm:$0xff] %vm254, 1.0
    %283 = vst.msk [vmem:[#allocation3 + $0xe0] sm:$0xff] %vm254, 1.0
    %284 = vst.msk [vmem:[#allocation3 + $0xe8] sm:$0xff] %vm254, 1.0
    %285 = vst.msk [vmem:[#allocation3 + $0xf0] sm:$0xff] %vm254, 1.0
    %286 = vst.msk [vmem:[#allocation3 + $0xf8] sm:$0xff] %vm254, 1.0
    %v287 = vld [vmem:[#allocation2] sm:$0xff]
    %v288 = vld [vmem:[#allocation2 + $0x8] sm:$0xff]
    %v289 = vld [vmem:[#allocation2 + $0x10] sm:$0x3]
    %v290 = vld [vmem:[#allocation2 + $0x18] sm:$0xff]
    %v291 = vld [vmem:[#allocation2 + $0x20] sm:$0xff]
    %v292 = vld [vmem:[#allocation2 + $0x28] sm:$0x3]
    %v293 = vld [vmem:[#allocation2 + $0x30] sm:$0xff]
    %v294 = vld [vmem:[#allocation2 + $0x38] sm:$0xff]
    %v295 = vld [vmem:[#allocation2 + $0x40] sm:$0x3]
    %v296 = vld [vmem:[#allocation2 + $0x48] sm:$0xff]
    %v297 = vld [vmem:[#allocation2 + $0x50] sm:$0xff]
    %v298 = vld [vmem:[#allocation2 + $0x58] sm:$0x3]
    %v299 = vld [vmem:[#allocation2 + $0x60] sm:$0xff]
    %v300 = vld [vmem:[#allocation2 + $0x68] sm:$0xff]
    %v301 = vld [vmem:[#allocation2 + $0x70] sm:$0x3]
    %v302 = vld [vmem:[#allocation2 + $0x78] sm:$0xff]
    %v303 = vld [vmem:[#allocation2 + $0x80] sm:$0xff]
    %v304 = vld [vmem:[#allocation2 + $0x88] sm:$0x3]
    %v305 = vld [vmem:[#allocation2 + $0x90] sm:$0xff]
    %v306 = vld [vmem:[#allocation2 + $0x98] sm:$0xff]
    %v307 = vld [vmem:[#allocation2 + $0xa0] sm:$0x3]
    %v308 = vld [vmem:[#allocation2 + $0xa8] sm:$0xff]
    %v309 = vld [vmem:[#allocation2 + $0xb0] sm:$0xff]
    %v310 = vld [vmem:[#allocation2 + $0xb8] sm:$0x3]
    %v311 = vld [vmem:[#allocation2 + $0xc0] sm:$0xff]
    %v312 = vld [vmem:[#allocation2 + $0xc8] sm:$0xff]
    %v313 = vld [vmem:[#allocation2 + $0xd0] sm:$0x3]
    %v314 = vld [vmem:[#allocation2 + $0xd8] sm:$0xff]
    %v315 = vld [vmem:[#allocation2 + $0xe0] sm:$0xff]
    %v316 = vld [vmem:[#allocation2 + $0xe8] sm:$0x3]
    %v317 = vld [vmem:[#allocation2 + $0xf0] sm:$0xff]
    %v318 = vld [vmem:[#allocation2 + $0xf8] sm:$0xff]
    %v319 = vld [vmem:[#allocation2 + $0x100] sm:$0x3]
    %v320 = vld [vmem:[#allocation2 + $0x108] sm:$0xff]
    %v321 = vld [vmem:[#allocation2 + $0x110] sm:$0xff]
    %v322 = vld [vmem:[#allocation2 + $0x118] sm:$0x3]
    %v323 = vld [vmem:[#allocation2 + $0x120] sm:$0xff]
    %v324 = vld [vmem:[#allocation2 + $0x128] sm:$0xff]
    %v325 = vld [vmem:[#allocation2 + $0x130] sm:$0x3]
    %v326 = vld [vmem:[#allocation2 + $0x138] sm:$0xff]
    %v327 = vld [vmem:[#allocation2 + $0x140] sm:$0xff]
    %v328 = vld [vmem:[#allocation2 + $0x148] sm:$0x3]
    %v329 = vld [vmem:[#allocation2 + $0x150] sm:$0xff]
    %v330 = vld [vmem:[#allocation2 + $0x158] sm:$0xff]
    %v331 = vld [vmem:[#allocation2 + $0x160] sm:$0x3]
    %v332 = vld [vmem:[#allocation2 + $0x168] sm:$0xff]
    %v333 = vld [vmem:[#allocation2 + $0x170] sm:$0xff]
    %v334 = vld [vmem:[#allocation2 + $0x178] sm:$0x3]
    %v335 = vld [vmem:[#allocation2 + $0x180] sm:$0xff]
    %v336 = vld [vmem:[#allocation2 + $0x188] sm:$0xff]
    %v337 = vld [vmem:[#allocation2 + $0x190] sm:$0x3]
    %v338 = vld [vmem:[#allocation2 + $0x198] sm:$0xff]
    %v339 = vld [vmem:[#allocation2 + $0x1a0] sm:$0xff]
    %v340 = vld [vmem:[#allocation2 + $0x1a8] sm:$0x3]
    %341 = vst.msk [vmem:[#allocation3] sm:$0xff] %vm15, %v287
    %342 = vst.msk [vmem:[#allocation3 + $0x8] sm:$0xff] %vm15, %v288
    %343 = vst.msk [vmem:[#allocation3 + $0x10] sm:$0xff] %vm15, %v290
    %344 = vst.msk [vmem:[#allocation3 + $0x18] sm:$0xff] %vm15, %v291
    %345 = vst.msk [vmem:[#allocation3 + $0x20] sm:$0xff] %vm15, %v293
    %346 = vst.msk [vmem:[#allocation3 + $0x28] sm:$0xff] %vm15, %v294
    %347 = vst.msk [vmem:[#allocation3 + $0x30] sm:$0xff] %vm15, %v296
    %348 = vst.msk [vmem:[#allocation3 + $0x38] sm:$0xff] %vm15, %v297
    %349 = vst.msk [vmem:[#allocation3 + $0x40] sm:$0xff] %vm15, %v299
    %350 = vst.msk [vmem:[#allocation3 + $0x48] sm:$0xff] %vm15, %v300
    %351 = vst.msk [vmem:[#allocation3 + $0x50] sm:$0xff] %vm15, %v302
    %352 = vst.msk [vmem:[#allocation3 + $0x58] sm:$0xff] %vm15, %v303
    %353 = vst.msk [vmem:[#allocation3 + $0x60] sm:$0xff] %vm15, %v305
    %354 = vst.msk [vmem:[#allocation3 + $0x68] sm:$0xff] %vm15, %v306
    %355 = vst.msk [vmem:[#allocation3 + $0x70] sm:$0xff] %vm15, %v308
    %356 = vst.msk [vmem:[#allocation3 + $0x78] sm:$0xff] %vm15, %v309
    %357 = vst.msk [vmem:[#allocation3 + $0x80] sm:$0xff] %vm15, %v311
    %358 = vst.msk [vmem:[#allocation3 + $0x88] sm:$0xff] %vm15, %v312
    %359 = vst.msk [vmem:[#allocation3 + $0x90] sm:$0xff] %vm15, %v314
    %360 = vst.msk [vmem:[#allocation3 + $0x98] sm:$0xff] %vm15, %v315
    %361 = vst.msk [vmem:[#allocation3 + $0xa0] sm:$0xff] %vm15, %v317
    %362 = vst.msk [vmem:[#allocation3 + $0xa8] sm:$0xff] %vm15, %v318
    %363 = vst.msk [vmem:[#allocation3 + $0xb0] sm:$0xff] %vm15, %v320
    %364 = vst.msk [vmem:[#allocation3 + $0xb8] sm:$0xff] %vm15, %v321
    %365 = vst.msk [vmem:[#allocation3 + $0xc0] sm:$0xff] %vm15, %v323
    %366 = vst.msk [vmem:[#allocation3 + $0xc8] sm:$0xff] %vm15, %v324
    %367 = vst.msk [vmem:[#allocation3 + $0xd0] sm:$0xff] %vm15, %v326
    %368 = vst.msk [vmem:[#allocation3 + $0xd8] sm:$0xff] %vm15, %v327
    %369 = vst.msk [vmem:[#allocation3 + $0xe0] sm:$0xff] %vm15, %v329
    %370 = vst.msk [vmem:[#allocation3 + $0xe8] sm:$0xff] %vm15, %v330
    %371 = vst.msk [vmem:[#allocation3 + $0xf0] sm:$0xff] %vm15, %v332
    %372 = vst.msk [vmem:[#allocation3 + $0xf8] sm:$0xff] %vm15, %v333
    %vm421 = vcmask 1046528
    %v422 = vrot.slane %v287, 1
    %v423 = vrot.slane %v288, 1
    %v424 = vsel %vm421, %v422, %v423
    %v425 = vrot.slane %v289, 1
    %v426 = vsel %vm421, %v423, %v425
    %v427 = vrot.slane %v290, 1
    %v428 = vrot.slane %v291, 1
    %v429 = vsel %vm421, %v427, %v428
    %v430 = vrot.slane %v292, 1
    %v431 = vsel %vm421, %v428, %v430
    %v432 = vrot.slane %v293, 1
    %v433 = vrot.slane %v294, 1
    %v434 = vsel %vm421, %v432, %v433
    %v435 = vrot.slane %v295, 1
    %v436 = vsel %vm421, %v433, %v435
    %v437 = vrot.slane %v296, 1
    %v438 = vrot.slane %v297, 1
    %v439 = vsel %vm421, %v437, %v438
    %v440 = vrot.slane %v298, 1
    %v441 = vsel %vm421, %v438, %v440
    %v442 = vrot.slane %v299, 1
    %v443 = vrot.slane %v300, 1
    %v444 = vsel %vm421, %v442, %v443
    %v445 = vrot.slane %v301, 1
    %v446 = vsel %vm421, %v443, %v445
    %v447 = vrot.slane %v302, 1
    %v448 = vrot.slane %v303, 1
    %v449 = vsel %vm421, %v447, %v448
    %v450 = vrot.slane %v304, 1
    %v451 = vsel %vm421, %v448, %v450
    %v452 = vrot.slane %v305, 1
    %v453 = vrot.slane %v306, 1
    %v454 = vsel %vm421, %v452, %v453
    %v455 = vrot.slane %v307, 1
    %v456 = vsel %vm421, %v453, %v455
    %v457 = vrot.slane %v308, 1
    %v458 = vrot.slane %v309, 1
    %v459 = vsel %vm421, %v457, %v458
    %v460 = vrot.slane %v310, 1
    %v461 = vsel %vm421, %v458, %v460
    %v462 = vrot.slane %v311, 1
    %v463 = vrot.slane %v312, 1
    %v464 = vsel %vm421, %v462, %v463
    %v465 = vrot.slane %v313, 1
    %v466 = vsel %vm421, %v463, %v465
    %v467 = vrot.slane %v314, 1
    %v468 = vrot.slane %v315, 1
    %v469 = vsel %vm421, %v467, %v468
    %v470 = vrot.slane %v316, 1
    %v471 = vsel %vm421, %v468, %v470
    %v472 = vrot.slane %v317, 1
    %v473 = vrot.slane %v318, 1
    %v474 = vsel %vm421, %v472, %v473
    %v475 = vrot.slane %v319, 1
    %v476 = vsel %vm421, %v473, %v475
    %v477 = vrot.slane %v320, 1
    %v478 = vrot.slane %v321, 1
    %v479 = vsel %vm421, %v477, %v478
    %v480 = vrot.slane %v322, 1
    %v481 = vsel %vm421, %v478, %v480
    %v482 = vrot.slane %v323, 1
    %v483 = vrot.slane %v324, 1
    %v484 = vsel %vm421, %v482, %v483
    %v485 = vrot.slane %v325, 1
    %v486 = vsel %vm421, %v483, %v485
    %v487 = vrot.slane %v326, 1
    %v488 = vrot.slane %v327, 1
    %v489 = vsel %vm421, %v487, %v488
    %v490 = vrot.slane %v328, 1
    %v491 = vsel %vm421, %v488, %v490
    %v492 = vrot.slane %v329, 1
    %v493 = vrot.slane %v330, 1
    %v494 = vsel %vm421, %v492, %v493
    %v495 = vrot.slane %v331, 1
    %v496 = vsel %vm421, %v493, %v495
    %v497 = vrot.slane %v332, 1
    %v498 = vrot.slane %v333, 1
    %v499 = vsel %vm421, %v497, %v498
    %v500 = vrot.slane %v334, 1
    %v501 = vsel %vm421, %v498, %v500
    %502 = vrot.lane.b32.xlu0 %v424, 4
    %v503 = vpop.permute.xlu0 %502
    %504 = vrot.lane.b32.xlu0 %v426, 4
    %v505 = vpop.permute.xlu0 %504
    %506 = vrot.lane.b32.xlu0 %v429, 4
    %v507 = vpop.permute.xlu0 %506
    %508 = vrot.lane.b32.xlu0 %v431, 4
    %v509 = vpop.permute.xlu0 %508
    %510 = vrot.lane.b32.xlu0 %v434, 4
    %v511 = vpop.permute.xlu0 %510
    %512 = vrot.lane.b32.xlu0 %v436, 4
    %v513 = vpop.permute.xlu0 %512
    %514 = vrot.lane.b32.xlu0 %v439, 4
    %v515 = vpop.permute.xlu0 %514
    %516 = vrot.lane.b32.xlu0 %v441, 4
    %v517 = vpop.permute.xlu0 %516
    %518 = vrot.lane.b32.xlu0 %v444, 4
    %v519 = vpop.permute.xlu0 %518
    %520 = vrot.lane.b32.xlu0 %v446, 4
    %v521 = vpop.permute.xlu0 %520
    %522 = vrot.lane.b32.xlu0 %v449, 4
    %v523 = vpop.permute.xlu0 %522
    %524 = vrot.lane.b32.xlu0 %v451, 4
    %v525 = vpop.permute.xlu0 %524
    %526 = vrot.lane.b32.xlu0 %v454, 4
    %v527 = vpop.permute.xlu0 %526
    %528 = vrot.lane.b32.xlu0 %v456, 4
    %v529 = vpop.permute.xlu0 %528
    %530 = vrot.lane.b32.xlu0 %v459, 4
    %v531 = vpop.permute.xlu0 %530
    %532 = vrot.lane.b32.xlu0 %v461, 4
    %v533 = vpop.permute.xlu0 %532
    %534 = vrot.lane.b32.xlu0 %v464, 4
    %v535 = vpop.permute.xlu0 %534
    %536 = vrot.lane.b32.xlu0 %v466, 4
    %v537 = vpop.permute.xlu0 %536
    %538 = vrot.lane.b32.xlu0 %v469, 4
    %v539 = vpop.permute.xlu0 %538
    %540 = vrot.lane.b32.xlu0 %v471, 4
    %v541 = vpop.permute.xlu0 %540
    %542 = vrot.lane.b32.xlu0 %v474, 4
    %v543 = vpop.permute.xlu0 %542
    %544 = vrot.lane.b32.xlu0 %v476, 4
    %v545 = vpop.permute.xlu0 %544
    %546 = vrot.lane.b32.xlu0 %v479, 4
    %v547 = vpop.permute.xlu0 %546
    %548 = vrot.lane.b32.xlu0 %v481, 4
    %v549 = vpop.permute.xlu0 %548
    %550 = vrot.lane.b32.xlu0 %v484, 4
    %v551 = vpop.permute.xlu0 %550
    %552 = vrot.lane.b32.xlu0 %v486, 4
    %v553 = vpop.permute.xlu0 %552
    %554 = vrot.lane.b32.xlu0 %v489, 4
    %v555 = vpop.permute.xlu0 %554
    %556 = vrot.lane.b32.xlu0 %v491, 4
    %v557 = vpop.permute.xlu0 %556
    %558 = vrot.lane.b32.xlu0 %v494, 4
    %v559 = vpop.permute.xlu0 %558
    %560 = vrot.lane.b32.xlu0 %v496, 4
    %v561 = vpop.permute.xlu0 %560
    %562 = vrot.lane.b32.xlu0 %v499, 4
    %v563 = vpop.permute.xlu0 %562
    %564 = vrot.lane.b32.xlu0 %v501, 4
    %v565 = vpop.permute.xlu0 %564
    %vm598 = vcmask 64544
    %599 = vst.msk [vmem:[#allocation3] sm:$0xff] %vm598, %v503
    %600 = vst.msk [vmem:[#allocation3 + $0x8] sm:$0xff] %vm598, %v505
    %601 = vst.msk [vmem:[#allocation3 + $0x10] sm:$0xff] %vm598, %v507
    %602 = vst.msk [vmem:[#allocation3 + $0x18] sm:$0xff] %vm598, %v509
    %603 = vst.msk [vmem:[#allocation3 + $0x20] sm:$0xff] %vm598, %v511
    %604 = vst.msk [vmem:[#allocation3 + $0x28] sm:$0xff] %vm598, %v513
    %605 = vst.msk [vmem:[#allocation3 + $0x30] sm:$0xff] %vm598, %v515
    %606 = vst.msk [vmem:[#allocation3 + $0x38] sm:$0xff] %vm598, %v517
    %607 = vst.msk [vmem:[#allocation3 + $0x40] sm:$0xff] %vm598, %v519
    %608 = vst.msk [vmem:[#allocation3 + $0x48] sm:$0xff] %vm598, %v521
    %609 = vst.msk [vmem:[#allocation3 + $0x50] sm:$0xff] %vm598, %v523
    %610 = vst.msk [vmem:[#allocation3 + $0x58] sm:$0xff] %vm598, %v525
    %611 = vst.msk [vmem:[#allocation3 + $0x60] sm:$0xff] %vm598, %v527
    %612 = vst.msk [vmem:[#allocation3 + $0x68] sm:$0xff] %vm598, %v529
    %613 = vst.msk [vmem:[#allocation3 + $0x70] sm:$0xff] %vm598, %v531
    %614 = vst.msk [vmem:[#allocation3 + $0x78] sm:$0xff] %vm598, %v533
    %615 = vst.msk [vmem:[#allocation3 + $0x80] sm:$0xff] %vm598, %v535
    %616 = vst.msk [vmem:[#allocation3 + $0x88] sm:$0xff] %vm598, %v537
    %617 = vst.msk [vmem:[#allocation3 + $0x90] sm:$0xff] %vm598, %v539
    %618 = vst.msk [vmem:[#allocation3 + $0x98] sm:$0xff] %vm598, %v541
    %619 = vst.msk [vmem:[#allocation3 + $0xa0] sm:$0xff] %vm598, %v543
    %620 = vst.msk [vmem:[#allocation3 + $0xa8] sm:$0xff] %vm598, %v545
    %621 = vst.msk [vmem:[#allocation3 + $0xb0] sm:$0xff] %vm598, %v547
    %622 = vst.msk [vmem:[#allocation3 + $0xb8] sm:$0xff] %vm598, %v549
    %623 = vst.msk [vmem:[#allocation3 + $0xc0] sm:$0xff] %vm598, %v551
    %624 = vst.msk [vmem:[#allocation3 + $0xc8] sm:$0xff] %vm598, %v553
    %625 = vst.msk [vmem:[#allocation3 + $0xd0] sm:$0xff] %vm598, %v555
    %626 = vst.msk [vmem:[#allocation3 + $0xd8] sm:$0xff] %vm598, %v557
    %627 = vst.msk [vmem:[#allocation3 + $0xe0] sm:$0xff] %vm598, %v559
    %628 = vst.msk [vmem:[#allocation3 + $0xe8] sm:$0xff] %vm598, %v561
    %629 = vst.msk [vmem:[#allocation3 + $0xf0] sm:$0xff] %vm598, %v563
    %630 = vst.msk [vmem:[#allocation3 + $0xf8] sm:$0xff] %vm598, %v565
    %vm631 = vcmask 1045504
    %v632 = vrot.slane %v287, 2
    %v633 = vrot.slane %v288, 2
    %v634 = vsel %vm631, %v632, %v633
    %v635 = vrot.slane %v289, 2
    %v636 = vsel %vm631, %v633, %v635
    %v637 = vrot.slane %v290, 2
    %v638 = vrot.slane %v291, 2
    %v639 = vsel %vm631, %v637, %v638
    %v640 = vrot.slane %v292, 2
    %v641 = vsel %vm631, %v638, %v640
    %v642 = vrot.slane %v293, 2
    %v643 = vrot.slane %v294, 2
    %v644 = vsel %vm631, %v642, %v643
    %v645 = vrot.slane %v295, 2
    %v646 = vsel %vm631, %v643, %v645
    %v647 = vrot.slane %v296, 2
    %v648 = vrot.slane %v297, 2
    %v649 = vsel %vm631, %v647, %v648
    %v650 = vrot.slane %v298, 2
    %v651 = vsel %vm631, %v648, %v650
    %v652 = vrot.slane %v299, 2
    %v653 = vrot.slane %v300, 2
    %v654 = vsel %vm631, %v652, %v653
    %v655 = vrot.slane %v301, 2
    %v656 = vsel %vm631, %v653, %v655
    %v657 = vrot.slane %v302, 2
    %v658 = vrot.slane %v303, 2
    %v659 = vsel %vm631, %v657, %v658
    %v660 = vrot.slane %v304, 2
    %v661 = vsel %vm631, %v658, %v660
    %v662 = vrot.slane %v305, 2
    %v663 = vrot.slane %v306, 2
    %v664 = vsel %vm631, %v662, %v663
    %v665 = vrot.slane %v307, 2
    %v666 = vsel %vm631, %v663, %v665
    %v667 = vrot.slane %v308, 2
    %v668 = vrot.slane %v309, 2
    %v669 = vsel %vm631, %v667, %v668
    %v670 = vrot.slane %v310, 2
    %v671 = vsel %vm631, %v668, %v670
    %v672 = vrot.slane %v311, 2
    %v673 = vrot.slane %v312, 2
    %v674 = vsel %vm631, %v672, %v673
    %v675 = vrot.slane %v313, 2
    %v676 = vsel %vm631, %v673, %v675
    %v677 = vrot.slane %v314, 2
    %v678 = vrot.slane %v315, 2
    %v679 = vsel %vm631, %v677, %v678
    %v680 = vrot.slane %v316, 2
    %v681 = vsel %vm631, %v678, %v680
    %v682 = vrot.slane %v317, 2
    %v683 = vrot.slane %v318, 2
    %v684 = vsel %vm631, %v682, %v683
    %v685 = vrot.slane %v319, 2
    %v686 = vsel %vm631, %v683, %v685
    %v687 = vrot.slane %v320, 2
    %v688 = vrot.slane %v321, 2
    %v689 = vsel %vm631, %v687, %v688
    %v690 = vrot.slane %v322, 2
    %v691 = vsel %vm631, %v688, %v690
    %v692 = vrot.slane %v323, 2
    %v693 = vrot.slane %v324, 2
    %v694 = vsel %vm631, %v692, %v693
    %v695 = vrot.slane %v325, 2
    %v696 = vsel %vm631, %v693, %v695
    %v697 = vrot.slane %v326, 2
    %v698 = vrot.slane %v327, 2
    %v699 = vsel %vm631, %v697, %v698
    %v700 = vrot.slane %v328, 2
    %v701 = vsel %vm631, %v698, %v700
    %v702 = vrot.slane %v329, 2
    %v703 = vrot.slane %v330, 2
    %v704 = vsel %vm631, %v702, %v703
    %v705 = vrot.slane %v331, 2
    %v706 = vsel %vm631, %v703, %v705
    %v707 = vrot.slane %v332, 2
    %v708 = vrot.slane %v333, 2
    %v709 = vsel %vm631, %v707, %v708
    %v710 = vrot.slane %v334, 2
    %v711 = vsel %vm631, %v708, %v710
    %712 = vrot.lane.b32.xlu0 %v634, 8
    %v713 = vpop.permute.xlu0 %712
    %714 = vrot.lane.b32.xlu0 %v636, 8
    %v715 = vpop.permute.xlu0 %714
    %716 = vrot.lane.b32.xlu0 %v639, 8
    %v717 = vpop.permute.xlu0 %716
    %718 = vrot.lane.b32.xlu0 %v641, 8
    %v719 = vpop.permute.xlu0 %718
    %720 = vrot.lane.b32.xlu0 %v644, 8
    %v721 = vpop.permute.xlu0 %720
    %722 = vrot.lane.b32.xlu0 %v646, 8
    %v723 = vpop.permute.xlu0 %722
    %724 = vrot.lane.b32.xlu0 %v649, 8
    %v725 = vpop.permute.xlu0 %724
    %726 = vrot.lane.b32.xlu0 %v651, 8
    %v727 = vpop.permute.xlu0 %726
    %728 = vrot.lane.b32.xlu0 %v654, 8
    %v729 = vpop.permute.xlu0 %728
    %730 = vrot.lane.b32.xlu0 %v656, 8
    %v731 = vpop.permute.xlu0 %730
    %732 = vrot.lane.b32.xlu0 %v659, 8
    %v733 = vpop.permute.xlu0 %732
    %734 = vrot.lane.b32.xlu0 %v661, 8
    %v735 = vpop.permute.xlu0 %734
    %736 = vrot.lane.b32.xlu0 %v664, 8
    %v737 = vpop.permute.xlu0 %736
    %738 = vrot.lane.b32.xlu0 %v666, 8
    %v739 = vpop.permute.xlu0 %738
    %740 = vrot.lane.b32.xlu0 %v669, 8
    %v741 = vpop.permute.xlu0 %740
    %742 = vrot.lane.b32.xlu0 %v671, 8
    %v743 = vpop.permute.xlu0 %742
    %744 = vrot.lane.b32.xlu0 %v674, 8
    %v745 = vpop.permute.xlu0 %744
    %746 = vrot.lane.b32.xlu0 %v676, 8
    %v747 = vpop.permute.xlu0 %746
    %748 = vrot.lane.b32.xlu0 %v679, 8
    %v749 = vpop.permute.xlu0 %748
    %750 = vrot.lane.b32.xlu0 %v681, 8
    %v751 = vpop.permute.xlu0 %750
    %752 = vrot.lane.b32.xlu0 %v684, 8
    %v753 = vpop.permute.xlu0 %752
    %754 = vrot.lane.b32.xlu0 %v686, 8
    %v755 = vpop.permute.xlu0 %754
    %756 = vrot.lane.b32.xlu0 %v689, 8
    %v757 = vpop.permute.xlu0 %756
    %758 = vrot.lane.b32.xlu0 %v691, 8
    %v759 = vpop.permute.xlu0 %758
    %760 = vrot.lane.b32.xlu0 %v694, 8
    %v761 = vpop.permute.xlu0 %760
    %762 = vrot.lane.b32.xlu0 %v696, 8
    %v763 = vpop.permute.xlu0 %762
    %764 = vrot.lane.b32.xlu0 %v699, 8
    %v765 = vpop.permute.xlu0 %764
    %766 = vrot.lane.b32.xlu0 %v701, 8
    %v767 = vpop.permute.xlu0 %766
    %768 = vrot.lane.b32.xlu0 %v704, 8
    %v769 = vpop.permute.xlu0 %768
    %770 = vrot.lane.b32.xlu0 %v706, 8
    %v771 = vpop.permute.xlu0 %770
    %772 = vrot.lane.b32.xlu0 %v709, 8
    %v773 = vpop.permute.xlu0 %772
    %774 = vrot.lane.b32.xlu0 %v711, 8
    %v775 = vpop.permute.xlu0 %774
    %vm808 = vcmask 97344
    %809 = vst.msk [vmem:[#allocation3] sm:$0xff] %vm808, %v713
    %810 = vst.msk [vmem:[#allocation3 + $0x8] sm:$0xff] %vm808, %v715
    %811 = vst.msk [vmem:[#allocation3 + $0x10] sm:$0xff] %vm808, %v717
    %812 = vst.msk [vmem:[#allocation3 + $0x18] sm:$0xff] %vm808, %v719
    %813 = vst.msk [vmem:[#allocation3 + $0x20] sm:$0xff] %vm808, %v721
    %814 = vst.msk [vmem:[#allocation3 + $0x28] sm:$0xff] %vm808, %v723
    %815 = vst.msk [vmem:[#allocation3 + $0x30] sm:$0xff] %vm808, %v725
    %816 = vst.msk [vmem:[#allocation3 + $0x38] sm:$0xff] %vm808, %v727
    %817 = vst.msk [vmem:[#allocation3 + $0x40] sm:$0xff] %vm808, %v729
    %818 = vst.msk [vmem:[#allocation3 + $0x48] sm:$0xff] %vm808, %v731
    %819 = vst.msk [vmem:[#allocation3 + $0x50] sm:$0xff] %vm808, %v733
    %820 = vst.msk [vmem:[#allocation3 + $0x58] sm:$0xff] %vm808, %v735
    %821 = vst.msk [vmem:[#allocation3 + $0x60] sm:$0xff] %vm808, %v737
    %822 = vst.msk [vmem:[#allocation3 + $0x68] sm:$0xff] %vm808, %v739
    %823 = vst.msk [vmem:[#allocation3 + $0x70] sm:$0xff] %vm808, %v741
    %824 = vst.msk [vmem:[#allocation3 + $0x78] sm:$0xff] %vm808, %v743
    %825 = vst.msk [vmem:[#allocation3 + $0x80] sm:$0xff] %vm808, %v745
    %826 = vst.msk [vmem:[#allocation3 + $0x88] sm:$0xff] %vm808, %v747
    %827 = vst.msk [vmem:[#allocation3 + $0x90] sm:$0xff] %vm808, %v749
    %828 = vst.msk [vmem:[#allocation3 + $0x98] sm:$0xff] %vm808, %v751
    %829 = vst.msk [vmem:[#allocation3 + $0xa0] sm:$0xff] %vm808, %v753
    %830 = vst.msk [vmem:[#allocation3 + $0xa8] sm:$0xff] %vm808, %v755
    %831 = vst.msk [vmem:[#allocation3 + $0xb0] sm:$0xff] %vm808, %v757
    %832 = vst.msk [vmem:[#allocation3 + $0xb8] sm:$0xff] %vm808, %v759
    %833 = vst.msk [vmem:[#allocation3 + $0xc0] sm:$0xff] %vm808, %v761
    %834 = vst.msk [vmem:[#allocation3 + $0xc8] sm:$0xff] %vm808, %v763
    %835 = vst.msk [vmem:[#allocation3 + $0xd0] sm:$0xff] %vm808, %v765
    %836 = vst.msk [vmem:[#allocation3 + $0xd8] sm:$0xff] %vm808, %v767
    %837 = vst.msk [vmem:[#allocation3 + $0xe0] sm:$0xff] %vm808, %v769
    %838 = vst.msk [vmem:[#allocation3 + $0xe8] sm:$0xff] %vm808, %v771
    %839 = vst.msk [vmem:[#allocation3 + $0xf0] sm:$0xff] %vm808, %v773
    %840 = vst.msk [vmem:[#allocation3 + $0xf8] sm:$0xff] %vm808, %v775
    %843 = vrot.lane.b32.xlu0 %v290, 12
    %v844 = vpop.permute.xlu0 %843
    %845 = vrot.lane.b32.xlu0 %v291, 12
    %v846 = vpop.permute.xlu0 %845
    %847 = vrot.lane.b32.xlu0 %v293, 12
    %v848 = vpop.permute.xlu0 %847
    %849 = vrot.lane.b32.xlu0 %v294, 12
    %v850 = vpop.permute.xlu0 %849
    %851 = vrot.lane.b32.xlu0 %v296, 12
    %v852 = vpop.permute.xlu0 %851
    %853 = vrot.lane.b32.xlu0 %v297, 12
    %v854 = vpop.permute.xlu0 %853
    %855 = vrot.lane.b32.xlu0 %v299, 12
    %v856 = vpop.permute.xlu0 %855
    %857 = vrot.lane.b32.xlu0 %v300, 12
    %v858 = vpop.permute.xlu0 %857
    %859 = vrot.lane.b32.xlu0 %v302, 12
    %v860 = vpop.permute.xlu0 %859
    %861 = vrot.lane.b32.xlu0 %v303, 12
    %v862 = vpop.permute.xlu0 %861
    %863 = vrot.lane.b32.xlu0 %v305, 12
    %v864 = vpop.permute.xlu0 %863
    %865 = vrot.lane.b32.xlu0 %v306, 12
    %v866 = vpop.permute.xlu0 %865
    %867 = vrot.lane.b32.xlu0 %v308, 12
    %v868 = vpop.permute.xlu0 %867
    %869 = vrot.lane.b32.xlu0 %v309, 12
    %v870 = vpop.permute.xlu0 %869
    %871 = vrot.lane.b32.xlu0 %v311, 12
    %v872 = vpop.permute.xlu0 %871
    %873 = vrot.lane.b32.xlu0 %v312, 12
    %v874 = vpop.permute.xlu0 %873
    %875 = vrot.lane.b32.xlu0 %v314, 12
    %v876 = vpop.permute.xlu0 %875
    %877 = vrot.lane.b32.xlu0 %v315, 12
    %v878 = vpop.permute.xlu0 %877
    %879 = vrot.lane.b32.xlu0 %v317, 12
    %v880 = vpop.permute.xlu0 %879
    %881 = vrot.lane.b32.xlu0 %v318, 12
    %v882 = vpop.permute.xlu0 %881
    %883 = vrot.lane.b32.xlu0 %v320, 12
    %v884 = vpop.permute.xlu0 %883
    %885 = vrot.lane.b32.xlu0 %v321, 12
    %v886 = vpop.permute.xlu0 %885
    %887 = vrot.lane.b32.xlu0 %v323, 12
    %v888 = vpop.permute.xlu0 %887
    %889 = vrot.lane.b32.xlu0 %v324, 12
    %v890 = vpop.permute.xlu0 %889
    %891 = vrot.lane.b32.xlu0 %v326, 12
    %v892 = vpop.permute.xlu0 %891
    %893 = vrot.lane.b32.xlu0 %v327, 12
    %v894 = vpop.permute.xlu0 %893
    %895 = vrot.lane.b32.xlu0 %v329, 12
    %v896 = vpop.permute.xlu0 %895
    %897 = vrot.lane.b32.xlu0 %v330, 12
    %v898 = vpop.permute.xlu0 %897
    %899 = vrot.lane.b32.xlu0 %v332, 12
    %v900 = vpop.permute.xlu0 %899
    %901 = vrot.lane.b32.xlu0 %v333, 12
    %v902 = vpop.permute.xlu0 %901
    %903 = vrot.lane.b32.xlu0 %v335, 12
    %v904 = vpop.permute.xlu0 %903
    %905 = vrot.lane.b32.xlu0 %v336, 12
    %v906 = vpop.permute.xlu0 %905
    %vm939 = vcmask 130144
    %940 = vst.msk [vmem:[#allocation3] sm:$0xff] %vm939, %v844
    %941 = vst.msk [vmem:[#allocation3 + $0x8] sm:$0xff] %vm939, %v846
    %942 = vst.msk [vmem:[#allocation3 + $0x10] sm:$0xff] %vm939, %v848
    %943 = vst.msk [vmem:[#allocation3 + $0x18] sm:$0xff] %vm939, %v850
    %944 = vst.msk [vmem:[#allocation3 + $0x20] sm:$0xff] %vm939, %v852
    %945 = vst.msk [vmem:[#allocation3 + $0x28] sm:$0xff] %vm939, %v854
    %946 = vst.msk [vmem:[#allocation3 + $0x30] sm:$0xff] %vm939, %v856
    %947 = vst.msk [vmem:[#allocation3 + $0x38] sm:$0xff] %vm939, %v858
    %948 = vst.msk [vmem:[#allocation3 + $0x40] sm:$0xff] %vm939, %v860
    %949 = vst.msk [vmem:[#allocation3 + $0x48] sm:$0xff] %vm939, %v862
    %950 = vst.msk [vmem:[#allocation3 + $0x50] sm:$0xff] %vm939, %v864
    %951 = vst.msk [vmem:[#allocation3 + $0x58] sm:$0xff] %vm939, %v866
    %952 = vst.msk [vmem:[#allocation3 + $0x60] sm:$0xff] %vm939, %v868
    %953 = vst.msk [vmem:[#allocation3 + $0x68] sm:$0xff] %vm939, %v870
    %954 = vst.msk [vmem:[#allocation3 + $0x70] sm:$0xff] %vm939, %v872
    %955 = vst.msk [vmem:[#allocation3 + $0x78] sm:$0xff] %vm939, %v874
    %956 = vst.msk [vmem:[#allocation3 + $0x80] sm:$0xff] %vm939, %v876
    %957 = vst.msk [vmem:[#allocation3 + $0x88] sm:$0xff] %vm939, %v878
    %958 = vst.msk [vmem:[#allocation3 + $0x90] sm:$0xff] %vm939, %v880
    %959 = vst.msk [vmem:[#allocation3 + $0x98] sm:$0xff] %vm939, %v882
    %960 = vst.msk [vmem:[#allocation3 + $0xa0] sm:$0xff] %vm939, %v884
    %961 = vst.msk [vmem:[#allocation3 + $0xa8] sm:$0xff] %vm939, %v886
    %962 = vst.msk [vmem:[#allocation3 + $0xb0] sm:$0xff] %vm939, %v888
    %963 = vst.msk [vmem:[#allocation3 + $0xb8] sm:$0xff] %vm939, %v890
    %964 = vst.msk [vmem:[#allocation3 + $0xc0] sm:$0xff] %vm939, %v892
    %965 = vst.msk [vmem:[#allocation3 + $0xc8] sm:$0xff] %vm939, %v894
    %966 = vst.msk [vmem:[#allocation3 + $0xd0] sm:$0xff] %vm939, %v896
    %967 = vst.msk [vmem:[#allocation3 + $0xd8] sm:$0xff] %vm939, %v898
    %968 = vst.msk [vmem:[#allocation3 + $0xe0] sm:$0xff] %vm939, %v900
    %969 = vst.msk [vmem:[#allocation3 + $0xe8] sm:$0xff] %vm939, %v902
    %970 = vst.msk [vmem:[#allocation3 + $0xf0] sm:$0xff] %vm939, %v904
    %971 = vst.msk [vmem:[#allocation3 + $0xf8] sm:$0xff] %vm939, %v906
    %v973 = vrot.slane %v335, 1
    %v974 = vrot.slane %v336, 1
    %v975 = vsel %vm421, %v973, %v974
    %v976 = vrot.slane %v337, 1
    %v977 = vsel %vm421, %v974, %v976
    %978 = vrot.lane.b32.xlu0 %v429, 16
    %v979 = vpop.permute.xlu0 %978
    %980 = vrot.lane.b32.xlu0 %v431, 16
    %v981 = vpop.permute.xlu0 %980
    %982 = vrot.lane.b32.xlu0 %v434, 16
    %v983 = vpop.permute.xlu0 %982
    %984 = vrot.lane.b32.xlu0 %v436, 16
    %v985 = vpop.permute.xlu0 %984
    %986 = vrot.lane.b32.xlu0 %v439, 16
    %v987 = vpop.permute.xlu0 %986
    %988 = vrot.lane.b32.xlu0 %v441, 16
    %v989 = vpop.permute.xlu0 %988
    %990 = vrot.lane.b32.xlu0 %v444, 16
    %v991 = vpop.permute.xlu0 %990
    %992 = vrot.lane.b32.xlu0 %v446, 16
    %v993 = vpop.permute.xlu0 %992
    %994 = vrot.lane.b32.xlu0 %v449, 16
    %v995 = vpop.permute.xlu0 %994
    %996 = vrot.lane.b32.xlu0 %v451, 16
    %v997 = vpop.permute.xlu0 %996
    %998 = vrot.lane.b32.xlu0 %v454, 16
    %v999 = vpop.permute.xlu0 %998
    %1000 = vrot.lane.b32.xlu0 %v456, 16
    %v1001 = vpop.permute.xlu0 %1000
    %1002 = vrot.lane.b32.xlu0 %v459, 16
    %v1003 = vpop.permute.xlu0 %1002
    %1004 = vrot.lane.b32.xlu0 %v461, 16
    %v1005 = vpop.permute.xlu0 %1004
    %1006 = vrot.lane.b32.xlu0 %v464, 16
    %v1007 = vpop.permute.xlu0 %1006
    %1008 = vrot.lane.b32.xlu0 %v466, 16
    %v1009 = vpop.permute.xlu0 %1008
    %1010 = vrot.lane.b32.xlu0 %v469, 16
    %v1011 = vpop.permute.xlu0 %1010
    %1012 = vrot.lane.b32.xlu0 %v471, 16
    %v1013 = vpop.permute.xlu0 %1012
    %1014 = vrot.lane.b32.xlu0 %v474, 16
    %v1015 = vpop.permute.xlu0 %1014
    %1016 = vrot.lane.b32.xlu0 %v476, 16
    %v1017 = vpop.permute.xlu0 %1016
    %1018 = vrot.lane.b32.xlu0 %v479, 16
    %v1019 = vpop.permute.xlu0 %1018
    %1020 = vrot.lane.b32.xlu0 %v481, 16
    %v1021 = vpop.permute.xlu0 %1020
    %1022 = vrot.lane.b32.xlu0 %v484, 16
    %v1023 = vpop.permute.xlu0 %1022
    %1024 = vrot.lane.b32.xlu0 %v486, 16
    %v1025 = vpop.permute.xlu0 %1024
    %1026 = vrot.lane.b32.xlu0 %v489, 16
    %v1027 = vpop.permute.xlu0 %1026
    %1028 = vrot.lane.b32.xlu0 %v491, 16
    %v1029 = vpop.permute.xlu0 %1028
    %1030 = vrot.lane.b32.xlu0 %v494, 16
    %v1031 = vpop.permute.xlu0 %1030
    %1032 = vrot.lane.b32.xlu0 %v496, 16
    %v1033 = vpop.permute.xlu0 %1032
    %1034 = vrot.lane.b32.xlu0 %v499, 16
    %v1035 = vpop.permute.xlu0 %1034
    %1036 = vrot.lane.b32.xlu0 %v501, 16
    %v1037 = vpop.permute.xlu0 %1036
    %1038 = vrot.lane.b32.xlu0 %v975, 16
    %v1039 = vpop.permute.xlu0 %1038
    %1040 = vrot.lane.b32.xlu0 %v977, 16
    %v1041 = vpop.permute.xlu0 %1040
    %vm1074 = vcmask 162944
    %1075 = vst.msk [vmem:[#allocation3] sm:$0xff] %vm1074, %v979
    %1076 = vst.msk [vmem:[#allocation3 + $0x8] sm:$0xff] %vm1074, %v981
    %1077 = vst.msk [vmem:[#allocation3 + $0x10] sm:$0xff] %vm1074, %v983
    %1078 = vst.msk [vmem:[#allocation3 + $0x18] sm:$0xff] %vm1074, %v985
    %1079 = vst.msk [vmem:[#allocation3 + $0x20] sm:$0xff] %vm1074, %v987
    %1080 = vst.msk [vmem:[#allocation3 + $0x28] sm:$0xff] %vm1074, %v989
    %1081 = vst.msk [vmem:[#allocation3 + $0x30] sm:$0xff] %vm1074, %v991
    %1082 = vst.msk [vmem:[#allocation3 + $0x38] sm:$0xff] %vm1074, %v993
    %1083 = vst.msk [vmem:[#allocation3 + $0x40] sm:$0xff] %vm1074, %v995
    %1084 = vst.msk [vmem:[#allocation3 + $0x48] sm:$0xff] %vm1074, %v997
    %1085 = vst.msk [vmem:[#allocation3 + $0x50] sm:$0xff] %vm1074, %v999
    %1086 = vst.msk [vmem:[#allocation3 + $0x58] sm:$0xff] %vm1074, %v1001
    %1087 = vst.msk [vmem:[#allocation3 + $0x60] sm:$0xff] %vm1074, %v1003
    %1088 = vst.msk [vmem:[#allocation3 + $0x68] sm:$0xff] %vm1074, %v1005
    %1089 = vst.msk [vmem:[#allocation3 + $0x70] sm:$0xff] %vm1074, %v1007
    %1090 = vst.msk [vmem:[#allocation3 + $0x78] sm:$0xff] %vm1074, %v1009
    %1091 = vst.msk [vmem:[#allocation3 + $0x80] sm:$0xff] %vm1074, %v1011
    %1092 = vst.msk [vmem:[#allocation3 + $0x88] sm:$0xff] %vm1074, %v1013
    %1093 = vst.msk [vmem:[#allocation3 + $0x90] sm:$0xff] %vm1074, %v1015
    %1094 = vst.msk [vmem:[#allocation3 + $0x98] sm:$0xff] %vm1074, %v1017
    %1095 = vst.msk [vmem:[#allocation3 + $0xa0] sm:$0xff] %vm1074, %v1019
    %1096 = vst.msk [vmem:[#allocation3 + $0xa8] sm:$0xff] %vm1074, %v1021
    %1097 = vst.msk [vmem:[#allocation3 + $0xb0] sm:$0xff] %vm1074, %v1023
    %1098 = vst.msk [vmem:[#allocation3 + $0xb8] sm:$0xff] %vm1074, %v1025
    %1099 = vst.msk [vmem:[#allocation3 + $0xc0] sm:$0xff] %vm1074, %v1027
    %1100 = vst.msk [vmem:[#allocation3 + $0xc8] sm:$0xff] %vm1074, %v1029
    %1101 = vst.msk [vmem:[#allocation3 + $0xd0] sm:$0xff] %vm1074, %v1031
    %1102 = vst.msk [vmem:[#allocation3 + $0xd8] sm:$0xff] %vm1074, %v1033
    %1103 = vst.msk [vmem:[#allocation3 + $0xe0] sm:$0xff] %vm1074, %v1035
    %1104 = vst.msk [vmem:[#allocation3 + $0xe8] sm:$0xff] %vm1074, %v1037
    %1105 = vst.msk [vmem:[#allocation3 + $0xf0] sm:$0xff] %vm1074, %v1039
    %1106 = vst.msk [vmem:[#allocation3 + $0xf8] sm:$0xff] %vm1074, %v1041
    %v1107 = vrot.slane %v335, 2
    %v1108 = vrot.slane %v336, 2
    %v1109 = vsel %vm631, %v1107, %v1108
    %v1110 = vrot.slane %v337, 2
    %v1111 = vsel %vm631, %v1108, %v1110
    %1112 = vrot.lane.b32.xlu0 %v639, 20
    %v1113 = vpop.permute.xlu0 %1112
    %1114 = vrot.lane.b32.xlu0 %v641, 20
    %v1115 = vpop.permute.xlu0 %1114
    %1116 = vrot.lane.b32.xlu0 %v644, 20
    %v1117 = vpop.permute.xlu0 %1116
    %1118 = vrot.lane.b32.xlu0 %v646, 20
    %v1119 = vpop.permute.xlu0 %1118
    %1120 = vrot.lane.b32.xlu0 %v649, 20
    %v1121 = vpop.permute.xlu0 %1120
    %1122 = vrot.lane.b32.xlu0 %v651, 20
    %v1123 = vpop.permute.xlu0 %1122
    %1124 = vrot.lane.b32.xlu0 %v654, 20
    %v1125 = vpop.permute.xlu0 %1124
    %1126 = vrot.lane.b32.xlu0 %v656, 20
    %v1127 = vpop.permute.xlu0 %1126
    %1128 = vrot.lane.b32.xlu0 %v659, 20
    %v1129 = vpop.permute.xlu0 %1128
    %1130 = vrot.lane.b32.xlu0 %v661, 20
    %v1131 = vpop.permute.xlu0 %1130
    %1132 = vrot.lane.b32.xlu0 %v664, 20
    %v1133 = vpop.permute.xlu0 %1132
    %1134 = vrot.lane.b32.xlu0 %v666, 20
    %v1135 = vpop.permute.xlu0 %1134
    %1136 = vrot.lane.b32.xlu0 %v669, 20
    %v1137 = vpop.permute.xlu0 %1136
    %1138 = vrot.lane.b32.xlu0 %v671, 20
    %v1139 = vpop.permute.xlu0 %1138
    %1140 = vrot.lane.b32.xlu0 %v674, 20
    %v1141 = vpop.permute.xlu0 %1140
    %1142 = vrot.lane.b32.xlu0 %v676, 20
    %v1143 = vpop.permute.xlu0 %1142
    %1144 = vrot.lane.b32.xlu0 %v679, 20
    %v1145 = vpop.permute.xlu0 %1144
    %1146 = vrot.lane.b32.xlu0 %v681, 20
    %v1147 = vpop.permute.xlu0 %1146
    %1148 = vrot.lane.b32.xlu0 %v684, 20
    %v1149 = vpop.permute.xlu0 %1148
    %1150 = vrot.lane.b32.xlu0 %v686, 20
    %v1151 = vpop.permute.xlu0 %1150
    %1152 = vrot.lane.b32.xlu0 %v689, 20
    %v1153 = vpop.permute.xlu0 %1152
    %1154 = vrot.lane.b32.xlu0 %v691, 20
    %v1155 = vpop.permute.xlu0 %1154
    %1156 = vrot.lane.b32.xlu0 %v694, 20
    %v1157 = vpop.permute.xlu0 %1156
    %1158 = vrot.lane.b32.xlu0 %v696, 20
    %v1159 = vpop.permute.xlu0 %1158
    %1160 = vrot.lane.b32.xlu0 %v699, 20
    %v1161 = vpop.permute.xlu0 %1160
    %1162 = vrot.lane.b32.xlu0 %v701, 20
    %v1163 = vpop.permute.xlu0 %1162
    %1164 = vrot.lane.b32.xlu0 %v704, 20
    %v1165 = vpop.permute.xlu0 %1164
    %1166 = vrot.lane.b32.xlu0 %v706, 20
    %v1167 = vpop.permute.xlu0 %1166
    %1168 = vrot.lane.b32.xlu0 %v709, 20
    %v1169 = vpop.permute.xlu0 %1168
    %1170 = vrot.lane.b32.xlu0 %v711, 20
    %v1171 = vpop.permute.xlu0 %1170
    %1172 = vrot.lane.b32.xlu0 %v1109, 20
    %v1173 = vpop.permute.xlu0 %1172
    %1174 = vrot.lane.b32.xlu0 %v1111, 20
    %v1175 = vpop.permute.xlu0 %1174
    %vm1208 = vcmask 195744
    %1209 = vst.msk [vmem:[#allocation3] sm:$0xff] %vm1208, %v1113
    %1210 = vst.msk [vmem:[#allocation3 + $0x8] sm:$0xff] %vm1208, %v1115
    %1211 = vst.msk [vmem:[#allocation3 + $0x10] sm:$0xff] %vm1208, %v1117
    %1212 = vst.msk [vmem:[#allocation3 + $0x18] sm:$0xff] %vm1208, %v1119
    %1213 = vst.msk [vmem:[#allocation3 + $0x20] sm:$0xff] %vm1208, %v1121
    %1214 = vst.msk [vmem:[#allocation3 + $0x28] sm:$0xff] %vm1208, %v1123
    %1215 = vst.msk [vmem:[#allocation3 + $0x30] sm:$0xff] %vm1208, %v1125
    %1216 = vst.msk [vmem:[#allocation3 + $0x38] sm:$0xff] %vm1208, %v1127
    %1217 = vst.msk [vmem:[#allocation3 + $0x40] sm:$0xff] %vm1208, %v1129
    %1218 = vst.msk [vmem:[#allocation3 + $0x48] sm:$0xff] %vm1208, %v1131
    %1219 = vst.msk [vmem:[#allocation3 + $0x50] sm:$0xff] %vm1208, %v1133
    %1220 = vst.msk [vmem:[#allocation3 + $0x58] sm:$0xff] %vm1208, %v1135
    %1221 = vst.msk [vmem:[#allocation3 + $0x60] sm:$0xff] %vm1208, %v1137
    %1222 = vst.msk [vmem:[#allocation3 + $0x68] sm:$0xff] %vm1208, %v1139
    %1223 = vst.msk [vmem:[#allocation3 + $0x70] sm:$0xff] %vm1208, %v1141
    %1224 = vst.msk [vmem:[#allocation3 + $0x78] sm:$0xff] %vm1208, %v1143
    %1225 = vst.msk [vmem:[#allocation3 + $0x80] sm:$0xff] %vm1208, %v1145
    %1226 = vst.msk [vmem:[#allocation3 + $0x88] sm:$0xff] %vm1208, %v1147
    %1227 = vst.msk [vmem:[#allocation3 + $0x90] sm:$0xff] %vm1208, %v1149
    %1228 = vst.msk [vmem:[#allocation3 + $0x98] sm:$0xff] %vm1208, %v1151
    %1229 = vst.msk [vmem:[#allocation3 + $0xa0] sm:$0xff] %vm1208, %v1153
    %1230 = vst.msk [vmem:[#allocation3 + $0xa8] sm:$0xff] %vm1208, %v1155
    %1231 = vst.msk [vmem:[#allocation3 + $0xb0] sm:$0xff] %vm1208, %v1157
    %1232 = vst.msk [vmem:[#allocation3 + $0xb8] sm:$0xff] %vm1208, %v1159
    %1233 = vst.msk [vmem:[#allocation3 + $0xc0] sm:$0xff] %vm1208, %v1161
    %1234 = vst.msk [vmem:[#allocation3 + $0xc8] sm:$0xff] %vm1208, %v1163
    %1235 = vst.msk [vmem:[#allocation3 + $0xd0] sm:$0xff] %vm1208, %v1165
    %1236 = vst.msk [vmem:[#allocation3 + $0xd8] sm:$0xff] %vm1208, %v1167
    %1237 = vst.msk [vmem:[#allocation3 + $0xe0] sm:$0xff] %vm1208, %v1169
    %1238 = vst.msk [vmem:[#allocation3 + $0xe8] sm:$0xff] %vm1208, %v1171
    %1239 = vst.msk [vmem:[#allocation3 + $0xf0] sm:$0xff] %vm1208, %v1173
    %1240 = vst.msk [vmem:[#allocation3 + $0xf8] sm:$0xff] %vm1208, %v1175
    %1243 = vrot.lane.b32.xlu0 %v293, 24
    %v1244 = vpop.permute.xlu0 %1243
    %1245 = vrot.lane.b32.xlu0 %v294, 24
    %v1246 = vpop.permute.xlu0 %1245
    %1247 = vrot.lane.b32.xlu0 %v296, 24
    %v1248 = vpop.permute.xlu0 %1247
    %1249 = vrot.lane.b32.xlu0 %v297, 24
    %v1250 = vpop.permute.xlu0 %1249
    %1251 = vrot.lane.b32.xlu0 %v299, 24
    %v1252 = vpop.permute.xlu0 %1251
    %1253 = vrot.lane.b32.xlu0 %v300, 24
    %v1254 = vpop.permute.xlu0 %1253
    %1255 = vrot.lane.b32.xlu0 %v302, 24
    %v1256 = vpop.permute.xlu0 %1255
    %1257 = vrot.lane.b32.xlu0 %v303, 24
    %v1258 = vpop.permute.xlu0 %1257
    %1259 = vrot.lane.b32.xlu0 %v305, 24
    %v1260 = vpop.permute.xlu0 %1259
    %1261 = vrot.lane.b32.xlu0 %v306, 24
    %v1262 = vpop.permute.xlu0 %1261
    %1263 = vrot.lane.b32.xlu0 %v308, 24
    %v1264 = vpop.permute.xlu0 %1263
    %1265 = vrot.lane.b32.xlu0 %v309, 24
    %v1266 = vpop.permute.xlu0 %1265
    %1267 = vrot.lane.b32.xlu0 %v311, 24
    %v1268 = vpop.permute.xlu0 %1267
    %1269 = vrot.lane.b32.xlu0 %v312, 24
    %v1270 = vpop.permute.xlu0 %1269
    %1271 = vrot.lane.b32.xlu0 %v314, 24
    %v1272 = vpop.permute.xlu0 %1271
    %1273 = vrot.lane.b32.xlu0 %v315, 24
    %v1274 = vpop.permute.xlu0 %1273
    %1275 = vrot.lane.b32.xlu0 %v317, 24
    %v1276 = vpop.permute.xlu0 %1275
    %1277 = vrot.lane.b32.xlu0 %v318, 24
    %v1278 = vpop.permute.xlu0 %1277
    %1279 = vrot.lane.b32.xlu0 %v320, 24
    %v1280 = vpop.permute.xlu0 %1279
    %1281 = vrot.lane.b32.xlu0 %v321, 24
    %v1282 = vpop.permute.xlu0 %1281
    %1283 = vrot.lane.b32.xlu0 %v323, 24
    %v1284 = vpop.permute.xlu0 %1283
    %1285 = vrot.lane.b32.xlu0 %v324, 24
    %v1286 = vpop.permute.xlu0 %1285
    %1287 = vrot.lane.b32.xlu0 %v326, 24
    %v1288 = vpop.permute.xlu0 %1287
    %1289 = vrot.lane.b32.xlu0 %v327, 24
    %v1290 = vpop.permute.xlu0 %1289
    %1291 = vrot.lane.b32.xlu0 %v329, 24
    %v1292 = vpop.permute.xlu0 %1291
    %1293 = vrot.lane.b32.xlu0 %v330, 24
    %v1294 = vpop.permute.xlu0 %1293
    %1295 = vrot.lane.b32.xlu0 %v332, 24
    %v1296 = vpop.permute.xlu0 %1295
    %1297 = vrot.lane.b32.xlu0 %v333, 24
    %v1298 = vpop.permute.xlu0 %1297
    %1299 = vrot.lane.b32.xlu0 %v335, 24
    %v1300 = vpop.permute.xlu0 %1299
    %1301 = vrot.lane.b32.xlu0 %v336, 24
    %v1302 = vpop.permute.xlu0 %1301
    %1303 = vrot.lane.b32.xlu0 %v338, 24
    %v1304 = vpop.permute.xlu0 %1303
    %1305 = vrot.lane.b32.xlu0 %v339, 24
    %v1306 = vpop.permute.xlu0 %1305
    %vm1339 = vcmask 228544
    %1340 = vst.msk [vmem:[#allocation3] sm:$0xff] %vm1339, %v1244
    %1341 = vst.msk [vmem:[#allocation3 + $0x8] sm:$0xff] %vm1339, %v1246
    %1342 = vst.msk [vmem:[#allocation3 + $0x10] sm:$0xff] %vm1339, %v1248
    %1343 = vst.msk [vmem:[#allocation3 + $0x18] sm:$0xff] %vm1339, %v1250
    %1344 = vst.msk [vmem:[#allocation3 + $0x20] sm:$0xff] %vm1339, %v1252
    %1345 = vst.msk [vmem:[#allocation3 + $0x28] sm:$0xff] %vm1339, %v1254
    %1346 = vst.msk [vmem:[#allocation3 + $0x30] sm:$0xff] %vm1339, %v1256
    %1347 = vst.msk [vmem:[#allocation3 + $0x38] sm:$0xff] %vm1339, %v1258
    %1348 = vst.msk [vmem:[#allocation3 + $0x40] sm:$0xff] %vm1339, %v1260
    %1349 = vst.msk [vmem:[#allocation3 + $0x48] sm:$0xff] %vm1339, %v1262
    %1350 = vst.msk [vmem:[#allocation3 + $0x50] sm:$0xff] %vm1339, %v1264
    %1351 = vst.msk [vmem:[#allocation3 + $0x58] sm:$0xff] %vm1339, %v1266
    %1352 = vst.msk [vmem:[#allocation3 + $0x60] sm:$0xff] %vm1339, %v1268
    %1353 = vst.msk [vmem:[#allocation3 + $0x68] sm:$0xff] %vm1339, %v1270
    %1354 = vst.msk [vmem:[#allocation3 + $0x70] sm:$0xff] %vm1339, %v1272
    %1355 = vst.msk [vmem:[#allocation3 + $0x78] sm:$0xff] %vm1339, %v1274
    %1356 = vst.msk [vmem:[#allocation3 + $0x80] sm:$0xff] %vm1339, %v1276
    %1357 = vst.msk [vmem:[#allocation3 + $0x88] sm:$0xff] %vm1339, %v1278
    %1358 = vst.msk [vmem:[#allocation3 + $0x90] sm:$0xff] %vm1339, %v1280
    %1359 = vst.msk [vmem:[#allocation3 + $0x98] sm:$0xff] %vm1339, %v1282
    %1360 = vst.msk [vmem:[#allocation3 + $0xa0] sm:$0xff] %vm1339, %v1284
    %1361 = vst.msk [vmem:[#allocation3 + $0xa8] sm:$0xff] %vm1339, %v1286
    %1362 = vst.msk [vmem:[#allocation3 + $0xb0] sm:$0xff] %vm1339, %v1288
    %1363 = vst.msk [vmem:[#allocation3 + $0xb8] sm:$0xff] %vm1339, %v1290
    %1364 = vst.msk [vmem:[#allocation3 + $0xc0] sm:$0xff] %vm1339, %v1292
    %1365 = vst.msk [vmem:[#allocation3 + $0xc8] sm:$0xff] %vm1339, %v1294
    %1366 = vst.msk [vmem:[#allocation3 + $0xd0] sm:$0xff] %vm1339, %v1296
    %1367 = vst.msk [vmem:[#allocation3 + $0xd8] sm:$0xff] %vm1339, %v1298
    %1368 = vst.msk [vmem:[#allocation3 + $0xe0] sm:$0xff] %vm1339, %v1300
    %1369 = vst.msk [vmem:[#allocation3 + $0xe8] sm:$0xff] %vm1339, %v1302
    %1370 = vst.msk [vmem:[#allocation3 + $0xf0] sm:$0xff] %vm1339, %v1304
    %1371 = vst.msk [vmem:[#allocation3 + $0xf8] sm:$0xff] %vm1339, %v1306
    %v1373 = vrot.slane %v338, 1
    %v1374 = vrot.slane %v339, 1
    %v1375 = vsel %vm421, %v1373, %v1374
    %v1376 = vrot.slane %v340, 1
    %v1377 = vsel %vm421, %v1374, %v1376
    %1378 = vrot.lane.b32.xlu0 %v434, 28
    %v1379 = vpop.permute.xlu0 %1378
    %1380 = vrot.lane.b32.xlu0 %v436, 28
    %v1381 = vpop.permute.xlu0 %1380
    %1382 = vrot.lane.b32.xlu0 %v439, 28
    %v1383 = vpop.permute.xlu0 %1382
    %1384 = vrot.lane.b32.xlu0 %v441, 28
    %v1385 = vpop.permute.xlu0 %1384
    %1386 = vrot.lane.b32.xlu0 %v444, 28
    %v1387 = vpop.permute.xlu0 %1386
    %1388 = vrot.lane.b32.xlu0 %v446, 28
    %v1389 = vpop.permute.xlu0 %1388
    %1390 = vrot.lane.b32.xlu0 %v449, 28
    %v1391 = vpop.permute.xlu0 %1390
    %1392 = vrot.lane.b32.xlu0 %v451, 28
    %v1393 = vpop.permute.xlu0 %1392
    %1394 = vrot.lane.b32.xlu0 %v454, 28
    %v1395 = vpop.permute.xlu0 %1394
    %1396 = vrot.lane.b32.xlu0 %v456, 28
    %v1397 = vpop.permute.xlu0 %1396
    %1398 = vrot.lane.b32.xlu0 %v459, 28
    %v1399 = vpop.permute.xlu0 %1398
    %1400 = vrot.lane.b32.xlu0 %v461, 28
    %v1401 = vpop.permute.xlu0 %1400
    %1402 = vrot.lane.b32.xlu0 %v464, 28
    %v1403 = vpop.permute.xlu0 %1402
    %1404 = vrot.lane.b32.xlu0 %v466, 28
    %v1405 = vpop.permute.xlu0 %1404
    %1406 = vrot.lane.b32.xlu0 %v469, 28
    %v1407 = vpop.permute.xlu0 %1406
    %1408 = vrot.lane.b32.xlu0 %v471, 28
    %v1409 = vpop.permute.xlu0 %1408
    %1410 = vrot.lane.b32.xlu0 %v474, 28
    %v1411 = vpop.permute.xlu0 %1410
    %1412 = vrot.lane.b32.xlu0 %v476, 28
    %v1413 = vpop.permute.xlu0 %1412
    %1414 = vrot.lane.b32.xlu0 %v479, 28
    %v1415 = vpop.permute.xlu0 %1414
    %1416 = vrot.lane.b32.xlu0 %v481, 28
    %v1417 = vpop.permute.xlu0 %1416
    %1418 = vrot.lane.b32.xlu0 %v484, 28
    %v1419 = vpop.permute.xlu0 %1418
    %1420 = vrot.lane.b32.xlu0 %v486, 28
    %v1421 = vpop.permute.xlu0 %1420
    %1422 = vrot.lane.b32.xlu0 %v489, 28
    %v1423 = vpop.permute.xlu0 %1422
    %1424 = vrot.lane.b32.xlu0 %v491, 28
    %v1425 = vpop.permute.xlu0 %1424
    %1426 = vrot.lane.b32.xlu0 %v494, 28
    %v1427 = vpop.permute.xlu0 %1426
    %1428 = vrot.lane.b32.xlu0 %v496, 28
    %v1429 = vpop.permute.xlu0 %1428
    %1430 = vrot.lane.b32.xlu0 %v499, 28
    %v1431 = vpop.permute.xlu0 %1430
    %1432 = vrot.lane.b32.xlu0 %v501, 28
    %v1433 = vpop.permute.xlu0 %1432
    %1434 = vrot.lane.b32.xlu0 %v975, 28
    %v1435 = vpop.permute.xlu0 %1434
    %1436 = vrot.lane.b32.xlu0 %v977, 28
    %v1437 = vpop.permute.xlu0 %1436
    %1438 = vrot.lane.b32.xlu0 %v1375, 28
    %v1439 = vpop.permute.xlu0 %1438
    %1440 = vrot.lane.b32.xlu0 %v1377, 28
    %v1441 = vpop.permute.xlu0 %1440
    %vm1474 = vcmask 261344
    %1475 = vst.msk [vmem:[#allocation3] sm:$0xff] %vm1474, %v1379
    %1476 = vst.msk [vmem:[#allocation3 + $0x8] sm:$0xff] %vm1474, %v1381
    %1477 = vst.msk [vmem:[#allocation3 + $0x10] sm:$0xff] %vm1474, %v1383
    %1478 = vst.msk [vmem:[#allocation3 + $0x18] sm:$0xff] %vm1474, %v1385
    %1479 = vst.msk [vmem:[#allocation3 + $0x20] sm:$0xff] %vm1474, %v1387
    %1480 = vst.msk [vmem:[#allocation3 + $0x28] sm:$0xff] %vm1474, %v1389
    %1481 = vst.msk [vmem:[#allocation3 + $0x30] sm:$0xff] %vm1474, %v1391
    %1482 = vst.msk [vmem:[#allocation3 + $0x38] sm:$0xff] %vm1474, %v1393
    %1483 = vst.msk [vmem:[#allocation3 + $0x40] sm:$0xff] %vm1474, %v1395
    %1484 = vst.msk [vmem:[#allocation3 + $0x48] sm:$0xff] %vm1474, %v1397
    %1485 = vst.msk [vmem:[#allocation3 + $0x50] sm:$0xff] %vm1474, %v1399
    %1486 = vst.msk [vmem:[#allocation3 + $0x58] sm:$0xff] %vm1474, %v1401
    %1487 = vst.msk [vmem:[#allocation3 + $0x60] sm:$0xff] %vm1474, %v1403
    %1488 = vst.msk [vmem:[#allocation3 + $0x68] sm:$0xff] %vm1474, %v1405
    %1489 = vst.msk [vmem:[#allocation3 + $0x70] sm:$0xff] %vm1474, %v1407
    %1490 = vst.msk [vmem:[#allocation3 + $0x78] sm:$0xff] %vm1474, %v1409
    %1491 = vst.msk [vmem:[#allocation3 + $0x80] sm:$0xff] %vm1474, %v1411
    %1492 = vst.msk [vmem:[#allocation3 + $0x88] sm:$0xff] %vm1474, %v1413
    %1493 = vst.msk [vmem:[#allocation3 + $0x90] sm:$0xff] %vm1474, %v1415
    %1494 = vst.msk [vmem:[#allocation3 + $0x98] sm:$0xff] %vm1474, %v1417
    %1495 = vst.msk [vmem:[#allocation3 + $0xa0] sm:$0xff] %vm1474, %v1419
    %1496 = vst.msk [vmem:[#allocation3 + $0xa8] sm:$0xff] %vm1474, %v1421
    %1497 = vst.msk [vmem:[#allocation3 + $0xb0] sm:$0xff] %vm1474, %v1423
    %1498 = vst.msk [vmem:[#allocation3 + $0xb8] sm:$0xff] %vm1474, %v1425
    %1499 = vst.msk [vmem:[#allocation3 + $0xc0] sm:$0xff] %vm1474, %v1427
    %1500 = vst.msk [vmem:[#allocation3 + $0xc8] sm:$0xff] %vm1474, %v1429
    %1501 = vst.msk [vmem:[#allocation3 + $0xd0] sm:$0xff] %vm1474, %v1431
    %1502 = vst.msk [vmem:[#allocation3 + $0xd8] sm:$0xff] %vm1474, %v1433
    %1503 = vst.msk [vmem:[#allocation3 + $0xe0] sm:$0xff] %vm1474, %v1435
    %1504 = vst.msk [vmem:[#allocation3 + $0xe8] sm:$0xff] %vm1474, %v1437
    %1505 = vst.msk [vmem:[#allocation3 + $0xf0] sm:$0xff] %vm1474, %v1439
    %1506 = vst.msk [vmem:[#allocation3 + $0xf8] sm:$0xff] %vm1474, %v1441
    %v1507 = vrot.slane %v338, 2
    %v1508 = vrot.slane %v339, 2
    %v1509 = vsel %vm631, %v1507, %v1508
    %v1510 = vrot.slane %v340, 2
    %v1511 = vsel %vm631, %v1508, %v1510
    %1512 = vrot.lane.b32.xlu0 %v644, 32
    %v1513 = vpop.permute.xlu0 %1512
    %1514 = vrot.lane.b32.xlu0 %v646, 32
    %v1515 = vpop.permute.xlu0 %1514
    %1516 = vrot.lane.b32.xlu0 %v649, 32
    %v1517 = vpop.permute.xlu0 %1516
    %1518 = vrot.lane.b32.xlu0 %v651, 32
    %v1519 = vpop.permute.xlu0 %1518
    %1520 = vrot.lane.b32.xlu0 %v654, 32
    %v1521 = vpop.permute.xlu0 %1520
    %1522 = vrot.lane.b32.xlu0 %v656, 32
    %v1523 = vpop.permute.xlu0 %1522
    %1524 = vrot.lane.b32.xlu0 %v659, 32
    %v1525 = vpop.permute.xlu0 %1524
    %1526 = vrot.lane.b32.xlu0 %v661, 32
    %v1527 = vpop.permute.xlu0 %1526
    %1528 = vrot.lane.b32.xlu0 %v664, 32
    %v1529 = vpop.permute.xlu0 %1528
    %1530 = vrot.lane.b32.xlu0 %v666, 32
    %v1531 = vpop.permute.xlu0 %1530
    %1532 = vrot.lane.b32.xlu0 %v669, 32
    %v1533 = vpop.permute.xlu0 %1532
    %1534 = vrot.lane.b32.xlu0 %v671, 32
    %v1535 = vpop.permute.xlu0 %1534
    %1536 = vrot.lane.b32.xlu0 %v674, 32
    %v1537 = vpop.permute.xlu0 %1536
    %1538 = vrot.lane.b32.xlu0 %v676, 32
    %v1539 = vpop.permute.xlu0 %1538
    %1540 = vrot.lane.b32.xlu0 %v679, 32
    %v1541 = vpop.permute.xlu0 %1540
    %1542 = vrot.lane.b32.xlu0 %v681, 32
    %v1543 = vpop.permute.xlu0 %1542
    %1544 = vrot.lane.b32.xlu0 %v684, 32
    %v1545 = vpop.permute.xlu0 %1544
    %1546 = vrot.lane.b32.xlu0 %v686, 32
    %v1547 = vpop.permute.xlu0 %1546
    %1548 = vrot.lane.b32.xlu0 %v689, 32
    %v1549 = vpop.permute.xlu0 %1548
    %1550 = vrot.lane.b32.xlu0 %v691, 32
    %v1551 = vpop.permute.xlu0 %1550
    %1552 = vrot.lane.b32.xlu0 %v694, 32
    %v1553 = vpop.permute.xlu0 %1552
    %1554 = vrot.lane.b32.xlu0 %v696, 32
    %v1555 = vpop.permute.xlu0 %1554
    %1556 = vrot.lane.b32.xlu0 %v699, 32
    %v1557 = vpop.permute.xlu0 %1556
    %1558 = vrot.lane.b32.xlu0 %v701, 32
    %v1559 = vpop.permute.xlu0 %1558
    %1560 = vrot.lane.b32.xlu0 %v704, 32
    %v1561 = vpop.permute.xlu0 %1560
    %1562 = vrot.lane.b32.xlu0 %v706, 32
    %v1563 = vpop.permute.xlu0 %1562
    %1564 = vrot.lane.b32.xlu0 %v709, 32
    %v1565 = vpop.permute.xlu0 %1564
    %1566 = vrot.lane.b32.xlu0 %v711, 32
    %v1567 = vpop.permute.xlu0 %1566
    %1568 = vrot.lane.b32.xlu0 %v1109, 32
    %v1569 = vpop.permute.xlu0 %1568
    %1570 = vrot.lane.b32.xlu0 %v1111, 32
    %v1571 = vpop.permute.xlu0 %1570
    %1572 = vrot.lane.b32.xlu0 %v1509, 32
    %v1573 = vpop.permute.xlu0 %1572
    %1574 = vrot.lane.b32.xlu0 %v1511, 32
    %v1575 = vpop.permute.xlu0 %1574
    %vm1608 = vcmask 294144
    %1609 = vst.msk [vmem:[#allocation3] sm:$0xff] %vm1608, %v1513
    %1610 = vst.msk [vmem:[#allocation3 + $0x8] sm:$0xff] %vm1608, %v1515
    %1611 = vst.msk [vmem:[#allocation3 + $0x10] sm:$0xff] %vm1608, %v1517
    %1612 = vst.msk [vmem:[#allocation3 + $0x18] sm:$0xff] %vm1608, %v1519
    %1613 = vst.msk [vmem:[#allocation3 + $0x20] sm:$0xff] %vm1608, %v1521
    %1614 = vst.msk [vmem:[#allocation3 + $0x28] sm:$0xff] %vm1608, %v1523
    %1615 = vst.msk [vmem:[#allocation3 + $0x30] sm:$0xff] %vm1608, %v1525
    %1616 = vst.msk [vmem:[#allocation3 + $0x38] sm:$0xff] %vm1608, %v1527
    %1617 = vst.msk [vmem:[#allocation3 + $0x40] sm:$0xff] %vm1608, %v1529
    %1618 = vst.msk [vmem:[#allocation3 + $0x48] sm:$0xff] %vm1608, %v1531
    %1619 = vst.msk [vmem:[#allocation3 + $0x50] sm:$0xff] %vm1608, %v1533
    %1620 = vst.msk [vmem:[#allocation3 + $0x58] sm:$0xff] %vm1608, %v1535
    %1621 = vst.msk [vmem:[#allocation3 + $0x60] sm:$0xff] %vm1608, %v1537
    %1622 = vst.msk [vmem:[#allocation3 + $0x68] sm:$0xff] %vm1608, %v1539
    %1623 = vst.msk [vmem:[#allocation3 + $0x70] sm:$0xff] %vm1608, %v1541
    %1624 = vst.msk [vmem:[#allocation3 + $0x78] sm:$0xff] %vm1608, %v1543
    %1625 = vst.msk [vmem:[#allocation3 + $0x80] sm:$0xff] %vm1608, %v1545
    %1626 = vst.msk [vmem:[#allocation3 + $0x88] sm:$0xff] %vm1608, %v1547
    %1627 = vst.msk [vmem:[#allocation3 + $0x90] sm:$0xff] %vm1608, %v1549
    %1628 = vst.msk [vmem:[#allocation3 + $0x98] sm:$0xff] %vm1608, %v1551
    %1629 = vst.msk [vmem:[#allocation3 + $0xa0] sm:$0xff] %vm1608, %v1553
    %1630 = vst.msk [vmem:[#allocation3 + $0xa8] sm:$0xff] %vm1608, %v1555
    %1631 = vst.msk [vmem:[#allocation3 + $0xb0] sm:$0xff] %vm1608, %v1557
    %1632 = vst.msk [vmem:[#allocation3 + $0xb8] sm:$0xff] %vm1608, %v1559
    %1633 = vst.msk [vmem:[#allocation3 + $0xc0] sm:$0xff] %vm1608, %v1561
    %1634 = vst.msk [vmem:[#allocation3 + $0xc8] sm:$0xff] %vm1608, %v1563
    %1635 = vst.msk [vmem:[#allocation3 + $0xd0] sm:$0xff] %vm1608, %v1565
    %1636 = vst.msk [vmem:[#allocation3 + $0xd8] sm:$0xff] %vm1608, %v1567
    %1637 = vst.msk [vmem:[#allocation3 + $0xe0] sm:$0xff] %vm1608, %v1569
    %1638 = vst.msk [vmem:[#allocation3 + $0xe8] sm:$0xff] %vm1608, %v1571
    %1639 = vst.msk [vmem:[#allocation3 + $0xf0] sm:$0xff] %vm1608, %v1573
    %1640 = vst.msk [vmem:[#allocation3 + $0xf8] sm:$0xff] %vm1608, %v1575
    %v1641 = vld [vmem:[%s1] sm:$0xff]
    %v1642 = vld [vmem:[#allocation3] sm:$0xff]
    %v1643 = vld [vmem:[#allocation3 + $0x8] sm:$0xff]
    %v1644 = vld [vmem:[#allocation3 + $0x10] sm:$0xff]
    %v1645 = vld [vmem:[#allocation3 + $0x18] sm:$0xff]
    %v1646 = vld [vmem:[#allocation3 + $0x20] sm:$0xff]
    %v1647 = vld [vmem:[#allocation3 + $0x28] sm:$0xff]
    %v1648 = vld [vmem:[#allocation3 + $0x30] sm:$0xff]
    %v1649 = vld [vmem:[#allocation3 + $0x38] sm:$0xff]
    %v1650 = vld [vmem:[#allocation3 + $0x40] sm:$0xff]
    %v1651 = vld [vmem:[#allocation3 + $0x48] sm:$0xff]
    %v1652 = vld [vmem:[#allocation3 + $0x50] sm:$0xff]
    %v1653 = vld [vmem:[#allocation3 + $0x58] sm:$0xff]
    %v1654 = vld [vmem:[#allocation3 + $0x60] sm:$0xff]
    %v1655 = vld [vmem:[#allocation3 + $0x68] sm:$0xff]
    %v1656 = vld [vmem:[#allocation3 + $0x70] sm:$0xff]
    %v1657 = vld [vmem:[#allocation3 + $0x78] sm:$0xff]
    %v1658 = vld [vmem:[#allocation3 + $0x80] sm:$0xff]
    %v1659 = vld [vmem:[#allocation3 + $0x88] sm:$0xff]
    %v1660 = vld [vmem:[#allocation3 + $0x90] sm:$0xff]
    %v1661 = vld [vmem:[#allocation3 + $0x98] sm:$0xff]
    %v1662 = vld [vmem:[#allocation3 + $0xa0] sm:$0xff]
    %v1663 = vld [vmem:[#allocation3 + $0xa8] sm:$0xff]
    %v1664 = vld [vmem:[#allocation3 + $0xb0] sm:$0xff]
    %v1665 = vld [vmem:[#allocation3 + $0xb8] sm:$0xff]
    %v1666 = vld [vmem:[#allocation3 + $0xc0] sm:$0xff]
    %v1667 = vld [vmem:[#allocation3 + $0xc8] sm:$0xff]
    %v1668 = vld [vmem:[#allocation3 + $0xd0] sm:$0xff]
    %v1669 = vld [vmem:[#allocation3 + $0xd8] sm:$0xff]
    %v1670 = vld [vmem:[#allocation3 + $0xe0] sm:$0xff]
    %v1671 = vld [vmem:[#allocation3 + $0xe8] sm:$0xff]
    %v1672 = vld [vmem:[#allocation3 + $0xf0] sm:$0xff]
    %v1673 = vld [vmem:[#allocation3 + $0xf8] sm:$0xff]
    %v1674 = vld [vmem:[%s2] sm:$0xff]
    %v1675 = vld [vmem:[%s2 + $0x8] sm:$0xff]
    %v1676 = vmul.f32 %v1674, 0.5
    %v1677 = vmul.f32 %v1675, 0.5
    %vm1678 = vcmask 302080
    %v1680 = vsel %vm1678, %v1641, 0
    %v1683 = vsel %vm1678, %v1642, 0
    %v1686 = vsel %vm1678, %v1643, 0
    %v1689 = vsel %vm1678, %v1644, 0
    %v1692 = vsel %vm1678, %v1645, 0
    %v1695 = vsel %vm1678, %v1646, 0
    %v1698 = vsel %vm1678, %v1647, 0
    %v1701 = vsel %vm1678, %v1648, 0
    %v1704 = vsel %vm1678, %v1649, 0
    %v1707 = vsel %vm1678, %v1650, 0
    %v1710 = vsel %vm1678, %v1651, 0
    %v1713 = vsel %vm1678, %v1652, 0
    %v1716 = vsel %vm1678, %v1653, 0
    %v1719 = vsel %vm1678, %v1654, 0
    %v1722 = vsel %vm1678, %v1655, 0
    %v1725 = vsel %vm1678, %v1656, 0
    %v1728 = vsel %vm1678, %v1657, 0
    %v1731 = vsel %vm1678, %v1658, 0
    %v1734 = vsel %vm1678, %v1659, 0
    %v1737 = vsel %vm1678, %v1660, 0
    %v1740 = vsel %vm1678, %v1661, 0
    %v1743 = vsel %vm1678, %v1662, 0
    %v1746 = vsel %vm1678, %v1663, 0
    %v1749 = vsel %vm1678, %v1664, 0
    %v1752 = vsel %vm1678, %v1665, 0
    %v1755 = vsel %vm1678, %v1666, 0
    %v1758 = vsel %vm1678, %v1667, 0
    %v1761 = vsel %vm1678, %v1668, 0
    %v1764 = vsel %vm1678, %v1669, 0
    %v1767 = vsel %vm1678, %v1670, 0
    %v1770 = vsel %vm1678, %v1671, 0
    %v1773 = vsel %vm1678, %v1672, 0
    %v1776 = vsel %vm1678, %v1673, 0
    %1778 = vmatprep.subr.mxu0 0.0
    %1779 = vmatpush1.xpose.msra.mxu0 %v1683
    %1780 = vmatprep.subr.mxu0 0.0
    %1781 = vmatpush1.xpose.msra.mxu0 %v1686
    %1782 = vmatprep.subr.mxu0 0.0
    %1783 = vmatpush1.xpose.msra.mxu0 %v1689
    %1784 = vmatprep.subr.mxu0 0.0
    %1785 = vmatpush1.xpose.msra.mxu0 %v1692
    %1786 = vmatprep.subr.mxu0 0.0
    %1787 = vmatpush1.xpose.msra.mxu0 %v1695
    %1788 = vmatprep.subr.mxu0 0.0
    %1789 = vmatpush1.xpose.msra.mxu0 %v1698
    %1790 = vmatprep.subr.mxu0 0.0
    %1791 = vmatpush1.xpose.msra.mxu0 %v1701
    %1792 = vmatprep.subr.mxu0 0.0
    %1793 = vmatpush1.xpose.msra.mxu0 %v1704
    %1794 = vmatprep.subr.mxu0 0.0
    %1795 = vmatpush1.xpose.msra.mxu0 %v1707
    %1796 = vmatprep.subr.mxu0 0.0
    %1797 = vmatpush1.xpose.msra.mxu0 %v1710
    %1798 = vmatprep.subr.mxu0 0.0
    %1799 = vmatpush1.xpose.msra.mxu0 %v1713
    %1800 = vmatprep.subr.mxu0 0.0
    %1801 = vmatpush1.xpose.msra.mxu0 %v1716
    %1802 = vmatprep.subr.mxu0 0.0
    %1803 = vmatpush1.xpose.msra.mxu0 %v1719
    %1804 = vmatprep.subr.mxu0 0.0
    %1805 = vmatpush1.xpose.msra.mxu0 %v1722
    %1806 = vmatprep.subr.mxu0 0.0
    %1807 = vmatpush1.xpose.msra.mxu0 %v1725
    %1808 = vmatprep.subr.mxu0 0.0
    %1809 = vmatpush1.xpose.msra.mxu0 %v1728
    %1810 = vmatprep.subr.mxu0 0.0
    %1811 = vmatpush1.xpose.msra.mxu0 %v1731
    %1812 = vmatprep.subr.mxu0 0.0
    %1813 = vmatpush1.xpose.msra.mxu0 %v1734
    %1814 = vmatprep.subr.mxu0 0.0
    %1815 = vmatpush1.xpose.msra.mxu0 %v1737
    %1816 = vmatprep.subr.mxu0 0.0
    %1817 = vmatpush1.xpose.msra.mxu0 %v1740
    %1818 = vmatprep.subr.mxu0 0.0
    %1819 = vmatpush1.xpose.msra.mxu0 %v1743
    %1820 = vmatprep.subr.mxu0 0.0
    %1821 = vmatpush1.xpose.msra.mxu0 %v1746
    %1822 = vmatprep.subr.mxu0 0.0
    %1823 = vmatpush1.xpose.msra.mxu0 %v1749
    %1824 = vmatprep.subr.mxu0 0.0
    %1825 = vmatpush1.xpose.msra.mxu0 %v1752
    %1826 = vmatprep.subr.mxu0 0.0
    %1827 = vmatpush1.xpose.msra.mxu0 %v1755
    %1828 = vmatprep.subr.mxu0 0.0
    %1829 = vmatpush1.xpose.msra.mxu0 %v1758
    %1830 = vmatprep.subr.mxu0 0.0
    %1831 = vmatpush1.xpose.msra.mxu0 %v1761
    %1832 = vmatprep.subr.mxu0 0.0
    %1833 = vmatpush1.xpose.msra.mxu0 %v1764
    %1834 = vmatprep.subr.mxu0 0.0
    %1835 = vmatpush1.xpose.msra.mxu0 %v1767
    %1836 = vmatprep.subr.mxu0 0.0
    %1837 = vmatpush1.xpose.msra.mxu0 %v1770
    %1838 = vmatprep.subr.mxu0 0.0
    %1839 = vmatpush1.xpose.msra.mxu0 %v1773
    %1840 = vmatprep.subr.mxu0 0.0
    %1841 = vmatpush1.xpose.msra.mxu0 %v1776
    %1842 = vmatprep.mubr.f32.mxu0 0.0
    %1843 = vmatmul.mubr.f32.gmra.mrb[0].mxu0 %v1680
    %v1844 = vpop.f32.mrb[0].mxu0
    %v1845 = vadd.f32 %v1676, %v1844
    %v1846 = vpop.f32.mrb[0].mxu0
    %v1847 = vadd.f32 %v1677, %v1846
    %1848 = vdwg.mxu0
    %1849 = vst [vmem:[#allocation4] sm:$0xff] %v1845
    %1850 = vst [vmem:[#allocation4 + $0x8] sm:$0xff] %v1847
    %s1851 = scalar_lea.vmem [#allocation2], 432
    %v1852 = vld [vmem:[%s1851] sm:$0xff]
    %v1853 = vld [vmem:[%s1851 + $0x8] sm:$0xff]
    %v1854 = vld [vmem:[%s1851 + $0x10] sm:$0x3]
    %v1855 = vld [vmem:[%s1851 + $0x18] sm:$0xff]
    %v1856 = vld [vmem:[%s1851 + $0x20] sm:$0xff]
    %v1857 = vld [vmem:[%s1851 + $0x28] sm:$0x3]
    %v1858 = vld [vmem:[%s1851 + $0x30] sm:$0xff]
    %v1859 = vld [vmem:[%s1851 + $0x38] sm:$0xff]
    %v1860 = vld [vmem:[%s1851 + $0x40] sm:$0x3]
    %v1861 = vld [vmem:[%s1851 + $0x48] sm:$0xff]
    %v1862 = vld [vmem:[%s1851 + $0x50] sm:$0xff]
    %v1863 = vld [vmem:[%s1851 + $0x58] sm:$0x3]
    %v1864 = vld [vmem:[%s1851 + $0x60] sm:$0xff]
    %v1865 = vld [vmem:[%s1851 + $0x68] sm:$0xff]
    %v1866 = vld [vmem:[%s1851 + $0x70] sm:$0x3]
    %v1867 = vld [vmem:[%s1851 + $0x78] sm:$0xff]
    %v1868 = vld [vmem:[%s1851 + $0x80] sm:$0xff]
    %v1869 = vld [vmem:[%s1851 + $0x88] sm:$0x3]
    %v1870 = vld [vmem:[%s1851 + $0x90] sm:$0xff]
    %v1871 = vld [vmem:[%s1851 + $0x98] sm:$0xff]
    %v1872 = vld [vmem:[%s1851 + $0xa0] sm:$0x3]
    %v1873 = vld [vmem:[%s1851 + $0xa8] sm:$0xff]
    %v1874 = vld [vmem:[%s1851 + $0xb0] sm:$0xff]
    %v1875 = vld [vmem:[%s1851 + $0xb8] sm:$0x3]
    %v1876 = vld [vmem:[%s1851 + $0xc0] sm:$0xff]
    %v1877 = vld [vmem:[%s1851 + $0xc8] sm:$0xff]
    %v1878 = vld [vmem:[%s1851 + $0xd0] sm:$0x3]
    %v1879 = vld [vmem:[%s1851 + $0xd8] sm:$0xff]
    %v1880 = vld [vmem:[%s1851 + $0xe0] sm:$0xff]
    %v1881 = vld [vmem:[%s1851 + $0xe8] sm:$0x3]
    %v1882 = vld [vmem:[%s1851 + $0xf0] sm:$0xff]
    %v1883 = vld [vmem:[%s1851 + $0xf8] sm:$0xff]
    %v1884 = vld [vmem:[%s1851 + $0x100] sm:$0x3]
    %v1885 = vld [vmem:[%s1851 + $0x108] sm:$0xff]
    %v1886 = vld [vmem:[%s1851 + $0x110] sm:$0xff]
    %v1887 = vld [vmem:[%s1851 + $0x118] sm:$0x3]
    %v1888 = vld [vmem:[%s1851 + $0x120] sm:$0xff]
    %v1889 = vld [vmem:[%s1851 + $0x128] sm:$0xff]
    %v1890 = vld [vmem:[%s1851 + $0x130] sm:$0x3]
    %v1891 = vld [vmem:[%s1851 + $0x138] sm:$0xff]
    %v1892 = vld [vmem:[%s1851 + $0x140] sm:$0xff]
    %v1893 = vld [vmem:[%s1851 + $0x148] sm:$0x3]
    %v1894 = vld [vmem:[%s1851 + $0x150] sm:$0xff]
    %v1895 = vld [vmem:[%s1851 + $0x158] sm:$0xff]
    %v1896 = vld [vmem:[%s1851 + $0x160] sm:$0x3]
    %v1897 = vld [vmem:[%s1851 + $0x168] sm:$0xff]
    %v1898 = vld [vmem:[%s1851 + $0x170] sm:$0xff]
    %v1899 = vld [vmem:[%s1851 + $0x178] sm:$0x3]
    %v1900 = vld [vmem:[%s1851 + $0x180] sm:$0xff]
    %v1901 = vld [vmem:[%s1851 + $0x188] sm:$0xff]
    %v1902 = vld [vmem:[%s1851 + $0x190] sm:$0x3]
    %v1903 = vld [vmem:[%s1851 + $0x198] sm:$0xff]
    %v1904 = vld [vmem:[%s1851 + $0x1a0] sm:$0xff]
    %v1905 = vld [vmem:[%s1851 + $0x1a8] sm:$0x3]
    %1906 = vst.msk [vmem:[#allocation3] sm:$0xff] %vm15, %v1852
    %1907 = vst.msk [vmem:[#allocation3 + $0x8] sm:$0xff] %vm15, %v1853
    %1908 = vst.msk [vmem:[#allocation3 + $0x10] sm:$0xff] %vm15, %v1855
    %1909 = vst.msk [vmem:[#allocation3 + $0x18] sm:$0xff] %vm15, %v1856
    %1910 = vst.msk [vmem:[#allocation3 + $0x20] sm:$0xff] %vm15, %v1858
    %1911 = vst.msk [vmem:[#allocation3 + $0x28] sm:$0xff] %vm15, %v1859
    %1912 = vst.msk [vmem:[#allocation3 + $0x30] sm:$0xff] %vm15, %v1861
    %1913 = vst.msk [vmem:[#allocation3 + $0x38] sm:$0xff] %vm15, %v1862
    %1914 = vst.msk [vmem:[#allocation3 + $0x40] sm:$0xff] %vm15, %v1864
    %1915 = vst.msk [vmem:[#allocation3 + $0x48] sm:$0xff] %vm15, %v1865
    %1916 = vst.msk [vmem:[#allocation3 + $0x50] sm:$0xff] %vm15, %v1867
    %1917 = vst.msk [vmem:[#allocation3 + $0x58] sm:$0xff] %vm15, %v1868
    %1918 = vst.msk [vmem:[#allocation3 + $0x60] sm:$0xff] %vm15, %v1870
    %1919 = vst.msk [vmem:[#allocation3 + $0x68] sm:$0xff] %vm15, %v1871
    %1920 = vst.msk [vmem:[#allocation3 + $0x70] sm:$0xff] %vm15, %v1873
    %1921 = vst.msk [vmem:[#allocation3 + $0x78] sm:$0xff] %vm15, %v1874
    %1922 = vst.msk [vmem:[#allocation3 + $0x80] sm:$0xff] %vm15, %v1876
    %1923 = vst.msk [vmem:[#allocation3 + $0x88] sm:$0xff] %vm15, %v1877
    %1924 = vst.msk [vmem:[#allocation3 + $0x90] sm:$0xff] %vm15, %v1879
    %1925 = vst.msk [vmem:[#allocation3 + $0x98] sm:$0xff] %vm15, %v1880
    %1926 = vst.msk [vmem:[#allocation3 + $0xa0] sm:$0xff] %vm15, %v1882
    %1927 = vst.msk [vmem:[#allocation3 + $0xa8] sm:$0xff] %vm15, %v1883
    %1928 = vst.msk [vmem:[#allocation3 + $0xb0] sm:$0xff] %vm15, %v1885
    %1929 = vst.msk [vmem:[#allocation3 + $0xb8] sm:$0xff] %vm15, %v1886
    %1930 = vst.msk [vmem:[#allocation3 + $0xc0] sm:$0xff] %vm15, %v1888
    %1931 = vst.msk [vmem:[#allocation3 + $0xc8] sm:$0xff] %vm15, %v1889
    %1932 = vst.msk [vmem:[#allocation3 + $0xd0] sm:$0xff] %vm15, %v1891
    %1933 = vst.msk [vmem:[#allocation3 + $0xd8] sm:$0xff] %vm15, %v1892
    %1934 = vst.msk [vmem:[#allocation3 + $0xe0] sm:$0xff] %vm15, %v1894
    %1935 = vst.msk [vmem:[#allocation3 + $0xe8] sm:$0xff] %vm15, %v1895
    %1936 = vst.msk [vmem:[#allocation3 + $0xf0] sm:$0xff] %vm15, %v1897
    %1937 = vst.msk [vmem:[#allocation3 + $0xf8] sm:$0xff] %vm15, %v1898
    %v1986 = vrot.slane %v1852, 1
    %v1987 = vrot.slane %v1853, 1
    %v1988 = vsel %vm421, %v1986, %v1987
    %v1989 = vrot.slane %v1854, 1
    %v1990 = vsel %vm421, %v1987, %v1989
    %v1991 = vrot.slane %v1855, 1
    %v1992 = vrot.slane %v1856, 1
    %v1993 = vsel %vm421, %v1991, %v1992
    %v1994 = vrot.slane %v1857, 1
    %v1995 = vsel %vm421, %v1992, %v1994
    %v1996 = vrot.slane %v1858, 1
    %v1997 = vrot.slane %v1859, 1
    %v1998 = vsel %vm421, %v1996, %v1997
    %v1999 = vrot.slane %v1860, 1
    %v2000 = vsel %vm421, %v1997, %v1999
    %v2001 = vrot.slane %v1861, 1
    %v2002 = vrot.slane %v1862, 1
    %v2003 = vsel %vm421, %v2001, %v2002
    %v2004 = vrot.slane %v1863, 1
    %v2005 = vsel %vm421, %v2002, %v2004
    %v2006 = vrot.slane %v1864, 1
    %v2007 = vrot.slane %v1865, 1
    %v2008 = vsel %vm421, %v2006, %v2007
    %v2009 = vrot.slane %v1866, 1
    %v2010 = vsel %vm421, %v2007, %v2009
    %v2011 = vrot.slane %v1867, 1
    %v2012 = vrot.slane %v1868, 1
    %v2013 = vsel %vm421, %v2011, %v2012
    %v2014 = vrot.slane %v1869, 1
    %v2015 = vsel %vm421, %v2012, %v2014
    %v2016 = vrot.slane %v1870, 1
    %v2017 = vrot.slane %v1871, 1
    %v2018 = vsel %vm421, %v2016, %v2017
    %v2019 = vrot.slane %v1872, 1
    %v2020 = vsel %vm421, %v2017, %v2019
    %v2021 = vrot.slane %v1873, 1
    %v2022 = vrot.slane %v1874, 1
    %v2023 = vsel %vm421, %v2021, %v2022
    %v2024 = vrot.slane %v1875, 1
    %v2025 = vsel %vm421, %v2022, %v2024
    %v2026 = vrot.slane %v1876, 1
    %v2027 = vrot.slane %v1877, 1
    %v2028 = vsel %vm421, %v2026, %v2027
    %v2029 = vrot.slane %v1878, 1
    %v2030 = vsel %vm421, %v2027, %v2029
    %v2031 = vrot.slane %v1879, 1
    %v2032 = vrot.slane %v1880, 1
    %v2033 = vsel %vm421, %v2031, %v2032
    %v2034 = vrot.slane %v1881, 1
    %v2035 = vsel %vm421, %v2032, %v2034
    %v2036 = vrot.slane %v1882, 1
    %v2037 = vrot.slane %v1883, 1
    %v2038 = vsel %vm421, %v2036, %v2037
    %v2039 = vrot.slane %v1884, 1
    %v2040 = vsel %vm421, %v2037, %v2039
    %v2041 = vrot.slane %v1885, 1
    %v2042 = vrot.slane %v1886, 1
    %v2043 = vsel %vm421, %v2041, %v2042
    %v2044 = vrot.slane %v1887, 1
    %v2045 = vsel %vm421, %v2042, %v2044
    %v2046 = vrot.slane %v1888, 1
    %v2047 = vrot.slane %v1889, 1
    %v2048 = vsel %vm421, %v2046, %v2047
    %v2049 = vrot.slane %v1890, 1
    %v2050 = vsel %vm421, %v2047, %v2049
    %v2051 = vrot.slane %v1891, 1
    %v2052 = vrot.slane %v1892, 1
    %v2053 = vsel %vm421, %v2051, %v2052
    %v2054 = vrot.slane %v1893, 1
    %v2055 = vsel %vm421, %v2052, %v2054
    %v2056 = vrot.slane %v1894, 1
    %v2057 = vrot.slane %v1895, 1
    %v2058 = vsel %vm421, %v2056, %v2057
    %v2059 = vrot.slane %v1896, 1
    %v2060 = vsel %vm421, %v2057, %v2059
    %v2061 = vrot.slane %v1897, 1
    %v2062 = vrot.slane %v1898, 1
    %v2063 = vsel %vm421, %v2061, %v2062
    %v2064 = vrot.slane %v1899, 1
    %v2065 = vsel %vm421, %v2062, %v2064
    %2066 = vrot.lane.b32.xlu0 %v1988, 4
    %v2067 = vpop.permute.xlu0 %2066
    %2068 = vrot.lane.b32.xlu0 %v1990, 4
    %v2069 = vpop.permute.xlu0 %2068
    %2070 = vrot.lane.b32.xlu0 %v1993, 4
    %v2071 = vpop.permute.xlu0 %2070
    %2072 = vrot.lane.b32.xlu0 %v1995, 4
    %v2073 = vpop.permute.xlu0 %2072
    %2074 = vrot.lane.b32.xlu0 %v1998, 4
    %v2075 = vpop.permute.xlu0 %2074
    %2076 = vrot.lane.b32.xlu0 %v2000, 4
    %v2077 = vpop.permute.xlu0 %2076
    %2078 = vrot.lane.b32.xlu0 %v2003, 4
    %v2079 = vpop.permute.xlu0 %2078
    %2080 = vrot.lane.b32.xlu0 %v2005, 4
    %v2081 = vpop.permute.xlu0 %2080
    %2082 = vrot.lane.b32.xlu0 %v2008, 4
    %v2083 = vpop.permute.xlu0 %2082
    %2084 = vrot.lane.b32.xlu0 %v2010, 4
    %v2085 = vpop.permute.xlu0 %2084
    %2086 = vrot.lane.b32.xlu0 %v2013, 4
    %v2087 = vpop.permute.xlu0 %2086
    %2088 = vrot.lane.b32.xlu0 %v2015, 4
    %v2089 = vpop.permute.xlu0 %2088
    %2090 = vrot.lane.b32.xlu0 %v2018, 4
    %v2091 = vpop.permute.xlu0 %2090
    %2092 = vrot.lane.b32.xlu0 %v2020, 4
    %v2093 = vpop.permute.xlu0 %2092
    %2094 = vrot.lane.b32.xlu0 %v2023, 4
    %v2095 = vpop.permute.xlu0 %2094
    %2096 = vrot.lane.b32.xlu0 %v2025, 4
    %v2097 = vpop.permute.xlu0 %2096
    %2098 = vrot.lane.b32.xlu0 %v2028, 4
    %v2099 = vpop.permute.xlu0 %2098
    %2100 = vrot.lane.b32.xlu0 %v2030, 4
    %v2101 = vpop.permute.xlu0 %2100
    %2102 = vrot.lane.b32.xlu0 %v2033, 4
    %v2103 = vpop.permute.xlu0 %2102
    %2104 = vrot.lane.b32.xlu0 %v2035, 4
    %v2105 = vpop.permute.xlu0 %2104
    %2106 = vrot.lane.b32.xlu0 %v2038, 4
    %v2107 = vpop.permute.xlu0 %2106
    %2108 = vrot.lane.b32.xlu0 %v2040, 4
    %v2109 = vpop.permute.xlu0 %2108
    %2110 = vrot.lane.b32.xlu0 %v2043, 4
    %v2111 = vpop.permute.xlu0 %2110
    %2112 = vrot.lane.b32.xlu0 %v2045, 4
    %v2113 = vpop.permute.xlu0 %2112
    %2114 = vrot.lane.b32.xlu0 %v2048, 4
    %v2115 = vpop.permute.xlu0 %2114
    %2116 = vrot.lane.b32.xlu0 %v2050, 4
    %v2117 = vpop.permute.xlu0 %2116
    %2118 = vrot.lane.b32.xlu0 %v2053, 4
    %v2119 = vpop.permute.xlu0 %2118
    %2120 = vrot.lane.b32.xlu0 %v2055, 4
    %v2121 = vpop.permute.xlu0 %2120
    %2122 = vrot.lane.b32.xlu0 %v2058, 4
    %v2123 = vpop.permute.xlu0 %2122
    %2124 = vrot.lane.b32.xlu0 %v2060, 4
    %v2125 = vpop.permute.xlu0 %2124
    %2126 = vrot.lane.b32.xlu0 %v2063, 4
    %v2127 = vpop.permute.xlu0 %2126
    %2128 = vrot.lane.b32.xlu0 %v2065, 4
    %v2129 = vpop.permute.xlu0 %2128
    %2162 = vst.msk [vmem:[#allocation3] sm:$0xff] %vm598, %v2067
    %2163 = vst.msk [vmem:[#allocation3 + $0x8] sm:$0xff] %vm598, %v2069
    %2164 = vst.msk [vmem:[#allocation3 + $0x10] sm:$0xff] %vm598, %v2071
    %2165 = vst.msk [vmem:[#allocation3 + $0x18] sm:$0xff] %vm598, %v2073
    %2166 = vst.msk [vmem:[#allocation3 + $0x20] sm:$0xff] %vm598, %v2075
    %2167 = vst.msk [vmem:[#allocation3 + $0x28] sm:$0xff] %vm598, %v2077
    %2168 = vst.msk [vmem:[#allocation3 + $0x30] sm:$0xff] %vm598, %v2079
    %2169 = vst.msk [vmem:[#allocation3 + $0x38] sm:$0xff] %vm598, %v2081
    %2170 = vst.msk [vmem:[#allocation3 + $0x40] sm:$0xff] %vm598, %v2083
    %2171 = vst.msk [vmem:[#allocation3 + $0x48] sm:$0xff] %vm598, %v2085
    %2172 = vst.msk [vmem:[#allocation3 + $0x50] sm:$0xff] %vm598, %v2087
    %2173 = vst.msk [vmem:[#allocation3 + $0x58] sm:$0xff] %vm598, %v2089
    %2174 = vst.msk [vmem:[#allocation3 + $0x60] sm:$0xff] %vm598, %v2091
    %2175 = vst.msk [vmem:[#allocation3 + $0x68] sm:$0xff] %vm598, %v2093
    %2176 = vst.msk [vmem:[#allocation3 + $0x70] sm:$0xff] %vm598, %v2095
    %2177 = vst.msk [vmem:[#allocation3 + $0x78] sm:$0xff] %vm598, %v2097
    %2178 = vst.msk [vmem:[#allocation3 + $0x80] sm:$0xff] %vm598, %v2099
    %2179 = vst.msk [vmem:[#allocation3 + $0x88] sm:$0xff] %vm598, %v2101
    %2180 = vst.msk [vmem:[#allocation3 + $0x90] sm:$0xff] %vm598, %v2103
    %2181 = vst.msk [vmem:[#allocation3 + $0x98] sm:$0xff] %vm598, %v2105
    %2182 = vst.msk [vmem:[#allocation3 + $0xa0] sm:$0xff] %vm598, %v2107
    %2183 = vst.msk [vmem:[#allocation3 + $0xa8] sm:$0xff] %vm598, %v2109
    %2184 = vst.msk [vmem:[#allocation3 + $0xb0] sm:$0xff] %vm598, %v2111
    %2185 = vst.msk [vmem:[#allocation3 + $0xb8] sm:$0xff] %vm598, %v2113
    %2186 = vst.msk [vmem:[#allocation3 + $0xc0] sm:$0xff] %vm598, %v2115
    %2187 = vst.msk [vmem:[#allocation3 + $0xc8] sm:$0xff] %vm598, %v2117
    %2188 = vst.msk [vmem:[#allocation3 + $0xd0] sm:$0xff] %vm598, %v2119
    %2189 = vst.msk [vmem:[#allocation3 + $0xd8] sm:$0xff] %vm598, %v2121
    %2190 = vst.msk [vmem:[#allocation3 + $0xe0] sm:$0xff] %vm598, %v2123
    %2191 = vst.msk [vmem:[#allocation3 + $0xe8] sm:$0xff] %vm598, %v2125
    %2192 = vst.msk [vmem:[#allocation3 + $0xf0] sm:$0xff] %vm598, %v2127
    %2193 = vst.msk [vmem:[#allocation3 + $0xf8] sm:$0xff] %vm598, %v2129
    %v2194 = vrot.slane %v1852, 2
    %v2195 = vrot.slane %v1853, 2
    %v2196 = vsel %vm631, %v2194, %v2195
    %v2197 = vrot.slane %v1854, 2
    %v2198 = vsel %vm631, %v2195, %v2197
    %v2199 = vrot.slane %v1855, 2
    %v2200 = vrot.slane %v1856, 2
    %v2201 = vsel %vm631, %v2199, %v2200
    %v2202 = vrot.slane %v1857, 2
    %v2203 = vsel %vm631, %v2200, %v2202
    %v2204 = vrot.slane %v1858, 2
    %v2205 = vrot.slane %v1859, 2
    %v2206 = vsel %vm631, %v2204, %v2205
    %v2207 = vrot.slane %v1860, 2
    %v2208 = vsel %vm631, %v2205, %v2207
    %v2209 = vrot.slane %v1861, 2
    %v2210 = vrot.slane %v1862, 2
    %v2211 = vsel %vm631, %v2209, %v2210
    %v2212 = vrot.slane %v1863, 2
    %v2213 = vsel %vm631, %v2210, %v2212
    %v2214 = vrot.slane %v1864, 2
    %v2215 = vrot.slane %v1865, 2
    %v2216 = vsel %vm631, %v2214, %v2215
    %v2217 = vrot.slane %v1866, 2
    %v2218 = vsel %vm631, %v2215, %v2217
    %v2219 = vrot.slane %v1867, 2
    %v2220 = vrot.slane %v1868, 2
    %v2221 = vsel %vm631, %v2219, %v2220
    %v2222 = vrot.slane %v1869, 2
    %v2223 = vsel %vm631, %v2220, %v2222
    %v2224 = vrot.slane %v1870, 2
    %v2225 = vrot.slane %v1871, 2
    %v2226 = vsel %vm631, %v2224, %v2225
    %v2227 = vrot.slane %v1872, 2
    %v2228 = vsel %vm631, %v2225, %v2227
    %v2229 = vrot.slane %v1873, 2
    %v2230 = vrot.slane %v1874, 2
    %v2231 = vsel %vm631, %v2229, %v2230
    %v2232 = vrot.slane %v1875, 2
    %v2233 = vsel %vm631, %v2230, %v2232
    %v2234 = vrot.slane %v1876, 2
    %v2235 = vrot.slane %v1877, 2
    %v2236 = vsel %vm631, %v2234, %v2235
    %v2237 = vrot.slane %v1878, 2
    %v2238 = vsel %vm631, %v2235, %v2237
    %v2239 = vrot.slane %v1879, 2
    %v2240 = vrot.slane %v1880, 2
    %v2241 = vsel %vm631, %v2239, %v2240
    %v2242 = vrot.slane %v1881, 2
    %v2243 = vsel %vm631, %v2240, %v2242
    %v2244 = vrot.slane %v1882, 2
    %v2245 = vrot.slane %v1883, 2
    %v2246 = vsel %vm631, %v2244, %v2245
    %v2247 = vrot.slane %v1884, 2
    %v2248 = vsel %vm631, %v2245, %v2247
    %v2249 = vrot.slane %v1885, 2
    %v2250 = vrot.slane %v1886, 2
    %v2251 = vsel %vm631, %v2249, %v2250
    %v2252 = vrot.slane %v1887, 2
    %v2253 = vsel %vm631, %v2250, %v2252
    %v2254 = vrot.slane %v1888, 2
    %v2255 = vrot.slane %v1889, 2
    %v2256 = vsel %vm631, %v2254, %v2255
    %v2257 = vrot.slane %v1890, 2
    %v2258 = vsel %vm631, %v2255, %v2257
    %v2259 = vrot.slane %v1891, 2
    %v2260 = vrot.slane %v1892, 2
    %v2261 = vsel %vm631, %v2259, %v2260
    %v2262 = vrot.slane %v1893, 2
    %v2263 = vsel %vm631, %v2260, %v2262
    %v2264 = vrot.slane %v1894, 2
    %v2265 = vrot.slane %v1895, 2
    %v2266 = vsel %vm631, %v2264, %v2265
    %v2267 = vrot.slane %v1896, 2
    %v2268 = vsel %vm631, %v2265, %v2267
    %v2269 = vrot.slane %v1897, 2
    %v2270 = vrot.slane %v1898, 2
    %v2271 = vsel %vm631, %v2269, %v2270
    %v2272 = vrot.slane %v1899, 2
    %v2273 = vsel %vm631, %v2270, %v2272
    %2274 = vrot.lane.b32.xlu0 %v2196, 8
    %v2275 = vpop.permute.xlu0 %2274
    %2276 = vrot.lane.b32.xlu0 %v2198, 8
    %v2277 = vpop.permute.xlu0 %2276
    %2278 = vrot.lane.b32.xlu0 %v2201, 8
    %v2279 = vpop.permute.xlu0 %2278
    %2280 = vrot.lane.b32.xlu0 %v2203, 8
    %v2281 = vpop.permute.xlu0 %2280
    %2282 = vrot.lane.b32.xlu0 %v2206, 8
    %v2283 = vpop.permute.xlu0 %2282
    %2284 = vrot.lane.b32.xlu0 %v2208, 8
    %v2285 = vpop.permute.xlu0 %2284
    %2286 = vrot.lane.b32.xlu0 %v2211, 8
    %v2287 = vpop.permute.xlu0 %2286
    %2288 = vrot.lane.b32.xlu0 %v2213, 8
    %v2289 = vpop.permute.xlu0 %2288
    %2290 = vrot.lane.b32.xlu0 %v2216, 8
    %v2291 = vpop.permute.xlu0 %2290
    %2292 = vrot.lane.b32.xlu0 %v2218, 8
    %v2293 = vpop.permute.xlu0 %2292
    %2294 = vrot.lane.b32.xlu0 %v2221, 8
    %v2295 = vpop.permute.xlu0 %2294
    %2296 = vrot.lane.b32.xlu0 %v2223, 8
    %v2297 = vpop.permute.xlu0 %2296
    %2298 = vrot.lane.b32.xlu0 %v2226, 8
    %v2299 = vpop.permute.xlu0 %2298
    %2300 = vrot.lane.b32.xlu0 %v2228, 8
    %v2301 = vpop.permute.xlu0 %2300
    %2302 = vrot.lane.b32.xlu0 %v2231, 8
    %v2303 = vpop.permute.xlu0 %2302
    %2304 = vrot.lane.b32.xlu0 %v2233, 8
    %v2305 = vpop.permute.xlu0 %2304
    %2306 = vrot.lane.b32.xlu0 %v2236, 8
    %v2307 = vpop.permute.xlu0 %2306
    %2308 = vrot.lane.b32.xlu0 %v2238, 8
    %v2309 = vpop.permute.xlu0 %2308
    %2310 = vrot.lane.b32.xlu0 %v2241, 8
    %v2311 = vpop.permute.xlu0 %2310
    %2312 = vrot.lane.b32.xlu0 %v2243, 8
    %v2313 = vpop.permute.xlu0 %2312
    %2314 = vrot.lane.b32.xlu0 %v2246, 8
    %v2315 = vpop.permute.xlu0 %2314
    %2316 = vrot.lane.b32.xlu0 %v2248, 8
    %v2317 = vpop.permute.xlu0 %2316
    %2318 = vrot.lane.b32.xlu0 %v2251, 8
    %v2319 = vpop.permute.xlu0 %2318
    %2320 = vrot.lane.b32.xlu0 %v2253, 8
    %v2321 = vpop.permute.xlu0 %2320
    %2322 = vrot.lane.b32.xlu0 %v2256, 8
    %v2323 = vpop.permute.xlu0 %2322
    %2324 = vrot.lane.b32.xlu0 %v2258, 8
    %v2325 = vpop.permute.xlu0 %2324
    %2326 = vrot.lane.b32.xlu0 %v2261, 8
    %v2327 = vpop.permute.xlu0 %2326
    %2328 = vrot.lane.b32.xlu0 %v2263, 8
    %v2329 = vpop.permute.xlu0 %2328
    %2330 = vrot.lane.b32.xlu0 %v2266, 8
    %v2331 = vpop.permute.xlu0 %2330
    %2332 = vrot.lane.b32.xlu0 %v2268, 8
    %v2333 = vpop.permute.xlu0 %2332
    %2334 = vrot.lane.b32.xlu0 %v2271, 8
    %v2335 = vpop.permute.xlu0 %2334
    %2336 = vrot.lane.b32.xlu0 %v2273, 8
    %v2337 = vpop.permute.xlu0 %2336
    %2370 = vst.msk [vmem:[#allocation3] sm:$0xff] %vm808, %v2275
    %2371 = vst.msk [vmem:[#allocation3 + $0x8] sm:$0xff] %vm808, %v2277
    %2372 = vst.msk [vmem:[#allocation3 + $0x10] sm:$0xff] %vm808, %v2279
    %2373 = vst.msk [vmem:[#allocation3 + $0x18] sm:$0xff] %vm808, %v2281
    %2374 = vst.msk [vmem:[#allocation3 + $0x20] sm:$0xff] %vm808, %v2283
    %2375 = vst.msk [vmem:[#allocation3 + $0x28] sm:$0xff] %vm808, %v2285
    %2376 = vst.msk [vmem:[#allocation3 + $0x30] sm:$0xff] %vm808, %v2287
    %2377 = vst.msk [vmem:[#allocation3 + $0x38] sm:$0xff] %vm808, %v2289
    %2378 = vst.msk [vmem:[#allocation3 + $0x40] sm:$0xff] %vm808, %v2291
    %2379 = vst.msk [vmem:[#allocation3 + $0x48] sm:$0xff] %vm808, %v2293
    %2380 = vst.msk [vmem:[#allocation3 + $0x50] sm:$0xff] %vm808, %v2295
    %2381 = vst.msk [vmem:[#allocation3 + $0x58] sm:$0xff] %vm808, %v2297
    %2382 = vst.msk [vmem:[#allocation3 + $0x60] sm:$0xff] %vm808, %v2299
    %2383 = vst.msk [vmem:[#allocation3 + $0x68] sm:$0xff] %vm808, %v2301
    %2384 = vst.msk [vmem:[#allocation3 + $0x70] sm:$0xff] %vm808, %v2303
    %2385 = vst.msk [vmem:[#allocation3 + $0x78] sm:$0xff] %vm808, %v2305
    %2386 = vst.msk [vmem:[#allocation3 + $0x80] sm:$0xff] %vm808, %v2307
    %2387 = vst.msk [vmem:[#allocation3 + $0x88] sm:$0xff] %vm808, %v2309
    %2388 = vst.msk [vmem:[#allocation3 + $0x90] sm:$0xff] %vm808, %v2311
    %2389 = vst.msk [vmem:[#allocation3 + $0x98] sm:$0xff] %vm808, %v2313
    %2390 = vst.msk [vmem:[#allocation3 + $0xa0] sm:$0xff] %vm808, %v2315
    %2391 = vst.msk [vmem:[#allocation3 + $0xa8] sm:$0xff] %vm808, %v2317
    %2392 = vst.msk [vmem:[#allocation3 + $0xb0] sm:$0xff] %vm808, %v2319
    %2393 = vst.msk [vmem:[#allocation3 + $0xb8] sm:$0xff] %vm808, %v2321
    %2394 = vst.msk [vmem:[#allocation3 + $0xc0] sm:$0xff] %vm808, %v2323
    %2395 = vst.msk [vmem:[#allocation3 + $0xc8] sm:$0xff] %vm808, %v2325
    %2396 = vst.msk [vmem:[#allocation3 + $0xd0] sm:$0xff] %vm808, %v2327
    %2397 = vst.msk [vmem:[#allocation3 + $0xd8] sm:$0xff] %vm808, %v2329
    %2398 = vst.msk [vmem:[#allocation3 + $0xe0] sm:$0xff] %vm808, %v2331
    %2399 = vst.msk [vmem:[#allocation3 + $0xe8] sm:$0xff] %vm808, %v2333
    %2400 = vst.msk [vmem:[#allocation3 + $0xf0] sm:$0xff] %vm808, %v2335
    %2401 = vst.msk [vmem:[#allocation3 + $0xf8] sm:$0xff] %vm808, %v2337
    %2404 = vrot.lane.b32.xlu0 %v1855, 12
    %v2405 = vpop.permute.xlu0 %2404
    %2406 = vrot.lane.b32.xlu0 %v1856, 12
    %v2407 = vpop.permute.xlu0 %2406
    %2408 = vrot.lane.b32.xlu0 %v1858, 12
    %v2409 = vpop.permute.xlu0 %2408
    %2410 = vrot.lane.b32.xlu0 %v1859, 12
    %v2411 = vpop.permute.xlu0 %2410
    %2412 = vrot.lane.b32.xlu0 %v1861, 12
    %v2413 = vpop.permute.xlu0 %2412
    %2414 = vrot.lane.b32.xlu0 %v1862, 12
    %v2415 = vpop.permute.xlu0 %2414
    %2416 = vrot.lane.b32.xlu0 %v1864, 12
    %v2417 = vpop.permute.xlu0 %2416
    %2418 = vrot.lane.b32.xlu0 %v1865, 12
    %v2419 = vpop.permute.xlu0 %2418
    %2420 = vrot.lane.b32.xlu0 %v1867, 12
    %v2421 = vpop.permute.xlu0 %2420
    %2422 = vrot.lane.b32.xlu0 %v1868, 12
    %v2423 = vpop.permute.xlu0 %2422
    %2424 = vrot.lane.b32.xlu0 %v1870, 12
    %v2425 = vpop.permute.xlu0 %2424
    %2426 = vrot.lane.b32.xlu0 %v1871, 12
    %v2427 = vpop.permute.xlu0 %2426
    %2428 = vrot.lane.b32.xlu0 %v1873, 12
    %v2429 = vpop.permute.xlu0 %2428
    %2430 = vrot.lane.b32.xlu0 %v1874, 12
    %v2431 = vpop.permute.xlu0 %2430
    %2432 = vrot.lane.b32.xlu0 %v1876, 12
    %v2433 = vpop.permute.xlu0 %2432
    %2434 = vrot.lane.b32.xlu0 %v1877, 12
    %v2435 = vpop.permute.xlu0 %2434
    %2436 = vrot.lane.b32.xlu0 %v1879, 12
    %v2437 = vpop.permute.xlu0 %2436
    %2438 = vrot.lane.b32.xlu0 %v1880, 12
    %v2439 = vpop.permute.xlu0 %2438
    %2440 = vrot.lane.b32.xlu0 %v1882, 12
    %v2441 = vpop.permute.xlu0 %2440
    %2442 = vrot.lane.b32.xlu0 %v1883, 12
    %v2443 = vpop.permute.xlu0 %2442
    %2444 = vrot.lane.b32.xlu0 %v1885, 12
    %v2445 = vpop.permute.xlu0 %2444
    %2446 = vrot.lane.b32.xlu0 %v1886, 12
    %v2447 = vpop.permute.xlu0 %2446
    %2448 = vrot.lane.b32.xlu0 %v1888, 12
    %v2449 = vpop.permute.xlu0 %2448
    %2450 = vrot.lane.b32.xlu0 %v1889, 12
    %v2451 = vpop.permute.xlu0 %2450
    %2452 = vrot.lane.b32.xlu0 %v1891, 12
    %v2453 = vpop.permute.xlu0 %2452
    %2454 = vrot.lane.b32.xlu0 %v1892, 12
    %v2455 = vpop.permute.xlu0 %2454
    %2456 = vrot.lane.b32.xlu0 %v1894, 12
    %v2457 = vpop.permute.xlu0 %2456
    %2458 = vrot.lane.b32.xlu0 %v1895, 12
    %v2459 = vpop.permute.xlu0 %2458
    %2460 = vrot.lane.b32.xlu0 %v1897, 12
    %v2461 = vpop.permute.xlu0 %2460
    %2462 = vrot.lane.b32.xlu0 %v1898, 12
    %v2463 = vpop.permute.xlu0 %2462
    %2464 = vrot.lane.b32.xlu0 %v1900, 12
    %v2465 = vpop.permute.xlu0 %2464
    %2466 = vrot.lane.b32.xlu0 %v1901, 12
    %v2467 = vpop.permute.xlu0 %2466
    %2500 = vst.msk [vmem:[#allocation3] sm:$0xff] %vm939, %v2405
    %2501 = vst.msk [vmem:[#allocation3 + $0x8] sm:$0xff] %vm939, %v2407
    %2502 = vst.msk [vmem:[#allocation3 + $0x10] sm:$0xff] %vm939, %v2409
    %2503 = vst.msk [vmem:[#allocation3 + $0x18] sm:$0xff] %vm939, %v2411
    %2504 = vst.msk [vmem:[#allocation3 + $0x20] sm:$0xff] %vm939, %v2413
    %2505 = vst.msk [vmem:[#allocation3 + $0x28] sm:$0xff] %vm939, %v2415
    %2506 = vst.msk [vmem:[#allocation3 + $0x30] sm:$0xff] %vm939, %v2417
    %2507 = vst.msk [vmem:[#allocation3 + $0x38] sm:$0xff] %vm939, %v2419
    %2508 = vst.msk [vmem:[#allocation3 + $0x40] sm:$0xff] %vm939, %v2421
    %2509 = vst.msk [vmem:[#allocation3 + $0x48] sm:$0xff] %vm939, %v2423
    %2510 = vst.msk [vmem:[#allocation3 + $0x50] sm:$0xff] %vm939, %v2425
    %2511 = vst.msk [vmem:[#allocation3 + $0x58] sm:$0xff] %vm939, %v2427
    %2512 = vst.msk [vmem:[#allocation3 + $0x60] sm:$0xff] %vm939, %v2429
    %2513 = vst.msk [vmem:[#allocation3 + $0x68] sm:$0xff] %vm939, %v2431
    %2514 = vst.msk [vmem:[#allocation3 + $0x70] sm:$0xff] %vm939, %v2433
    %2515 = vst.msk [vmem:[#allocation3 + $0x78] sm:$0xff] %vm939, %v2435
    %2516 = vst.msk [vmem:[#allocation3 + $0x80] sm:$0xff] %vm939, %v2437
    %2517 = vst.msk [vmem:[#allocation3 + $0x88] sm:$0xff] %vm939, %v2439
    %2518 = vst.msk [vmem:[#allocation3 + $0x90] sm:$0xff] %vm939, %v2441
    %2519 = vst.msk [vmem:[#allocation3 + $0x98] sm:$0xff] %vm939, %v2443
    %2520 = vst.msk [vmem:[#allocation3 + $0xa0] sm:$0xff] %vm939, %v2445
    %2521 = vst.msk [vmem:[#allocation3 + $0xa8] sm:$0xff] %vm939, %v2447
    %2522 = vst.msk [vmem:[#allocation3 + $0xb0] sm:$0xff] %vm939, %v2449
    %2523 = vst.msk [vmem:[#allocation3 + $0xb8] sm:$0xff] %vm939, %v2451
    %2524 = vst.msk [vmem:[#allocation3 + $0xc0] sm:$0xff] %vm939, %v2453
    %2525 = vst.msk [vmem:[#allocation3 + $0xc8] sm:$0xff] %vm939, %v2455
    %2526 = vst.msk [vmem:[#allocation3 + $0xd0] sm:$0xff] %vm939, %v2457
    %2527 = vst.msk [vmem:[#allocation3 + $0xd8] sm:$0xff] %vm939, %v2459
    %2528 = vst.msk [vmem:[#allocation3 + $0xe0] sm:$0xff] %vm939, %v2461
    %2529 = vst.msk [vmem:[#allocation3 + $0xe8] sm:$0xff] %vm939, %v2463
    %2530 = vst.msk [vmem:[#allocation3 + $0xf0] sm:$0xff] %vm939, %v2465
    %2531 = vst.msk [vmem:[#allocation3 + $0xf8] sm:$0xff] %vm939, %v2467
    %v2533 = vrot.slane %v1900, 1
    %v2534 = vrot.slane %v1901, 1
    %v2535 = vsel %vm421, %v2533, %v2534
    %v2536 = vrot.slane %v1902, 1
    %v2537 = vsel %vm421, %v2534, %v2536
    %2538 = vrot.lane.b32.xlu0 %v1993, 16
    %v2539 = vpop.permute.xlu0 %2538
    %2540 = vrot.lane.b32.xlu0 %v1995, 16
    %v2541 = vpop.permute.xlu0 %2540
    %2542 = vrot.lane.b32.xlu0 %v1998, 16
    %v2543 = vpop.permute.xlu0 %2542
    %2544 = vrot.lane.b32.xlu0 %v2000, 16
    %v2545 = vpop.permute.xlu0 %2544
    %2546 = vrot.lane.b32.xlu0 %v2003, 16
    %v2547 = vpop.permute.xlu0 %2546
    %2548 = vrot.lane.b32.xlu0 %v2005, 16
    %v2549 = vpop.permute.xlu0 %2548
    %2550 = vrot.lane.b32.xlu0 %v2008, 16
    %v2551 = vpop.permute.xlu0 %2550
    %2552 = vrot.lane.b32.xlu0 %v2010, 16
    %v2553 = vpop.permute.xlu0 %2552
    %2554 = vrot.lane.b32.xlu0 %v2013, 16
    %v2555 = vpop.permute.xlu0 %2554
    %2556 = vrot.lane.b32.xlu0 %v2015, 16
    %v2557 = vpop.permute.xlu0 %2556
    %2558 = vrot.lane.b32.xlu0 %v2018, 16
    %v2559 = vpop.permute.xlu0 %2558
    %2560 = vrot.lane.b32.xlu0 %v2020, 16
    %v2561 = vpop.permute.xlu0 %2560
    %2562 = vrot.lane.b32.xlu0 %v2023, 16
    %v2563 = vpop.permute.xlu0 %2562
    %2564 = vrot.lane.b32.xlu0 %v2025, 16
    %v2565 = vpop.permute.xlu0 %2564
    %2566 = vrot.lane.b32.xlu0 %v2028, 16
    %v2567 = vpop.permute.xlu0 %2566
    %2568 = vrot.lane.b32.xlu0 %v2030, 16
    %v2569 = vpop.permute.xlu0 %2568
    %2570 = vrot.lane.b32.xlu0 %v2033, 16
    %v2571 = vpop.permute.xlu0 %2570
    %2572 = vrot.lane.b32.xlu0 %v2035, 16
    %v2573 = vpop.permute.xlu0 %2572
    %2574 = vrot.lane.b32.xlu0 %v2038, 16
    %v2575 = vpop.permute.xlu0 %2574
    %2576 = vrot.lane.b32.xlu0 %v2040, 16
    %v2577 = vpop.permute.xlu0 %2576
    %2578 = vrot.lane.b32.xlu0 %v2043, 16
    %v2579 = vpop.permute.xlu0 %2578
    %2580 = vrot.lane.b32.xlu0 %v2045, 16
    %v2581 = vpop.permute.xlu0 %2580
    %2582 = vrot.lane.b32.xlu0 %v2048, 16
    %v2583 = vpop.permute.xlu0 %2582
    %2584 = vrot.lane.b32.xlu0 %v2050, 16
    %v2585 = vpop.permute.xlu0 %2584
    %2586 = vrot.lane.b32.xlu0 %v2053, 16
    %v2587 = vpop.permute.xlu0 %2586
    %2588 = vrot.lane.b32.xlu0 %v2055, 16
    %v2589 = vpop.permute.xlu0 %2588
    %2590 = vrot.lane.b32.xlu0 %v2058, 16
    %v2591 = vpop.permute.xlu0 %2590
    %2592 = vrot.lane.b32.xlu0 %v2060, 16
    %v2593 = vpop.permute.xlu0 %2592
    %2594 = vrot.lane.b32.xlu0 %v2063, 16
    %v2595 = vpop.permute.xlu0 %2594
    %2596 = vrot.lane.b32.xlu0 %v2065, 16
    %v2597 = vpop.permute.xlu0 %2596
    %2598 = vrot.lane.b32.xlu0 %v2535, 16
    %v2599 = vpop.permute.xlu0 %2598
    %2600 = vrot.lane.b32.xlu0 %v2537, 16
    %v2601 = vpop.permute.xlu0 %2600
    %2634 = vst.msk [vmem:[#allocation3] sm:$0xff] %vm1074, %v2539
    %2635 = vst.msk [vmem:[#allocation3 + $0x8] sm:$0xff] %vm1074, %v2541
    %2636 = vst.msk [vmem:[#allocation3 + $0x10] sm:$0xff] %vm1074, %v2543
    %2637 = vst.msk [vmem:[#allocation3 + $0x18] sm:$0xff] %vm1074, %v2545
    %2638 = vst.msk [vmem:[#allocation3 + $0x20] sm:$0xff] %vm1074, %v2547
    %2639 = vst.msk [vmem:[#allocation3 + $0x28] sm:$0xff] %vm1074, %v2549
    %2640 = vst.msk [vmem:[#allocation3 + $0x30] sm:$0xff] %vm1074, %v2551
    %2641 = vst.msk [vmem:[#allocation3 + $0x38] sm:$0xff] %vm1074, %v2553
    %2642 = vst.msk [vmem:[#allocation3 + $0x40] sm:$0xff] %vm1074, %v2555
    %2643 = vst.msk [vmem:[#allocation3 + $0x48] sm:$0xff] %vm1074, %v2557
    %2644 = vst.msk [vmem:[#allocation3 + $0x50] sm:$0xff] %vm1074, %v2559
    %2645 = vst.msk [vmem:[#allocation3 + $0x58] sm:$0xff] %vm1074, %v2561
    %2646 = vst.msk [vmem:[#allocation3 + $0x60] sm:$0xff] %vm1074, %v2563
    %2647 = vst.msk [vmem:[#allocation3 + $0x68] sm:$0xff] %vm1074, %v2565
    %2648 = vst.msk [vmem:[#allocation3 + $0x70] sm:$0xff] %vm1074, %v2567
    %2649 = vst.msk [vmem:[#allocation3 + $0x78] sm:$0xff] %vm1074, %v2569
    %2650 = vst.msk [vmem:[#allocation3 + $0x80] sm:$0xff] %vm1074, %v2571
    %2651 = vst.msk [vmem:[#allocation3 + $0x88] sm:$0xff] %vm1074, %v2573
    %2652 = vst.msk [vmem:[#allocation3 + $0x90] sm:$0xff] %vm1074, %v2575
    %2653 = vst.msk [vmem:[#allocation3 + $0x98] sm:$0xff] %vm1074, %v2577
    %2654 = vst.msk [vmem:[#allocation3 + $0xa0] sm:$0xff] %vm1074, %v2579
    %2655 = vst.msk [vmem:[#allocation3 + $0xa8] sm:$0xff] %vm1074, %v2581
    %2656 = vst.msk [vmem:[#allocation3 + $0xb0] sm:$0xff] %vm1074, %v2583
    %2657 = vst.msk [vmem:[#allocation3 + $0xb8] sm:$0xff] %vm1074, %v2585
    %2658 = vst.msk [vmem:[#allocation3 + $0xc0] sm:$0xff] %vm1074, %v2587
    %2659 = vst.msk [vmem:[#allocation3 + $0xc8] sm:$0xff] %vm1074, %v2589
    %2660 = vst.msk [vmem:[#allocation3 + $0xd0] sm:$0xff] %vm1074, %v2591
    %2661 = vst.msk [vmem:[#allocation3 + $0xd8] sm:$0xff] %vm1074, %v2593
    %2662 = vst.msk [vmem:[#allocation3 + $0xe0] sm:$0xff] %vm1074, %v2595
    %2663 = vst.msk [vmem:[#allocation3 + $0xe8] sm:$0xff] %vm1074, %v2597
    %2664 = vst.msk [vmem:[#allocation3 + $0xf0] sm:$0xff] %vm1074, %v2599
    %2665 = vst.msk [vmem:[#allocation3 + $0xf8] sm:$0xff] %vm1074, %v2601
    %v2666 = vrot.slane %v1900, 2
    %v2667 = vrot.slane %v1901, 2
    %v2668 = vsel %vm631, %v2666, %v2667
    %v2669 = vrot.slane %v1902, 2
    %v2670 = vsel %vm631, %v2667, %v2669
    %2671 = vrot.lane.b32.xlu0 %v2201, 20
    %v2672 = vpop.permute.xlu0 %2671
    %2673 = vrot.lane.b32.xlu0 %v2203, 20
    %v2674 = vpop.permute.xlu0 %2673
    %2675 = vrot.lane.b32.xlu0 %v2206, 20
    %v2676 = vpop.permute.xlu0 %2675
    %2677 = vrot.lane.b32.xlu0 %v2208, 20
    %v2678 = vpop.permute.xlu0 %2677
    %2679 = vrot.lane.b32.xlu0 %v2211, 20
    %v2680 = vpop.permute.xlu0 %2679
    %2681 = vrot.lane.b32.xlu0 %v2213, 20
    %v2682 = vpop.permute.xlu0 %2681
    %2683 = vrot.lane.b32.xlu0 %v2216, 20
    %v2684 = vpop.permute.xlu0 %2683
    %2685 = vrot.lane.b32.xlu0 %v2218, 20
    %v2686 = vpop.permute.xlu0 %2685
    %2687 = vrot.lane.b32.xlu0 %v2221, 20
    %v2688 = vpop.permute.xlu0 %2687
    %2689 = vrot.lane.b32.xlu0 %v2223, 20
    %v2690 = vpop.permute.xlu0 %2689
    %2691 = vrot.lane.b32.xlu0 %v2226, 20
    %v2692 = vpop.permute.xlu0 %2691
    %2693 = vrot.lane.b32.xlu0 %v2228, 20
    %v2694 = vpop.permute.xlu0 %2693
    %2695 = vrot.lane.b32.xlu0 %v2231, 20
    %v2696 = vpop.permute.xlu0 %2695
    %2697 = vrot.lane.b32.xlu0 %v2233, 20
    %v2698 = vpop.permute.xlu0 %2697
    %2699 = vrot.lane.b32.xlu0 %v2236, 20
    %v2700 = vpop.permute.xlu0 %2699
    %2701 = vrot.lane.b32.xlu0 %v2238, 20
    %v2702 = vpop.permute.xlu0 %2701
    %2703 = vrot.lane.b32.xlu0 %v2241, 20
    %v2704 = vpop.permute.xlu0 %2703
    %2705 = vrot.lane.b32.xlu0 %v2243, 20
    %v2706 = vpop.permute.xlu0 %2705
    %2707 = vrot.lane.b32.xlu0 %v2246, 20
    %v2708 = vpop.permute.xlu0 %2707
    %2709 = vrot.lane.b32.xlu0 %v2248, 20
    %v2710 = vpop.permute.xlu0 %2709
    %2711 = vrot.lane.b32.xlu0 %v2251, 20
    %v2712 = vpop.permute.xlu0 %2711
    %2713 = vrot.lane.b32.xlu0 %v2253, 20
    %v2714 = vpop.permute.xlu0 %2713
    %2715 = vrot.lane.b32.xlu0 %v2256, 20
    %v2716 = vpop.permute.xlu0 %2715
    %2717 = vrot.lane.b32.xlu0 %v2258, 20
    %v2718 = vpop.permute.xlu0 %2717
    %2719 = vrot.lane.b32.xlu0 %v2261, 20
    %v2720 = vpop.permute.xlu0 %2719
    %2721 = vrot.lane.b32.xlu0 %v2263, 20
    %v2722 = vpop.permute.xlu0 %2721
    %2723 = vrot.lane.b32.xlu0 %v2266, 20
    %v2724 = vpop.permute.xlu0 %2723
    %2725 = vrot.lane.b32.xlu0 %v2268, 20
    %v2726 = vpop.permute.xlu0 %2725
    %2727 = vrot.lane.b32.xlu0 %v2271, 20
    %v2728 = vpop.permute.xlu0 %2727
    %2729 = vrot.lane.b32.xlu0 %v2273, 20
    %v2730 = vpop.permute.xlu0 %2729
    %2731 = vrot.lane.b32.xlu0 %v2668, 20
    %v2732 = vpop.permute.xlu0 %2731
    %2733 = vrot.lane.b32.xlu0 %v2670, 20
    %v2734 = vpop.permute.xlu0 %2733
    %2767 = vst.msk [vmem:[#allocation3] sm:$0xff] %vm1208, %v2672
    %2768 = vst.msk [vmem:[#allocation3 + $0x8] sm:$0xff] %vm1208, %v2674
    %2769 = vst.msk [vmem:[#allocation3 + $0x10] sm:$0xff] %vm1208, %v2676
    %2770 = vst.msk [vmem:[#allocation3 + $0x18] sm:$0xff] %vm1208, %v2678
    %2771 = vst.msk [vmem:[#allocation3 + $0x20] sm:$0xff] %vm1208, %v2680
    %2772 = vst.msk [vmem:[#allocation3 + $0x28] sm:$0xff] %vm1208, %v2682
    %2773 = vst.msk [vmem:[#allocation3 + $0x30] sm:$0xff] %vm1208, %v2684
    %2774 = vst.msk [vmem:[#allocation3 + $0x38] sm:$0xff] %vm1208, %v2686
    %2775 = vst.msk [vmem:[#allocation3 + $0x40] sm:$0xff] %vm1208, %v2688
    %2776 = vst.msk [vmem:[#allocation3 + $0x48] sm:$0xff] %vm1208, %v2690
    %2777 = vst.msk [vmem:[#allocation3 + $0x50] sm:$0xff] %vm1208, %v2692
    %2778 = vst.msk [vmem:[#allocation3 + $0x58] sm:$0xff] %vm1208, %v2694
    %2779 = vst.msk [vmem:[#allocation3 + $0x60] sm:$0xff] %vm1208, %v2696
    %2780 = vst.msk [vmem:[#allocation3 + $0x68] sm:$0xff] %vm1208, %v2698
    %2781 = vst.msk [vmem:[#allocation3 + $0x70] sm:$0xff] %vm1208, %v2700
    %2782 = vst.msk [vmem:[#allocation3 + $0x78] sm:$0xff] %vm1208, %v2702
    %2783 = vst.msk [vmem:[#allocation3 + $0x80] sm:$0xff] %vm1208, %v2704
    %2784 = vst.msk [vmem:[#allocation3 + $0x88] sm:$0xff] %vm1208, %v2706
    %2785 = vst.msk [vmem:[#allocation3 + $0x90] sm:$0xff] %vm1208, %v2708
    %2786 = vst.msk [vmem:[#allocation3 + $0x98] sm:$0xff] %vm1208, %v2710
    %2787 = vst.msk [vmem:[#allocation3 + $0xa0] sm:$0xff] %vm1208, %v2712
    %2788 = vst.msk [vmem:[#allocation3 + $0xa8] sm:$0xff] %vm1208, %v2714
    %2789 = vst.msk [vmem:[#allocation3 + $0xb0] sm:$0xff] %vm1208, %v2716
    %2790 = vst.msk [vmem:[#allocation3 + $0xb8] sm:$0xff] %vm1208, %v2718
    %2791 = vst.msk [vmem:[#allocation3 + $0xc0] sm:$0xff] %vm1208, %v2720
    %2792 = vst.msk [vmem:[#allocation3 + $0xc8] sm:$0xff] %vm1208, %v2722
    %2793 = vst.msk [vmem:[#allocation3 + $0xd0] sm:$0xff] %vm1208, %v2724
    %2794 = vst.msk [vmem:[#allocation3 + $0xd8] sm:$0xff] %vm1208, %v2726
    %2795 = vst.msk [vmem:[#allocation3 + $0xe0] sm:$0xff] %vm1208, %v2728
    %2796 = vst.msk [vmem:[#allocation3 + $0xe8] sm:$0xff] %vm1208, %v2730
    %2797 = vst.msk [vmem:[#allocation3 + $0xf0] sm:$0xff] %vm1208, %v2732
    %2798 = vst.msk [vmem:[#allocation3 + $0xf8] sm:$0xff] %vm1208, %v2734
    %2801 = vrot.lane.b32.xlu0 %v1858, 24
    %v2802 = vpop.permute.xlu0 %2801
    %2803 = vrot.lane.b32.xlu0 %v1859, 24
    %v2804 = vpop.permute.xlu0 %2803
    %2805 = vrot.lane.b32.xlu0 %v1861, 24
    %v2806 = vpop.permute.xlu0 %2805
    %2807 = vrot.lane.b32.xlu0 %v1862, 24
    %v2808 = vpop.permute.xlu0 %2807
    %2809 = vrot.lane.b32.xlu0 %v1864, 24
    %v2810 = vpop.permute.xlu0 %2809
    %2811 = vrot.lane.b32.xlu0 %v1865, 24
    %v2812 = vpop.permute.xlu0 %2811
    %2813 = vrot.lane.b32.xlu0 %v1867, 24
    %v2814 = vpop.permute.xlu0 %2813
    %2815 = vrot.lane.b32.xlu0 %v1868, 24
    %v2816 = vpop.permute.xlu0 %2815
    %2817 = vrot.lane.b32.xlu0 %v1870, 24
    %v2818 = vpop.permute.xlu0 %2817
    %2819 = vrot.lane.b32.xlu0 %v1871, 24
    %v2820 = vpop.permute.xlu0 %2819
    %2821 = vrot.lane.b32.xlu0 %v1873, 24
    %v2822 = vpop.permute.xlu0 %2821
    %2823 = vrot.lane.b32.xlu0 %v1874, 24
    %v2824 = vpop.permute.xlu0 %2823
    %2825 = vrot.lane.b32.xlu0 %v1876, 24
    %v2826 = vpop.permute.xlu0 %2825
    %2827 = vrot.lane.b32.xlu0 %v1877, 24
    %v2828 = vpop.permute.xlu0 %2827
    %2829 = vrot.lane.b32.xlu0 %v1879, 24
    %v2830 = vpop.permute.xlu0 %2829
    %2831 = vrot.lane.b32.xlu0 %v1880, 24
    %v2832 = vpop.permute.xlu0 %2831
    %2833 = vrot.lane.b32.xlu0 %v1882, 24
    %v2834 = vpop.permute.xlu0 %2833
    %2835 = vrot.lane.b32.xlu0 %v1883, 24
    %v2836 = vpop.permute.xlu0 %2835
    %2837 = vrot.lane.b32.xlu0 %v1885, 24
    %v2838 = vpop.permute.xlu0 %2837
    %2839 = vrot.lane.b32.xlu0 %v1886, 24
    %v2840 = vpop.permute.xlu0 %2839
    %2841 = vrot.lane.b32.xlu0 %v1888, 24
    %v2842 = vpop.permute.xlu0 %2841
    %2843 = vrot.lane.b32.xlu0 %v1889, 24
    %v2844 = vpop.permute.xlu0 %2843
    %2845 = vrot.lane.b32.xlu0 %v1891, 24
    %v2846 = vpop.permute.xlu0 %2845
    %2847 = vrot.lane.b32.xlu0 %v1892, 24
    %v2848 = vpop.permute.xlu0 %2847
    %2849 = vrot.lane.b32.xlu0 %v1894, 24
    %v2850 = vpop.permute.xlu0 %2849
    %2851 = vrot.lane.b32.xlu0 %v1895, 24
    %v2852 = vpop.permute.xlu0 %2851
    %2853 = vrot.lane.b32.xlu0 %v1897, 24
    %v2854 = vpop.permute.xlu0 %2853
    %2855 = vrot.lane.b32.xlu0 %v1898, 24
    %v2856 = vpop.permute.xlu0 %2855
    %2857 = vrot.lane.b32.xlu0 %v1900, 24
    %v2858 = vpop.permute.xlu0 %2857
    %2859 = vrot.lane.b32.xlu0 %v1901, 24
    %v2860 = vpop.permute.xlu0 %2859
    %2861 = vrot.lane.b32.xlu0 %v1903, 24
    %v2862 = vpop.permute.xlu0 %2861
    %2863 = vrot.lane.b32.xlu0 %v1904, 24
    %v2864 = vpop.permute.xlu0 %2863
    %2897 = vst.msk [vmem:[#allocation3] sm:$0xff] %vm1339, %v2802
    %2898 = vst.msk [vmem:[#allocation3 + $0x8] sm:$0xff] %vm1339, %v2804
    %2899 = vst.msk [vmem:[#allocation3 + $0x10] sm:$0xff] %vm1339, %v2806
    %2900 = vst.msk [vmem:[#allocation3 + $0x18] sm:$0xff] %vm1339, %v2808
    %2901 = vst.msk [vmem:[#allocation3 + $0x20] sm:$0xff] %vm1339, %v2810
    %2902 = vst.msk [vmem:[#allocation3 + $0x28] sm:$0xff] %vm1339, %v2812
    %2903 = vst.msk [vmem:[#allocation3 + $0x30] sm:$0xff] %vm1339, %v2814
    %2904 = vst.msk [vmem:[#allocation3 + $0x38] sm:$0xff] %vm1339, %v2816
    %2905 = vst.msk [vmem:[#allocation3 + $0x40] sm:$0xff] %vm1339, %v2818
    %2906 = vst.msk [vmem:[#allocation3 + $0x48] sm:$0xff] %vm1339, %v2820
    %2907 = vst.msk [vmem:[#allocation3 + $0x50] sm:$0xff] %vm1339, %v2822
    %2908 = vst.msk [vmem:[#allocation3 + $0x58] sm:$0xff] %vm1339, %v2824
    %2909 = vst.msk [vmem:[#allocation3 + $0x60] sm:$0xff] %vm1339, %v2826
    %2910 = vst.msk [vmem:[#allocation3 + $0x68] sm:$0xff] %vm1339, %v2828
    %2911 = vst.msk [vmem:[#allocation3 + $0x70] sm:$0xff] %vm1339, %v2830
    %2912 = vst.msk [vmem:[#allocation3 + $0x78] sm:$0xff] %vm1339, %v2832
    %2913 = vst.msk [vmem:[#allocation3 + $0x80] sm:$0xff] %vm1339, %v2834
    %2914 = vst.msk [vmem:[#allocation3 + $0x88] sm:$0xff] %vm1339, %v2836
    %2915 = vst.msk [vmem:[#allocation3 + $0x90] sm:$0xff] %vm1339, %v2838
    %2916 = vst.msk [vmem:[#allocation3 + $0x98] sm:$0xff] %vm1339, %v2840
    %2917 = vst.msk [vmem:[#allocation3 + $0xa0] sm:$0xff] %vm1339, %v2842
    %2918 = vst.msk [vmem:[#allocation3 + $0xa8] sm:$0xff] %vm1339, %v2844
    %2919 = vst.msk [vmem:[#allocation3 + $0xb0] sm:$0xff] %vm1339, %v2846
    %2920 = vst.msk [vmem:[#allocation3 + $0xb8] sm:$0xff] %vm1339, %v2848
    %2921 = vst.msk [vmem:[#allocation3 + $0xc0] sm:$0xff] %vm1339, %v2850
    %2922 = vst.msk [vmem:[#allocation3 + $0xc8] sm:$0xff] %vm1339, %v2852
    %2923 = vst.msk [vmem:[#allocation3 + $0xd0] sm:$0xff] %vm1339, %v2854
    %2924 = vst.msk [vmem:[#allocation3 + $0xd8] sm:$0xff] %vm1339, %v2856
    %2925 = vst.msk [vmem:[#allocation3 + $0xe0] sm:$0xff] %vm1339, %v2858
    %2926 = vst.msk [vmem:[#allocation3 + $0xe8] sm:$0xff] %vm1339, %v2860
    %2927 = vst.msk [vmem:[#allocation3 + $0xf0] sm:$0xff] %vm1339, %v2862
    %2928 = vst.msk [vmem:[#allocation3 + $0xf8] sm:$0xff] %vm1339, %v2864
    %v2930 = vrot.slane %v1903, 1
    %v2931 = vrot.slane %v1904, 1
    %v2932 = vsel %vm421, %v2930, %v2931
    %v2933 = vrot.slane %v1905, 1
    %v2934 = vsel %vm421, %v2931, %v2933
    %2935 = vrot.lane.b32.xlu0 %v1998, 28
    %v2936 = vpop.permute.xlu0 %2935
    %2937 = vrot.lane.b32.xlu0 %v2000, 28
    %v2938 = vpop.permute.xlu0 %2937
    %2939 = vrot.lane.b32.xlu0 %v2003, 28
    %v2940 = vpop.permute.xlu0 %2939
    %2941 = vrot.lane.b32.xlu0 %v2005, 28
    %v2942 = vpop.permute.xlu0 %2941
    %2943 = vrot.lane.b32.xlu0 %v2008, 28
    %v2944 = vpop.permute.xlu0 %2943
    %2945 = vrot.lane.b32.xlu0 %v2010, 28
    %v2946 = vpop.permute.xlu0 %2945
    %2947 = vrot.lane.b32.xlu0 %v2013, 28
    %v2948 = vpop.permute.xlu0 %2947
    %2949 = vrot.lane.b32.xlu0 %v2015, 28
    %v2950 = vpop.permute.xlu0 %2949
    %2951 = vrot.lane.b32.xlu0 %v2018, 28
    %v2952 = vpop.permute.xlu0 %2951
    %2953 = vrot.lane.b32.xlu0 %v2020, 28
    %v2954 = vpop.permute.xlu0 %2953
    %2955 = vrot.lane.b32.xlu0 %v2023, 28
    %v2956 = vpop.permute.xlu0 %2955
    %2957 = vrot.lane.b32.xlu0 %v2025, 28
    %v2958 = vpop.permute.xlu0 %2957
    %2959 = vrot.lane.b32.xlu0 %v2028, 28
    %v2960 = vpop.permute.xlu0 %2959
    %2961 = vrot.lane.b32.xlu0 %v2030, 28
    %v2962 = vpop.permute.xlu0 %2961
    %2963 = vrot.lane.b32.xlu0 %v2033, 28
    %v2964 = vpop.permute.xlu0 %2963
    %2965 = vrot.lane.b32.xlu0 %v2035, 28
    %v2966 = vpop.permute.xlu0 %2965
    %2967 = vrot.lane.b32.xlu0 %v2038, 28
    %v2968 = vpop.permute.xlu0 %2967
    %2969 = vrot.lane.b32.xlu0 %v2040, 28
    %v2970 = vpop.permute.xlu0 %2969
    %2971 = vrot.lane.b32.xlu0 %v2043, 28
    %v2972 = vpop.permute.xlu0 %2971
    %2973 = vrot.lane.b32.xlu0 %v2045, 28
    %v2974 = vpop.permute.xlu0 %2973
    %2975 = vrot.lane.b32.xlu0 %v2048, 28
    %v2976 = vpop.permute.xlu0 %2975
    %2977 = vrot.lane.b32.xlu0 %v2050, 28
    %v2978 = vpop.permute.xlu0 %2977
    %2979 = vrot.lane.b32.xlu0 %v2053, 28
    %v2980 = vpop.permute.xlu0 %2979
    %2981 = vrot.lane.b32.xlu0 %v2055, 28
    %v2982 = vpop.permute.xlu0 %2981
    %2983 = vrot.lane.b32.xlu0 %v2058, 28
    %v2984 = vpop.permute.xlu0 %2983
    %2985 = vrot.lane.b32.xlu0 %v2060, 28
    %v2986 = vpop.permute.xlu0 %2985
    %2987 = vrot.lane.b32.xlu0 %v2063, 28
    %v2988 = vpop.permute.xlu0 %2987
    %2989 = vrot.lane.b32.xlu0 %v2065, 28
    %v2990 = vpop.permute.xlu0 %2989
    %2991 = vrot.lane.b32.xlu0 %v2535, 28
    %v2992 = vpop.permute.xlu0 %2991
    %2993 = vrot.lane.b32.xlu0 %v2537, 28
    %v2994 = vpop.permute.xlu0 %2993
    %2995 = vrot.lane.b32.xlu0 %v2932, 28
    %v2996 = vpop.permute.xlu0 %2995
    %2997 = vrot.lane.b32.xlu0 %v2934, 28
    %v2998 = vpop.permute.xlu0 %2997
    %3031 = vst.msk [vmem:[#allocation3] sm:$0xff] %vm1474, %v2936
    %3032 = vst.msk [vmem:[#allocation3 + $0x8] sm:$0xff] %vm1474, %v2938
    %3033 = vst.msk [vmem:[#allocation3 + $0x10] sm:$0xff] %vm1474, %v2940
    %3034 = vst.msk [vmem:[#allocation3 + $0x18] sm:$0xff] %vm1474, %v2942
    %3035 = vst.msk [vmem:[#allocation3 + $0x20] sm:$0xff] %vm1474, %v2944
    %3036 = vst.msk [vmem:[#allocation3 + $0x28] sm:$0xff] %vm1474, %v2946
    %3037 = vst.msk [vmem:[#allocation3 + $0x30] sm:$0xff] %vm1474, %v2948
    %3038 = vst.msk [vmem:[#allocation3 + $0x38] sm:$0xff] %vm1474, %v2950
    %3039 = vst.msk [vmem:[#allocation3 + $0x40] sm:$0xff] %vm1474, %v2952
    %3040 = vst.msk [vmem:[#allocation3 + $0x48] sm:$0xff] %vm1474, %v2954
    %3041 = vst.msk [vmem:[#allocation3 + $0x50] sm:$0xff] %vm1474, %v2956
    %3042 = vst.msk [vmem:[#allocation3 + $0x58] sm:$0xff] %vm1474, %v2958
    %3043 = vst.msk [vmem:[#allocation3 + $0x60] sm:$0xff] %vm1474, %v2960
    %3044 = vst.msk [vmem:[#allocation3 + $0x68] sm:$0xff] %vm1474, %v2962
    %3045 = vst.msk [vmem:[#allocation3 + $0x70] sm:$0xff] %vm1474, %v2964
    %3046 = vst.msk [vmem:[#allocation3 + $0x78] sm:$0xff] %vm1474, %v2966
    %3047 = vst.msk [vmem:[#allocation3 + $0x80] sm:$0xff] %vm1474, %v2968
    %3048 = vst.msk [vmem:[#allocation3 + $0x88] sm:$0xff] %vm1474, %v2970
    %3049 = vst.msk [vmem:[#allocation3 + $0x90] sm:$0xff] %vm1474, %v2972
    %3050 = vst.msk [vmem:[#allocation3 + $0x98] sm:$0xff] %vm1474, %v2974
    %3051 = vst.msk [vmem:[#allocation3 + $0xa0] sm:$0xff] %vm1474, %v2976
    %3052 = vst.msk [vmem:[#allocation3 + $0xa8] sm:$0xff] %vm1474, %v2978
    %3053 = vst.msk [vmem:[#allocation3 + $0xb0] sm:$0xff] %vm1474, %v2980
    %3054 = vst.msk [vmem:[#allocation3 + $0xb8] sm:$0xff] %vm1474, %v2982
    %3055 = vst.msk [vmem:[#allocation3 + $0xc0] sm:$0xff] %vm1474, %v2984
    %3056 = vst.msk [vmem:[#allocation3 + $0xc8] sm:$0xff] %vm1474, %v2986
    %3057 = vst.msk [vmem:[#allocation3 + $0xd0] sm:$0xff] %vm1474, %v2988
    %3058 = vst.msk [vmem:[#allocation3 + $0xd8] sm:$0xff] %vm1474, %v2990
    %3059 = vst.msk [vmem:[#allocation3 + $0xe0] sm:$0xff] %vm1474, %v2992
    %3060 = vst.msk [vmem:[#allocation3 + $0xe8] sm:$0xff] %vm1474, %v2994
    %3061 = vst.msk [vmem:[#allocation3 + $0xf0] sm:$0xff] %vm1474, %v2996
    %3062 = vst.msk [vmem:[#allocation3 + $0xf8] sm:$0xff] %vm1474, %v2998
    %v3063 = vrot.slane %v1903, 2
    %v3064 = vrot.slane %v1904, 2
    %v3065 = vsel %vm631, %v3063, %v3064
    %v3066 = vrot.slane %v1905, 2
    %v3067 = vsel %vm631, %v3064, %v3066
    %3068 = vrot.lane.b32.xlu0 %v2206, 32
    %v3069 = vpop.permute.xlu0 %3068
    %3070 = vrot.lane.b32.xlu0 %v2208, 32
    %v3071 = vpop.permute.xlu0 %3070
    %3072 = vrot.lane.b32.xlu0 %v2211, 32
    %v3073 = vpop.permute.xlu0 %3072
    %3074 = vrot.lane.b32.xlu0 %v2213, 32
    %v3075 = vpop.permute.xlu0 %3074
    %3076 = vrot.lane.b32.xlu0 %v2216, 32
    %v3077 = vpop.permute.xlu0 %3076
    %3078 = vrot.lane.b32.xlu0 %v2218, 32
    %v3079 = vpop.permute.xlu0 %3078
    %3080 = vrot.lane.b32.xlu0 %v2221, 32
    %v3081 = vpop.permute.xlu0 %3080
    %3082 = vrot.lane.b32.xlu0 %v2223, 32
    %v3083 = vpop.permute.xlu0 %3082
    %3084 = vrot.lane.b32.xlu0 %v2226, 32
    %v3085 = vpop.permute.xlu0 %3084
    %3086 = vrot.lane.b32.xlu0 %v2228, 32
    %v3087 = vpop.permute.xlu0 %3086
    %3088 = vrot.lane.b32.xlu0 %v2231, 32
    %v3089 = vpop.permute.xlu0 %3088
    %3090 = vrot.lane.b32.xlu0 %v2233, 32
    %v3091 = vpop.permute.xlu0 %3090
    %3092 = vrot.lane.b32.xlu0 %v2236, 32
    %v3093 = vpop.permute.xlu0 %3092
    %3094 = vrot.lane.b32.xlu0 %v2238, 32
    %v3095 = vpop.permute.xlu0 %3094
    %3096 = vrot.lane.b32.xlu0 %v2241, 32
    %v3097 = vpop.permute.xlu0 %3096
    %3098 = vrot.lane.b32.xlu0 %v2243, 32
    %v3099 = vpop.permute.xlu0 %3098
    %3100 = vrot.lane.b32.xlu0 %v2246, 32
    %v3101 = vpop.permute.xlu0 %3100
    %3102 = vrot.lane.b32.xlu0 %v2248, 32
    %v3103 = vpop.permute.xlu0 %3102
    %3104 = vrot.lane.b32.xlu0 %v2251, 32
    %v3105 = vpop.permute.xlu0 %3104
    %3106 = vrot.lane.b32.xlu0 %v2253, 32
    %v3107 = vpop.permute.xlu0 %3106
    %3108 = vrot.lane.b32.xlu0 %v2256, 32
    %v3109 = vpop.permute.xlu0 %3108
    %3110 = vrot.lane.b32.xlu0 %v2258, 32
    %v3111 = vpop.permute.xlu0 %3110
    %3112 = vrot.lane.b32.xlu0 %v2261, 32
    %v3113 = vpop.permute.xlu0 %3112
    %3114 = vrot.lane.b32.xlu0 %v2263, 32
    %v3115 = vpop.permute.xlu0 %3114
    %3116 = vrot.lane.b32.xlu0 %v2266, 32
    %v3117 = vpop.permute.xlu0 %3116
    %3118 = vrot.lane.b32.xlu0 %v2268, 32
    %v3119 = vpop.permute.xlu0 %3118
    %3120 = vrot.lane.b32.xlu0 %v2271, 32
    %v3121 = vpop.permute.xlu0 %3120
    %3122 = vrot.lane.b32.xlu0 %v2273, 32
    %v3123 = vpop.permute.xlu0 %3122
    %3124 = vrot.lane.b32.xlu0 %v2668, 32
    %v3125 = vpop.permute.xlu0 %3124
    %3126 = vrot.lane.b32.xlu0 %v2670, 32
    %v3127 = vpop.permute.xlu0 %3126
    %3128 = vrot.lane.b32.xlu0 %v3065, 32
    %v3129 = vpop.permute.xlu0 %3128
    %3130 = vrot.lane.b32.xlu0 %v3067, 32
    %v3131 = vpop.permute.xlu0 %3130
    %3164 = vst.msk [vmem:[#allocation3] sm:$0xff] %vm1608, %v3069
    %3165 = vst.msk [vmem:[#allocation3 + $0x8] sm:$0xff] %vm1608, %v3071
    %3166 = vst.msk [vmem:[#allocation3 + $0x10] sm:$0xff] %vm1608, %v3073
    %3167 = vst.msk [vmem:[#allocation3 + $0x18] sm:$0xff] %vm1608, %v3075
    %3168 = vst.msk [vmem:[#allocation3 + $0x20] sm:$0xff] %vm1608, %v3077
    %3169 = vst.msk [vmem:[#allocation3 + $0x28] sm:$0xff] %vm1608, %v3079
    %3170 = vst.msk [vmem:[#allocation3 + $0x30] sm:$0xff] %vm1608, %v3081
    %3171 = vst.msk [vmem:[#allocation3 + $0x38] sm:$0xff] %vm1608, %v3083
    %3172 = vst.msk [vmem:[#allocation3 + $0x40] sm:$0xff] %vm1608, %v3085
    %3173 = vst.msk [vmem:[#allocation3 + $0x48] sm:$0xff] %vm1608, %v3087
    %3174 = vst.msk [vmem:[#allocation3 + $0x50] sm:$0xff] %vm1608, %v3089
    %3175 = vst.msk [vmem:[#allocation3 + $0x58] sm:$0xff] %vm1608, %v3091
    %3176 = vst.msk [vmem:[#allocation3 + $0x60] sm:$0xff] %vm1608, %v3093
    %3177 = vst.msk [vmem:[#allocation3 + $0x68] sm:$0xff] %vm1608, %v3095
    %3178 = vst.msk [vmem:[#allocation3 + $0x70] sm:$0xff] %vm1608, %v3097
    %3179 = vst.msk [vmem:[#allocation3 + $0x78] sm:$0xff] %vm1608, %v3099
    %3180 = vst.msk [vmem:[#allocation3 + $0x80] sm:$0xff] %vm1608, %v3101
    %3181 = vst.msk [vmem:[#allocation3 + $0x88] sm:$0xff] %vm1608, %v3103
    %3182 = vst.msk [vmem:[#allocation3 + $0x90] sm:$0xff] %vm1608, %v3105
    %3183 = vst.msk [vmem:[#allocation3 + $0x98] sm:$0xff] %vm1608, %v3107
    %3184 = vst.msk [vmem:[#allocation3 + $0xa0] sm:$0xff] %vm1608, %v3109
    %3185 = vst.msk [vmem:[#allocation3 + $0xa8] sm:$0xff] %vm1608, %v3111
    %3186 = vst.msk [vmem:[#allocation3 + $0xb0] sm:$0xff] %vm1608, %v3113
    %3187 = vst.msk [vmem:[#allocation3 + $0xb8] sm:$0xff] %vm1608, %v3115
    %3188 = vst.msk [vmem:[#allocation3 + $0xc0] sm:$0xff] %vm1608, %v3117
    %3189 = vst.msk [vmem:[#allocation3 + $0xc8] sm:$0xff] %vm1608, %v3119
    %3190 = vst.msk [vmem:[#allocation3 + $0xd0] sm:$0xff] %vm1608, %v3121
    %3191 = vst.msk [vmem:[#allocation3 + $0xd8] sm:$0xff] %vm1608, %v3123
    %3192 = vst.msk [vmem:[#allocation3 + $0xe0] sm:$0xff] %vm1608, %v3125
    %3193 = vst.msk [vmem:[#allocation3 + $0xe8] sm:$0xff] %vm1608, %v3127
    %3194 = vst.msk [vmem:[#allocation3 + $0xf0] sm:$0xff] %vm1608, %v3129
    %3195 = vst.msk [vmem:[#allocation3 + $0xf8] sm:$0xff] %vm1608, %v3131
    %v3196 = vld [vmem:[%s1] sm:$0xff]
    %v3197 = vld [vmem:[#allocation3] sm:$0xff]
    %v3198 = vld [vmem:[#allocation3 + $0x8] sm:$0xff]
    %v3199 = vld [vmem:[#allocation3 + $0x10] sm:$0xff]
    %v3200 = vld [vmem:[#allocation3 + $0x18] sm:$0xff]
    %v3201 = vld [vmem:[#allocation3 + $0x20] sm:$0xff]
    %v3202 = vld [vmem:[#allocation3 + $0x28] sm:$0xff]
    %v3203 = vld [vmem:[#allocation3 + $0x30] sm:$0xff]
    %v3204 = vld [vmem:[#allocation3 + $0x38] sm:$0xff]
    %v3205 = vld [vmem:[#allocation3 + $0x40] sm:$0xff]
    %v3206 = vld [vmem:[#allocation3 + $0x48] sm:$0xff]
    %v3207 = vld [vmem:[#allocation3 + $0x50] sm:$0xff]
    %v3208 = vld [vmem:[#allocation3 + $0x58] sm:$0xff]
    %v3209 = vld [vmem:[#allocation3 + $0x60] sm:$0xff]
    %v3210 = vld [vmem:[#allocation3 + $0x68] sm:$0xff]
    %v3211 = vld [vmem:[#allocation3 + $0x70] sm:$0xff]
    %v3212 = vld [vmem:[#allocation3 + $0x78] sm:$0xff]
    %v3213 = vld [vmem:[#allocation3 + $0x80] sm:$0xff]
    %v3214 = vld [vmem:[#allocation3 + $0x88] sm:$0xff]
    %v3215 = vld [vmem:[#allocation3 + $0x90] sm:$0xff]
    %v3216 = vld [vmem:[#allocation3 + $0x98] sm:$0xff]
    %v3217 = vld [vmem:[#allocation3 + $0xa0] sm:$0xff]
    %v3218 = vld [vmem:[#allocation3 + $0xa8] sm:$0xff]
    %v3219 = vld [vmem:[#allocation3 + $0xb0] sm:$0xff]
    %v3220 = vld [vmem:[#allocation3 + $0xb8] sm:$0xff]
    %v3221 = vld [vmem:[#allocation3 + $0xc0] sm:$0xff]
    %v3222 = vld [vmem:[#allocation3 + $0xc8] sm:$0xff]
    %v3223 = vld [vmem:[#allocation3 + $0xd0] sm:$0xff]
    %v3224 = vld [vmem:[#allocation3 + $0xd8] sm:$0xff]
    %v3225 = vld [vmem:[#allocation3 + $0xe0] sm:$0xff]
    %v3226 = vld [vmem:[#allocation3 + $0xe8] sm:$0xff]
    %v3227 = vld [vmem:[#allocation3 + $0xf0] sm:$0xff]
    %v3228 = vld [vmem:[#allocation3 + $0xf8] sm:$0xff]
    %s3229 = scalar_lea.vmem %s2, 16
    %v3230 = vld [vmem:[%s3229] sm:$0xff]
    %v3231 = vld [vmem:[%s3229 + $0x8] sm:$0xff]
    %v3232 = vmul.f32 %v3230, 0.5
    %v3233 = vmul.f32 %v3231, 0.5
    %v3235 = vsel %vm1678, %v3196, 0
    %v3238 = vsel %vm1678, %v3197, 0
    %v3241 = vsel %vm1678, %v3198, 0
    %v3244 = vsel %vm1678, %v3199, 0
    %v3247 = vsel %vm1678, %v3200, 0
    %v3250 = vsel %vm1678, %v3201, 0
    %v3253 = vsel %vm1678, %v3202, 0
    %v3256 = vsel %vm1678, %v3203, 0
    %v3259 = vsel %vm1678, %v3204, 0
    %v3262 = vsel %vm1678, %v3205, 0
    %v3265 = vsel %vm1678, %v3206, 0
    %v3268 = vsel %vm1678, %v3207, 0
    %v3271 = vsel %vm1678, %v3208, 0
    %v3274 = vsel %vm1678, %v3209, 0
    %v3277 = vsel %vm1678, %v3210, 0
    %v3280 = vsel %vm1678, %v3211, 0
    %v3283 = vsel %vm1678, %v3212, 0
    %v3286 = vsel %vm1678, %v3213, 0
    %v3289 = vsel %vm1678, %v3214, 0
    %v3292 = vsel %vm1678, %v3215, 0
    %v3295 = vsel %vm1678, %v3216, 0
    %v3298 = vsel %vm1678, %v3217, 0
    %v3301 = vsel %vm1678, %v3218, 0
    %v3304 = vsel %vm1678, %v3219, 0
    %v3307 = vsel %vm1678, %v3220, 0
    %v3310 = vsel %vm1678, %v3221, 0
    %v3313 = vsel %vm1678, %v3222, 0
    %v3316 = vsel %vm1678, %v3223, 0
    %v3319 = vsel %vm1678, %v3224, 0
    %v3322 = vsel %vm1678, %v3225, 0
    %v3325 = vsel %vm1678, %v3226, 0
    %v3328 = vsel %vm1678, %v3227, 0
    %v3331 = vsel %vm1678, %v3228, 0
    %3333 = vmatprep.subr.mxu0 0.0
    %3334 = vmatpush1.xpose.msra.mxu0 %v3238
    %3335 = vmatprep.subr.mxu0 0.0
    %3336 = vmatpush1.xpose.msra.mxu0 %v3241
    %3337 = vmatprep.subr.mxu0 0.0
    %3338 = vmatpush1.xpose.msra.mxu0 %v3244
    %3339 = vmatprep.subr.mxu0 0.0
    %3340 = vmatpush1.xpose.msra.mxu0 %v3247
    %3341 = vmatprep.subr.mxu0 0.0
    %3342 = vmatpush1.xpose.msra.mxu0 %v3250
    %3343 = vmatprep.subr.mxu0 0.0
    %3344 = vmatpush1.xpose.msra.mxu0 %v3253
    %3345 = vmatprep.subr.mxu0 0.0
    %3346 = vmatpush1.xpose.msra.mxu0 %v3256
    %3347 = vmatprep.subr.mxu0 0.0
    %3348 = vmatpush1.xpose.msra.mxu0 %v3259
    %3349 = vmatprep.subr.mxu0 0.0
    %3350 = vmatpush1.xpose.msra.mxu0 %v3262
    %3351 = vmatprep.subr.mxu0 0.0
    %3352 = vmatpush1.xpose.msra.mxu0 %v3265
    %3353 = vmatprep.subr.mxu0 0.0
    %3354 = vmatpush1.xpose.msra.mxu0 %v3268
    %3355 = vmatprep.subr.mxu0 0.0
    %3356 = vmatpush1.xpose.msra.mxu0 %v3271
    %3357 = vmatprep.subr.mxu0 0.0
    %3358 = vmatpush1.xpose.msra.mxu0 %v3274
    %3359 = vmatprep.subr.mxu0 0.0
    %3360 = vmatpush1.xpose.msra.mxu0 %v3277
    %3361 = vmatprep.subr.mxu0 0.0
    %3362 = vmatpush1.xpose.msra.mxu0 %v3280
    %3363 = vmatprep.subr.mxu0 0.0
    %3364 = vmatpush1.xpose.msra.mxu0 %v3283
    %3365 = vmatprep.subr.mxu0 0.0
    %3366 = vmatpush1.xpose.msra.mxu0 %v3286
    %3367 = vmatprep.subr.mxu0 0.0
    %3368 = vmatpush1.xpose.msra.mxu0 %v3289
    %3369 = vmatprep.subr.mxu0 0.0
    %3370 = vmatpush1.xpose.msra.mxu0 %v3292
    %3371 = vmatprep.subr.mxu0 0.0
    %3372 = vmatpush1.xpose.msra.mxu0 %v3295
    %3373 = vmatprep.subr.mxu0 0.0
    %3374 = vmatpush1.xpose.msra.mxu0 %v3298
    %3375 = vmatprep.subr.mxu0 0.0
    %3376 = vmatpush1.xpose.msra.mxu0 %v3301
    %3377 = vmatprep.subr.mxu0 0.0
    %3378 = vmatpush1.xpose.msra.mxu0 %v3304
    %3379 = vmatprep.subr.mxu0 0.0
    %3380 = vmatpush1.xpose.msra.mxu0 %v3307
    %3381 = vmatprep.subr.mxu0 0.0
    %3382 = vmatpush1.xpose.msra.mxu0 %v3310
    %3383 = vmatprep.subr.mxu0 0.0
    %3384 = vmatpush1.xpose.msra.mxu0 %v3313
    %3385 = vmatprep.subr.mxu0 0.0
    %3386 = vmatpush1.xpose.msra.mxu0 %v3316
    %3387 = vmatprep.subr.mxu0 0.0
    %3388 = vmatpush1.xpose.msra.mxu0 %v3319
    %3389 = vmatprep.subr.mxu0 0.0
    %3390 = vmatpush1.xpose.msra.mxu0 %v3322
    %3391 = vmatprep.subr.mxu0 0.0
    %3392 = vmatpush1.xpose.msra.mxu0 %v3325
    %3393 = vmatprep.subr.mxu0 0.0
    %3394 = vmatpush1.xpose.msra.mxu0 %v3328
    %3395 = vmatprep.subr.mxu0 0.0
    %3396 = vmatpush1.xpose.msra.mxu0 %v3331
    %3397 = vmatprep.mubr.f32.mxu0 0.0
    %3398 = vmatmul.mubr.f32.gmra.mrb[0].mxu0 %v3235
    %v3399 = vpop.f32.mrb[0].mxu0
    %v3400 = vadd.f32 %v3232, %v3399
    %v3401 = vpop.f32.mrb[0].mxu0
    %v3402 = vadd.f32 %v3233, %v3401
    %3403 = vdwg.mxu0
    %s3404 = scalar_lea.vmem [#allocation4], 16
    %3405 = vst [vmem:[%s3404] sm:$0xff] %v3400
    %3406 = vst [vmem:[%s3404 + $0x8] sm:$0xff] %v3402
    // Predicated region
    $region14: #{tpu_custom_call.1} parent=1 // pred_check
      _
    $region15: #{tpu_custom_call.1} parent=1 // pred_check_branch
      %3408 = sbr.rel (0) target = $region17
    $region16: #{tpu_custom_call.1} parent=1 // pred_region
      %s3410 = ssub.s32 512, 512
      %3411 = vsyncadd [#allocation5], %s3410
      %s3412 = sshll.u32 [#allocation4], 4
      %s3413 = int_to_ptr.vmem [resolvable:$true] %s3412
      %3418 = dma.vmem_to_hbm [thread:$0]  %s3413, 512, %s3, [#allocation5], 256, 256, 16
    $region17: #{tpu_custom_call.1} parent=1 // pred_fallthru
      _
    // Predicated region
    $region18: #{tpu_custom_call.1} parent=1 // pred_check
      _
    $region19: #{tpu_custom_call.1} parent=1 // pred_check_branch
      %3420 = sbr.rel (0) target = $region21
    $region20: #{tpu_custom_call.1} parent=1 // pred_region
      %3421 = dma.done [#allocation5], 512
    $region21: #{tpu_custom_call.1} parent=1 // pred_fallthru
      _
    %3422 = vsyncpa [#allocation5], 1

</llo_original>
